<compile_context>
chip_gen: v7x
topology: tpu7x:2x2x1
jax: 0.10.0
libtpu: 0.0.40
codegen_flags: <defaults>
</compile_context>

<pallas_src>
import jax
import jax.numpy as jnp
from jax.experimental import pallas as pl
from jax.experimental.pallas import tpu as pltpu


# ---------------------------------------------------------------------------
# Fused whole-network kernel (factory closes over static architecture dims)
# ---------------------------------------------------------------------------
def _make_fused_kernel(B, chans, hs, n_out, out_w):
    """B: batch; chans: (C0,16,32,64,128); hs: spatial sizes (H0..H4);
    n_out: 1 + n_classes; out_w: lane-padded output width."""
    ds2 = hs[4] * hs[4]

    def post(y, aff_ref):
        # conv bias -> LeakyReLU(0.2) -> (Dropout2d = identity, eval) -> folded BN
        y = y + aff_ref[0:1, :]
        y = jnp.maximum(y, 0.2 * y)
        # TODO(synk): Dropout2d(0.25) is identity in eval mode (no RNG mask emitted).
        return y * aff_ref[1:2, :] + aff_ref[2:3, :]

    def scatter(y, x_ref, n_sp, cout):
        # y rows ordered (ho, wo, b); write into the next block's zero-padded
        # activation scratch [Hp, B, Wp*C] (interior only, border stays zero).
        for q in range(n_sp * n_sp):
            ho, wo = q // n_sp, q % n_sp
            x_ref[ho + 1, :, (wo + 1) * cout:(wo + 2) * cout] = y[q * B:(q + 1) * B, :]

    def gather(x_ref, n_sp, cin):
        # im2col [n_sp*n_sp*B, 9*cin] for a 3x3/stride-2/pad-1 conv: contiguous
        # [B, 3*cin] lane slices (3 taps at a time) from the padded scratch.
        # Taps end up concatenated along K -> a single GEMM per block.
        rows = []
        for ho in range(n_sp):
            for wo in range(n_sp):
                taps = [x_ref[2 * ho + di, :, (2 * wo) * cin:(2 * wo + 3) * cin]
                        for di in range(3)]
                rows.append(jnp.concatenate(taps, axis=1))          # [B, 9*cin]
        return jnp.concatenate(rows, axis=0)                        # [Q*B, 9*cin]

    def kernel(a1_ref, w1_ref, aff1_ref, w2_ref, aff2_ref,
               w3_hbm, aff3_ref, w4_hbm, aff4_ref, wh_ref, bh_ref,
               out_ref,
               x2_ref, x3_ref, x4_ref, w3_buf, w4_buf, dma_sem):
        # Overlap the HBM->VMEM DMA of the two big late-block weights (bf16)
        # with block-1/2 compute instead of paying it in the serial prologue.
        cp3 = pltpu.make_async_copy(w3_hbm, w3_buf, dma_sem.at[0])
        cp4 = pltpu.make_async_copy(w4_hbm, w4_buf, dma_sem.at[1])
        cp3.start()
        cp4.start()

        # Zero the padded activation scratches (borders encode the conv zero pad).
        x2_ref[...] = jnp.zeros(x2_ref.shape, x2_ref.dtype)
        x3_ref[...] = jnp.zeros(x3_ref.shape, x3_ref.dtype)
        x4_ref[...] = jnp.zeros(x4_ref.shape, x4_ref.dtype)

        # ---- block 1: im2col built outside the kernel (input plumbing); K = 9*C0.
        y = post(jnp.dot(a1_ref[...], w1_ref[...],
                         preferred_element_type=jnp.float32), aff1_ref)
        scatter(y, x2_ref, hs[1], chans[1])

        # ---- block 2: K = 144.
        a2 = gather(x2_ref, hs[2], chans[1])
        y = post(jnp.dot(a2, w2_ref[...],
                         preferred_element_type=jnp.float32), aff2_ref)
        scatter(y, x3_ref, hs[2], chans[2])

        # ---- block 3: K = 288 (weights arrive via the overlapped DMA).
        a3 = gather(x3_ref, hs[3], chans[2])
        cp3.wait()
        y = post(jnp.dot(a3, w3_buf[...].astype(jnp.float32),
                         preferred_element_type=jnp.float32), aff3_ref)
        scatter(y, x4_ref, hs[3], chans[3])

        # ---- block 4: K = 576.
        a4 = gather(x4_ref, hs[4], chans[3])
        cp4.wait()
        y4 = post(jnp.dot(a4, w4_buf[...].astype(jnp.float32),
                          preferred_element_type=jnp.float32), aff4_ref)  # [ds2*B, 128]

        # ---- heads: one fused GEMM against [w_adv | w_aux] (batch on rows).
        z = bh_ref[...]                                             # [1, 1+n_cls]
        for q in range(ds2):
            z = z + jnp.dot(y4[q * B:(q + 1) * B, :], wh_ref[q],
                            preferred_element_type=jnp.float32)
        v = 1.0 / (1.0 + jnp.exp(-z[:, 0:1]))                       # sigmoid (exact)
        logits = z[:, 1:]
        e = jnp.exp(logits - jnp.max(logits, axis=1, keepdims=True))
        p = e / jnp.sum(e, axis=1, keepdims=True)                   # softmax (exact)
        res = jnp.concatenate([v, p], axis=1)
        if out_w > n_out:
            res = jnp.concatenate(
                [res, jnp.zeros((B, out_w - n_out), jnp.float32)], axis=1)
        out_ref[...] = res                                          # single lane-padded store

    return kernel


# ---------------------------------------------------------------------------
# Forward wrapper (one pallas_call, everything VMEM-resident)
# ---------------------------------------------------------------------------
def discriminator_forward(img, packed):
    """img: [B, C, H, W] float32 (NCHW).  Returns (validity [B], label [B, n_cls])."""
    B, C, H, W = img.shape
    chans = (C, 16, 32, 64, 128)
    hs = (H, H // 2, H // 4, H // 8, H // 16)
    n_out = int(packed["wh"].shape[2])
    n_classes = n_out - 1
    out_w = ((n_out + 127) // 128) * 128

    # One-time input layout plumbing (XLA side): im2col for block 1 only.
    # Rows ordered (ho, wo, b), columns ordered (di, dj, c) to match w1 packing.
    Ho = hs[1]
    imgp = jnp.pad(img, ((0, 0), (0, 0), (1, 1), (1, 1)))
    taps = [imgp[:, :, di:di + 2 * Ho:2, dj:dj + 2 * Ho:2]
            for di in range(3) for dj in range(3)]                  # each [B, C, Ho, Ho]
    a1 = jnp.stack(taps, axis=1)                                    # [B, 9, C, Ho, Ho]
    a1 = a1.transpose(3, 4, 0, 1, 2).reshape(Ho * Ho * B, 9 * C)

    kernel = _make_fused_kernel(B, chans, hs, n_out, out_w)

    vmem = pl.BlockSpec(memory_space=pltpu.MemorySpace.VMEM)
    hbm = pl.BlockSpec(memory_space=pl.ANY)   # big late weights: manual overlapped DMA

    inputs = (a1, packed["w1"], packed["aff1"], packed["w2"], packed["aff2"],
              packed["w3"], packed["aff3"], packed["w4"], packed["aff4"],
              packed["wh"], packed["bh"])
    in_specs = [vmem, vmem, vmem, vmem, vmem, hbm, vmem, hbm, vmem, vmem, vmem]

    scratch_shapes = [
        pltpu.VMEM((hs[1] + 2, B, (hs[1] + 2) * chans[1]), jnp.float32),  # x2 padded act
        pltpu.VMEM((hs[2] + 2, B, (hs[2] + 2) * chans[2]), jnp.float32),  # x3 padded act
        pltpu.VMEM((hs[3] + 2, B, (hs[3] + 2) * chans[3]), jnp.float32),  # x4 padded act
        pltpu.VMEM(packed["w3"].shape, packed["w3"].dtype),               # w3 landing buf
        pltpu.VMEM(packed["w4"].shape, packed["w4"].dtype),               # w4 landing buf
        pltpu.SemaphoreType.DMA((2,)),
    ]

    # TODO(synk): at this size everything fits far under the VMEM cap on
    # v5e/v6e/v7x and B=2 fits one TensorCore; for larger B add a batch grid
    # with dimension_semantics=("parallel",) so both v7x TCs do work.
    out = pl.pallas_call(
        kernel,
        out_shape=jax.ShapeDtypeStruct((B, out_w), jnp.float32),
        in_specs=in_specs,
        out_specs=vmem,
        scratch_shapes=scratch_shapes,
    )(*inputs)

    return out[:, 0], out[:, 1:1 + n_classes]


# ---------------------------------------------------------------------------
# Parameters (synthetic, deterministic) in PyTorch layout
# ---------------------------------------------------------------------------
def make_raw_params(key, img_channel_num, img_size, n_classes):
    ch = [img_channel_num, 16, 32, 64, 128]
    has_bn = [False, True, True, True]
    bn_eps = 0.8  # nn.BatchNorm2d(out_filters, 0.8): the 0.8 is eps, not momentum.
    blocks = []
    for b in range(4):
        cin, cout = ch[b], ch[b + 1]
        key, kw, kb, kg, kbe, km, kv = jax.random.split(key, 7)
        w = jax.random.normal(kw, (cout, cin, 3, 3), jnp.float32) / jnp.sqrt(cin * 9.0)
        bias = 0.01 * jax.random.normal(kb, (cout,), jnp.float32)
        if has_bn[b]:
            gamma = 1.0 + 0.1 * jax.random.normal(kg, (cout,), jnp.float32)
            beta = 0.1 * jax.random.normal(kbe, (cout,), jnp.float32)
            rmean = 0.1 * jax.random.normal(km, (cout,), jnp.float32)
            rvar = jax.random.uniform(kv, (cout,), jnp.float32, minval=0.5, maxval=1.5)
            scale = gamma / jnp.sqrt(rvar + bn_eps)   # eval-mode folding
            shift = beta - rmean * scale
        else:
            scale = jnp.ones((cout,), jnp.float32)
            shift = jnp.zeros((cout,), jnp.float32)
        blocks.append(dict(w=w, b=bias, scale=scale, shift=shift))

    ds = img_size // 2 ** 4
    feat = 128 * ds * ds
    key, ka, kab, kx, kxb = jax.random.split(key, 5)
    w_adv = jax.random.normal(ka, (feat, 1), jnp.float32) / jnp.sqrt(float(feat))
    b_adv = 0.01 * jax.random.normal(kab, (1,), jnp.float32)
    w_aux = jax.random.normal(kx, (feat, n_classes), jnp.float32) / jnp.sqrt(float(feat))
    b_aux = 0.01 * jax.random.normal(kxb, (n_classes,), jnp.float32)
    return dict(blocks=blocks, w_adv=w_adv, b_adv=b_adv, w_aux=w_aux, b_aux=b_aux)


# ---------------------------------------------------------------------------
# Offline packing (batch-size independent)
# ---------------------------------------------------------------------------
def pack_params(raw, img_size, n_classes):
    packed = {}
    for i, blk in enumerate(raw["blocks"]):
        w = jnp.asarray(blk["w"], jnp.float32)                   # [Cout, Cin, 3, 3]
        cout, cin = int(w.shape[0]), int(w.shape[1])
        # [9*Cin, Cout], rows ordered (di, dj, cin) to match the in-kernel im2col.
        w9 = jnp.transpose(w, (2, 3, 1, 0)).reshape(9 * cin, cout)
        if i >= 2:
            # bf16 storage for the two big weights halves their HBM bytes; the
            # kernel casts back to f32 before the MXU (error ~1e-3 relative).
            w9 = w9.astype(jnp.bfloat16)
        packed[f"w{i + 1}"] = w9
        packed[f"aff{i + 1}"] = jnp.stack(
            [jnp.asarray(blk["b"], jnp.float32),
             jnp.asarray(blk["scale"], jnp.float32),
             jnp.asarray(blk["shift"], jnp.float32)], axis=0)    # [3, Cout]

    ds = img_size // 2 ** 4
    ds2 = ds * ds
    n_out = 1 + n_classes
    # Fused head [w_adv | w_aux]; fold the PyTorch NCHW-flatten (c, spatial)
    # ordering into per-spatial-position [128, 1+n] weight slices.
    w_full = jnp.concatenate([raw["w_adv"], raw["w_aux"]], axis=1)       # [128*ds2, 1+n]
    packed["wh"] = w_full.reshape(128, ds2, n_out).transpose(1, 0, 2)    # [ds2, 128, 1+n]
    packed["bh"] = jnp.concatenate([raw["b_adv"], raw["b_aux"]])[None, :]
    return packed


# ---------------------------------------------------------------------------
# Pure-JAX reference (for correctness check)
# ---------------------------------------------------------------------------
def reference_forward(img, raw):
    hp = jax.lax.Precision.HIGHEST
    x = img
    for blk in raw["blocks"]:
        x = jax.lax.conv_general_dilated(
            x, blk["w"], window_strides=(2, 2), padding=((1, 1), (1, 1)),
            dimension_numbers=("NCHW", "OIHW", "NCHW"), precision=hp)
        x = x + blk["b"][None, :, None, None]
        x = jnp.where(x > 0, x, 0.2 * x)
        x = x * blk["scale"][None, :, None, None] + blk["shift"][None, :, None, None]
    feat = x.reshape(x.shape[0], -1)
    validity = jax.nn.sigmoid(jnp.dot(feat, raw["w_adv"], precision=hp)
                              + raw["b_adv"][None, :])
    label = jax.nn.softmax(jnp.dot(feat, raw["w_aux"], precision=hp)
                           + raw["b_aux"][None, :], axis=1)
    return jnp.squeeze(validity), label


# ---------------------------------------------------------------------------
# Main
# ---------------------------------------------------------------------------
if __name__ == "__main__":
    B = 2
    img_channel_num = 4
    img_size = 16            # ds_size = 16 // 2**4 = 1 -> feature dim 128
    n_classes = 10

    root = jax.random.PRNGKey(0)
    k_img, k_par = jax.random.split(root)
    img = jax.random.normal(k_img, (B, img_channel_num, img_size, img_size), jnp.float32)

    raw = make_raw_params(k_par, img_channel_num, img_size, n_classes)
    packed = pack_params(raw, img_size, n_classes)

    fwd = jax.jit(discriminator_forward)
    validity, label = fwd(img, packed)
    jax.block_until_ready((validity, label))

    assert validity.shape == (B,), validity.shape
    assert label.shape == (B, n_classes), label.shape
    assert bool(jnp.all(jnp.isfinite(validity))) and bool(jnp.all(jnp.isfinite(label)))
    assert bool(jnp.allclose(jnp.sum(label, axis=1), 1.0, atol=1e-2))

    v_ref, l_ref = reference_forward(img, raw)
    dv = float(jnp.max(jnp.abs(validity - v_ref)))
    dl = float(jnp.max(jnp.abs(label - l_ref)))
    assert dv < 2e-2 and dl < 2e-2, ("mismatch vs reference", dv, dl)

    print("KERNEL_OK")
</pallas_src>

<mosaic_0001>
module attributes {stable_mosaic.version = 11 : i64} {
  func.func @kernel(%arg0: memref<128x36xf32, #tpu.memory_space<vmem>>, %arg1: memref<36x16xf32, #tpu.memory_space<vmem>>, %arg2: memref<3x16xf32, #tpu.memory_space<vmem>>, %arg3: memref<144x32xf32, #tpu.memory_space<vmem>>, %arg4: memref<3x32xf32, #tpu.memory_space<vmem>>, %arg5: memref<288x64xbf16, #tpu.memory_space<any>>, %arg6: memref<3x64xf32, #tpu.memory_space<vmem>>, %arg7: memref<576x128xbf16, #tpu.memory_space<any>>, %arg8: memref<3x128xf32, #tpu.memory_space<vmem>>, %arg9: memref<1x128x11xf32, #tpu.memory_space<vmem>>, %arg10: memref<1x11xf32, #tpu.memory_space<vmem>>, %arg11: memref<2x128xf32, #tpu.memory_space<vmem>>, %arg12: memref<10x2x160xf32, #tpu.memory_space<vmem>>, %arg13: memref<6x2x192xf32, #tpu.memory_space<vmem>>, %arg14: memref<4x2x256xf32, #tpu.memory_space<vmem>>, %arg15: memref<288x64xbf16, #tpu.memory_space<vmem>>, %arg16: memref<576x128xbf16, #tpu.memory_space<vmem>>, %arg17: memref<2x!tpu.dma_semaphore, #tpu.memory_space<semaphore_mem>>) attributes {dimension_semantics = [], scalar_prefetch = 0 : i64, scratch_operands = 6 : i64, tpu.core_type = #tpu.core_type<tc>} {
    %c0_i32 = arith.constant 0 : i32
    %0 = tpu.memref_slice %arg17[%c0_i32] : memref<2x!tpu.dma_semaphore, #tpu.memory_space<semaphore_mem>> -> memref<1x!tpu.dma_semaphore, #tpu.memory_space<semaphore_mem>>
    %1 = tpu.memref_squeeze %0 : memref<1x!tpu.dma_semaphore, #tpu.memory_space<semaphore_mem>> -> memref<!tpu.dma_semaphore, #tpu.memory_space<semaphore_mem>>
    tpu.enqueue_dma source(%arg5 : memref<288x64xbf16, #tpu.memory_space<any>>) target(%arg15 : memref<288x64xbf16, #tpu.memory_space<vmem>>) target_semaphore(%1 : memref<!tpu.dma_semaphore, #tpu.memory_space<semaphore_mem>>)
    %c1_i32 = arith.constant 1 : i32
    %2 = tpu.memref_slice %arg17[%c1_i32] : memref<2x!tpu.dma_semaphore, #tpu.memory_space<semaphore_mem>> -> memref<1x!tpu.dma_semaphore, #tpu.memory_space<semaphore_mem>>
    %3 = tpu.memref_squeeze %2 : memref<1x!tpu.dma_semaphore, #tpu.memory_space<semaphore_mem>> -> memref<!tpu.dma_semaphore, #tpu.memory_space<semaphore_mem>>
    tpu.enqueue_dma source(%arg7 : memref<576x128xbf16, #tpu.memory_space<any>>) target(%arg16 : memref<576x128xbf16, #tpu.memory_space<vmem>>) target_semaphore(%3 : memref<!tpu.dma_semaphore, #tpu.memory_space<semaphore_mem>>)
    %cst = arith.constant 0.000000e+00 : f32
    %4 = vector.broadcast %cst : f32 to vector<10x2x160xf32>
    %c0 = arith.constant 0 : index
    %c0_0 = arith.constant 0 : index
    %c0_1 = arith.constant 0 : index
    %5 = vector.load %arg12[%c0, %c0_0, %c0_1] : memref<10x2x160xf32, #tpu.memory_space<vmem>>, vector<10x2x160xf32>
    tpu.vector_store %arg12[%c0, %c0_0, %c0_1], %4 {strides = array<i32>} : memref<10x2x160xf32, #tpu.memory_space<vmem>>, vector<10x2x160xf32>,
    %cst_2 = arith.constant 0.000000e+00 : f32
    %6 = vector.broadcast %cst_2 : f32 to vector<6x2x192xf32>
    %c0_3 = arith.constant 0 : index
    %c0_4 = arith.constant 0 : index
    %c0_5 = arith.constant 0 : index
    %7 = vector.load %arg13[%c0_3, %c0_4, %c0_5] : memref<6x2x192xf32, #tpu.memory_space<vmem>>, vector<6x2x192xf32>
    tpu.vector_store %arg13[%c0_3, %c0_4, %c0_5], %6 {strides = array<i32>} : memref<6x2x192xf32, #tpu.memory_space<vmem>>, vector<6x2x192xf32>,
    %cst_6 = arith.constant 0.000000e+00 : f32
    %8 = vector.broadcast %cst_6 : f32 to vector<4x2x256xf32>
    %c0_7 = arith.constant 0 : index
    %c0_8 = arith.constant 0 : index
    %c0_9 = arith.constant 0 : index
    %9 = vector.load %arg14[%c0_7, %c0_8, %c0_9] : memref<4x2x256xf32, #tpu.memory_space<vmem>>, vector<4x2x256xf32>
    tpu.vector_store %arg14[%c0_7, %c0_8, %c0_9], %8 {strides = array<i32>} : memref<4x2x256xf32, #tpu.memory_space<vmem>>, vector<4x2x256xf32>,
    %c0_10 = arith.constant 0 : index
    %c0_11 = arith.constant 0 : index
    %10 = vector.load %arg0[%c0_10, %c0_11] : memref<128x36xf32, #tpu.memory_space<vmem>>, vector<128x36xf32>
    %c0_12 = arith.constant 0 : index
    %c0_13 = arith.constant 0 : index
    %11 = vector.load %arg1[%c0_12, %c0_13] : memref<36x16xf32, #tpu.memory_space<vmem>>, vector<36x16xf32>
    %cst_14 = arith.constant dense<0.000000e+00> : vector<128x16xf32>
    %12 = tpu.matmul %10, %11, %cst_14 {dimension_numbers = #tpu.dot_dimension_numbers<[1], [0], [0], [1], [0, 0, 1, 1], [], []>} : vector<128x36xf32>, vector<36x16xf32>, vector<128x16xf32> -> vector<128x16xf32>
    %c0_15 = arith.constant 0 : index
    %c0_16 = arith.constant 0 : index
    %13 = vector.load %arg2[%c0_15, %c0_16] : memref<3x16xf32, #tpu.memory_space<vmem>>, vector<1x16xf32>
    %14 = vector.broadcast %13 : vector<1x16xf32> to vector<128x16xf32>
    %15 = arith.addf %12, %14 : vector<128x16xf32>
    %cst_17 = arith.constant 2.000000e-01 : f32
    %16 = vector.broadcast %cst_17 : f32 to vector<128x16xf32>
    %17 = arith.mulf %16, %15 : vector<128x16xf32>
    %18 = arith.maximumf %15, %17 : vector<128x16xf32>
    %c1 = arith.constant 1 : index
    %c0_18 = arith.constant 0 : index
    %19 = vector.load %arg2[%c1, %c0_18] : memref<3x16xf32, #tpu.memory_space<vmem>>, vector<1x16xf32>
    %20 = vector.broadcast %19 : vector<1x16xf32> to vector<128x16xf32>
    %21 = arith.mulf %18, %20 : vector<128x16xf32>
    %c2 = arith.constant 2 : index
    %c0_19 = arith.constant 0 : index
    %22 = vector.load %arg2[%c2, %c0_19] : memref<3x16xf32, #tpu.memory_space<vmem>>, vector<1x16xf32>
    %23 = vector.broadcast %22 : vector<1x16xf32> to vector<128x16xf32>
    %24 = arith.addf %21, %23 : vector<128x16xf32>
    %25 = vector.extract_strided_slice %24 {offsets = [0, 0], sizes = [2, 16], strides = [1, 1]} : vector<128x16xf32> to vector<2x16xf32>
    %c1_20 = arith.constant 1 : index
    %c0_21 = arith.constant 0 : index
    %c16 = arith.constant 16 : index
    %26 = vector.load %arg12[%c1_20, %c0_21, %c16] : memref<10x2x160xf32, #tpu.memory_space<vmem>>, vector<1x2x16xf32>
    %27 = vector.shape_cast %26 : vector<1x2x16xf32> to vector<2x16xf32>
    %28 = vector.shape_cast %25 : vector<2x16xf32> to vector<1x2x16xf32>
    tpu.vector_store %arg12[%c1_20, %c0_21, %c16], %28 {strides = array<i32>} : memref<10x2x160xf32, #tpu.memory_space<vmem>>, vector<1x2x16xf32>,
    %29 = vector.extract_strided_slice %24 {offsets = [2, 0], sizes = [2, 16], strides = [1, 1]} : vector<128x16xf32> to vector<2x16xf32>
    %c1_22 = arith.constant 1 : index
    %c0_23 = arith.constant 0 : index
    %c32 = arith.constant 32 : index
    %30 = vector.load %arg12[%c1_22, %c0_23, %c32] : memref<10x2x160xf32, #tpu.memory_space<vmem>>, vector<1x2x16xf32>
    %31 = vector.shape_cast %30 : vector<1x2x16xf32> to vector<2x16xf32>
    %32 = vector.shape_cast %29 : vector<2x16xf32> to vector<1x2x16xf32>
    tpu.vector_store %arg12[%c1_22, %c0_23, %c32], %32 {strides = array<i32>} : memref<10x2x160xf32, #tpu.memory_space<vmem>>, vector<1x2x16xf32>,
    %33 = vector.extract_strided_slice %24 {offsets = [4, 0], sizes = [2, 16], strides = [1, 1]} : vector<128x16xf32> to vector<2x16xf32>
    %c1_24 = arith.constant 1 : index
    %c0_25 = arith.constant 0 : index
    %c48 = arith.constant 48 : index
    %34 = vector.load %arg12[%c1_24, %c0_25, %c48] : memref<10x2x160xf32, #tpu.memory_space<vmem>>, vector<1x2x16xf32>
    %35 = vector.shape_cast %34 : vector<1x2x16xf32> to vector<2x16xf32>
    %36 = vector.shape_cast %33 : vector<2x16xf32> to vector<1x2x16xf32>
    tpu.vector_store %arg12[%c1_24, %c0_25, %c48], %36 {strides = array<i32>} : memref<10x2x160xf32, #tpu.memory_space<vmem>>, vector<1x2x16xf32>,
    %37 = vector.extract_strided_slice %24 {offsets = [6, 0], sizes = [2, 16], strides = [1, 1]} : vector<128x16xf32> to vector<2x16xf32>
    %c1_26 = arith.constant 1 : index
    %c0_27 = arith.constant 0 : index
    %c64 = arith.constant 64 : index
    %38 = vector.load %arg12[%c1_26, %c0_27, %c64] : memref<10x2x160xf32, #tpu.memory_space<vmem>>, vector<1x2x16xf32>
    %39 = vector.shape_cast %38 : vector<1x2x16xf32> to vector<2x16xf32>
    %40 = vector.shape_cast %37 : vector<2x16xf32> to vector<1x2x16xf32>
    tpu.vector_store %arg12[%c1_26, %c0_27, %c64], %40 {strides = array<i32>} : memref<10x2x160xf32, #tpu.memory_space<vmem>>, vector<1x2x16xf32>,
    %41 = vector.extract_strided_slice %24 {offsets = [8, 0], sizes = [2, 16], strides = [1, 1]} : vector<128x16xf32> to vector<2x16xf32>
    %c1_28 = arith.constant 1 : index
    %c0_29 = arith.constant 0 : index
    %c80 = arith.constant 80 : index
    %42 = vector.load %arg12[%c1_28, %c0_29, %c80] : memref<10x2x160xf32, #tpu.memory_space<vmem>>, vector<1x2x16xf32>
    %43 = vector.shape_cast %42 : vector<1x2x16xf32> to vector<2x16xf32>
    %44 = vector.shape_cast %41 : vector<2x16xf32> to vector<1x2x16xf32>
    tpu.vector_store %arg12[%c1_28, %c0_29, %c80], %44 {strides = array<i32>} : memref<10x2x160xf32, #tpu.memory_space<vmem>>, vector<1x2x16xf32>,
    %45 = vector.extract_strided_slice %24 {offsets = [10, 0], sizes = [2, 16], strides = [1, 1]} : vector<128x16xf32> to vector<2x16xf32>
    %c1_30 = arith.constant 1 : index
    %c0_31 = arith.constant 0 : index
    %c96 = arith.constant 96 : index
    %46 = vector.load %arg12[%c1_30, %c0_31, %c96] : memref<10x2x160xf32, #tpu.memory_space<vmem>>, vector<1x2x16xf32>
    %47 = vector.shape_cast %46 : vector<1x2x16xf32> to vector<2x16xf32>
    %48 = vector.shape_cast %45 : vector<2x16xf32> to vector<1x2x16xf32>
    tpu.vector_store %arg12[%c1_30, %c0_31, %c96], %48 {strides = array<i32>} : memref<10x2x160xf32, #tpu.memory_space<vmem>>, vector<1x2x16xf32>,
    %49 = vector.extract_strided_slice %24 {offsets = [12, 0], sizes = [2, 16], strides = [1, 1]} : vector<128x16xf32> to vector<2x16xf32>
    %c1_32 = arith.constant 1 : index
    %c0_33 = arith.constant 0 : index
    %c112 = arith.constant 112 : index
    %50 = vector.load %arg12[%c1_32, %c0_33, %c112] : memref<10x2x160xf32, #tpu.memory_space<vmem>>, vector<1x2x16xf32>
    %51 = vector.shape_cast %50 : vector<1x2x16xf32> to vector<2x16xf32>
    %52 = vector.shape_cast %49 : vector<2x16xf32> to vector<1x2x16xf32>
    tpu.vector_store %arg12[%c1_32, %c0_33, %c112], %52 {strides = array<i32>} : memref<10x2x160xf32, #tpu.memory_space<vmem>>, vector<1x2x16xf32>,
    %53 = vector.extract_strided_slice %24 {offsets = [14, 0], sizes = [2, 16], strides = [1, 1]} : vector<128x16xf32> to vector<2x16xf32>
    %c1_34 = arith.constant 1 : index
    %c0_35 = arith.constant 0 : index
    %c128 = arith.constant 128 : index
    %54 = vector.load %arg12[%c1_34, %c0_35, %c128] : memref<10x2x160xf32, #tpu.memory_space<vmem>>, vector<1x2x16xf32>
    %55 = vector.shape_cast %54 : vector<1x2x16xf32> to vector<2x16xf32>
    %56 = vector.shape_cast %53 : vector<2x16xf32> to vector<1x2x16xf32>
    tpu.vector_store %arg12[%c1_34, %c0_35, %c128], %56 {strides = array<i32>} : memref<10x2x160xf32, #tpu.memory_space<vmem>>, vector<1x2x16xf32>,
    %57 = vector.extract_strided_slice %24 {offsets = [16, 0], sizes = [2, 16], strides = [1, 1]} : vector<128x16xf32> to vector<2x16xf32>
    %c2_36 = arith.constant 2 : index
    %c0_37 = arith.constant 0 : index
    %c16_38 = arith.constant 16 : index
    %58 = vector.load %arg12[%c2_36, %c0_37, %c16_38] : memref<10x2x160xf32, #tpu.memory_space<vmem>>, vector<1x2x16xf32>
    %59 = vector.shape_cast %58 : vector<1x2x16xf32> to vector<2x16xf32>
    %60 = vector.shape_cast %57 : vector<2x16xf32> to vector<1x2x16xf32>
    tpu.vector_store %arg12[%c2_36, %c0_37, %c16_38], %60 {strides = array<i32>} : memref<10x2x160xf32, #tpu.memory_space<vmem>>, vector<1x2x16xf32>,
    %61 = vector.extract_strided_slice %24 {offsets = [18, 0], sizes = [2, 16], strides = [1, 1]} : vector<128x16xf32> to vector<2x16xf32>
    %c2_39 = arith.constant 2 : index
    %c0_40 = arith.constant 0 : index
    %c32_41 = arith.constant 32 : index
    %62 = vector.load %arg12[%c2_39, %c0_40, %c32_41] : memref<10x2x160xf32, #tpu.memory_space<vmem>>, vector<1x2x16xf32>
    %63 = vector.shape_cast %62 : vector<1x2x16xf32> to vector<2x16xf32>
    %64 = vector.shape_cast %61 : vector<2x16xf32> to vector<1x2x16xf32>
    tpu.vector_store %arg12[%c2_39, %c0_40, %c32_41], %64 {strides = array<i32>} : memref<10x2x160xf32, #tpu.memory_space<vmem>>, vector<1x2x16xf32>,
    %65 = vector.extract_strided_slice %24 {offsets = [20, 0], sizes = [2, 16], strides = [1, 1]} : vector<128x16xf32> to vector<2x16xf32>
    %c2_42 = arith.constant 2 : index
    %c0_43 = arith.constant 0 : index
    %c48_44 = arith.constant 48 : index
    %66 = vector.load %arg12[%c2_42, %c0_43, %c48_44] : memref<10x2x160xf32, #tpu.memory_space<vmem>>, vector<1x2x16xf32>
    %67 = vector.shape_cast %66 : vector<1x2x16xf32> to vector<2x16xf32>
    %68 = vector.shape_cast %65 : vector<2x16xf32> to vector<1x2x16xf32>
    tpu.vector_store %arg12[%c2_42, %c0_43, %c48_44], %68 {strides = array<i32>} : memref<10x2x160xf32, #tpu.memory_space<vmem>>, vector<1x2x16xf32>,
    %69 = vector.extract_strided_slice %24 {offsets = [22, 0], sizes = [2, 16], strides = [1, 1]} : vector<128x16xf32> to vector<2x16xf32>
    %c2_45 = arith.constant 2 : index
    %c0_46 = arith.constant 0 : index
    %c64_47 = arith.constant 64 : index
    %70 = vector.load %arg12[%c2_45, %c0_46, %c64_47] : memref<10x2x160xf32, #tpu.memory_space<vmem>>, vector<1x2x16xf32>
    %71 = vector.shape_cast %70 : vector<1x2x16xf32> to vector<2x16xf32>
    %72 = vector.shape_cast %69 : vector<2x16xf32> to vector<1x2x16xf32>
    tpu.vector_store %arg12[%c2_45, %c0_46, %c64_47], %72 {strides = array<i32>} : memref<10x2x160xf32, #tpu.memory_space<vmem>>, vector<1x2x16xf32>,
    %73 = vector.extract_strided_slice %24 {offsets = [24, 0], sizes = [2, 16], strides = [1, 1]} : vector<128x16xf32> to vector<2x16xf32>
    %c2_48 = arith.constant 2 : index
    %c0_49 = arith.constant 0 : index
    %c80_50 = arith.constant 80 : index
    %74 = vector.load %arg12[%c2_48, %c0_49, %c80_50] : memref<10x2x160xf32, #tpu.memory_space<vmem>>, vector<1x2x16xf32>
    %75 = vector.shape_cast %74 : vector<1x2x16xf32> to vector<2x16xf32>
    %76 = vector.shape_cast %73 : vector<2x16xf32> to vector<1x2x16xf32>
    tpu.vector_store %arg12[%c2_48, %c0_49, %c80_50], %76 {strides = array<i32>} : memref<10x2x160xf32, #tpu.memory_space<vmem>>, vector<1x2x16xf32>,
    %77 = vector.extract_strided_slice %24 {offsets = [26, 0], sizes = [2, 16], strides = [1, 1]} : vector<128x16xf32> to vector<2x16xf32>
    %c2_51 = arith.constant 2 : index
    %c0_52 = arith.constant 0 : index
    %c96_53 = arith.constant 96 : index
    %78 = vector.load %arg12[%c2_51, %c0_52, %c96_53] : memref<10x2x160xf32, #tpu.memory_space<vmem>>, vector<1x2x16xf32>
    %79 = vector.shape_cast %78 : vector<1x2x16xf32> to vector<2x16xf32>
    %80 = vector.shape_cast %77 : vector<2x16xf32> to vector<1x2x16xf32>
    tpu.vector_store %arg12[%c2_51, %c0_52, %c96_53], %80 {strides = array<i32>} : memref<10x2x160xf32, #tpu.memory_space<vmem>>, vector<1x2x16xf32>,
    %81 = vector.extract_strided_slice %24 {offsets = [28, 0], sizes = [2, 16], strides = [1, 1]} : vector<128x16xf32> to vector<2x16xf32>
    %c2_54 = arith.constant 2 : index
    %c0_55 = arith.constant 0 : index
    %c112_56 = arith.constant 112 : index
    %82 = vector.load %arg12[%c2_54, %c0_55, %c112_56] : memref<10x2x160xf32, #tpu.memory_space<vmem>>, vector<1x2x16xf32>
    %83 = vector.shape_cast %82 : vector<1x2x16xf32> to vector<2x16xf32>
    %84 = vector.shape_cast %81 : vector<2x16xf32> to vector<1x2x16xf32>
    tpu.vector_store %arg12[%c2_54, %c0_55, %c112_56], %84 {strides = array<i32>} : memref<10x2x160xf32, #tpu.memory_space<vmem>>, vector<1x2x16xf32>,
    %85 = vector.extract_strided_slice %24 {offsets = [30, 0], sizes = [2, 16], strides = [1, 1]} : vector<128x16xf32> to vector<2x16xf32>
    %c2_57 = arith.constant 2 : index
    %c0_58 = arith.constant 0 : index
    %c128_59 = arith.constant 128 : index
    %86 = vector.load %arg12[%c2_57, %c0_58, %c128_59] : memref<10x2x160xf32, #tpu.memory_space<vmem>>, vector<1x2x16xf32>
    %87 = vector.shape_cast %86 : vector<1x2x16xf32> to vector<2x16xf32>
    %88 = vector.shape_cast %85 : vector<2x16xf32> to vector<1x2x16xf32>
    tpu.vector_store %arg12[%c2_57, %c0_58, %c128_59], %88 {strides = array<i32>} : memref<10x2x160xf32, #tpu.memory_space<vmem>>, vector<1x2x16xf32>,
    %89 = vector.extract_strided_slice %24 {offsets = [32, 0], sizes = [2, 16], strides = [1, 1]} : vector<128x16xf32> to vector<2x16xf32>
    %c3 = arith.constant 3 : index
    %c0_60 = arith.constant 0 : index
    %c16_61 = arith.constant 16 : index
    %90 = vector.load %arg12[%c3, %c0_60, %c16_61] : memref<10x2x160xf32, #tpu.memory_space<vmem>>, vector<1x2x16xf32>
    %91 = vector.shape_cast %90 : vector<1x2x16xf32> to vector<2x16xf32>
    %92 = vector.shape_cast %89 : vector<2x16xf32> to vector<1x2x16xf32>
    tpu.vector_store %arg12[%c3, %c0_60, %c16_61], %92 {strides = array<i32>} : memref<10x2x160xf32, #tpu.memory_space<vmem>>, vector<1x2x16xf32>,
    %93 = vector.extract_strided_slice %24 {offsets = [34, 0], sizes = [2, 16], strides = [1, 1]} : vector<128x16xf32> to vector<2x16xf32>
    %c3_62 = arith.constant 3 : index
    %c0_63 = arith.constant 0 : index
    %c32_64 = arith.constant 32 : index
    %94 = vector.load %arg12[%c3_62, %c0_63, %c32_64] : memref<10x2x160xf32, #tpu.memory_space<vmem>>, vector<1x2x16xf32>
    %95 = vector.shape_cast %94 : vector<1x2x16xf32> to vector<2x16xf32>
    %96 = vector.shape_cast %93 : vector<2x16xf32> to vector<1x2x16xf32>
    tpu.vector_store %arg12[%c3_62, %c0_63, %c32_64], %96 {strides = array<i32>} : memref<10x2x160xf32, #tpu.memory_space<vmem>>, vector<1x2x16xf32>,
    %97 = vector.extract_strided_slice %24 {offsets = [36, 0], sizes = [2, 16], strides = [1, 1]} : vector<128x16xf32> to vector<2x16xf32>
    %c3_65 = arith.constant 3 : index
    %c0_66 = arith.constant 0 : index
    %c48_67 = arith.constant 48 : index
    %98 = vector.load %arg12[%c3_65, %c0_66, %c48_67] : memref<10x2x160xf32, #tpu.memory_space<vmem>>, vector<1x2x16xf32>
    %99 = vector.shape_cast %98 : vector<1x2x16xf32> to vector<2x16xf32>
    %100 = vector.shape_cast %97 : vector<2x16xf32> to vector<1x2x16xf32>
    tpu.vector_store %arg12[%c3_65, %c0_66, %c48_67], %100 {strides = array<i32>} : memref<10x2x160xf32, #tpu.memory_space<vmem>>, vector<1x2x16xf32>,
    %101 = vector.extract_strided_slice %24 {offsets = [38, 0], sizes = [2, 16], strides = [1, 1]} : vector<128x16xf32> to vector<2x16xf32>
    %c3_68 = arith.constant 3 : index
    %c0_69 = arith.constant 0 : index
    %c64_70 = arith.constant 64 : index
    %102 = vector.load %arg12[%c3_68, %c0_69, %c64_70] : memref<10x2x160xf32, #tpu.memory_space<vmem>>, vector<1x2x16xf32>
    %103 = vector.shape_cast %102 : vector<1x2x16xf32> to vector<2x16xf32>
    %104 = vector.shape_cast %101 : vector<2x16xf32> to vector<1x2x16xf32>
    tpu.vector_store %arg12[%c3_68, %c0_69, %c64_70], %104 {strides = array<i32>} : memref<10x2x160xf32, #tpu.memory_space<vmem>>, vector<1x2x16xf32>,
    %105 = vector.extract_strided_slice %24 {offsets = [40, 0], sizes = [2, 16], strides = [1, 1]} : vector<128x16xf32> to vector<2x16xf32>
    %c3_71 = arith.constant 3 : index
    %c0_72 = arith.constant 0 : index
    %c80_73 = arith.constant 80 : index
    %106 = vector.load %arg12[%c3_71, %c0_72, %c80_73] : memref<10x2x160xf32, #tpu.memory_space<vmem>>, vector<1x2x16xf32>
    %107 = vector.shape_cast %106 : vector<1x2x16xf32> to vector<2x16xf32>
    %108 = vector.shape_cast %105 : vector<2x16xf32> to vector<1x2x16xf32>
    tpu.vector_store %arg12[%c3_71, %c0_72, %c80_73], %108 {strides = array<i32>} : memref<10x2x160xf32, #tpu.memory_space<vmem>>, vector<1x2x16xf32>,
    %109 = vector.extract_strided_slice %24 {offsets = [42, 0], sizes = [2, 16], strides = [1, 1]} : vector<128x16xf32> to vector<2x16xf32>
    %c3_74 = arith.constant 3 : index
    %c0_75 = arith.constant 0 : index
    %c96_76 = arith.constant 96 : index
    %110 = vector.load %arg12[%c3_74, %c0_75, %c96_76] : memref<10x2x160xf32, #tpu.memory_space<vmem>>, vector<1x2x16xf32>
    %111 = vector.shape_cast %110 : vector<1x2x16xf32> to vector<2x16xf32>
    %112 = vector.shape_cast %109 : vector<2x16xf32> to vector<1x2x16xf32>
    tpu.vector_store %arg12[%c3_74, %c0_75, %c96_76], %112 {strides = array<i32>} : memref<10x2x160xf32, #tpu.memory_space<vmem>>, vector<1x2x16xf32>,
    %113 = vector.extract_strided_slice %24 {offsets = [44, 0], sizes = [2, 16], strides = [1, 1]} : vector<128x16xf32> to vector<2x16xf32>
    %c3_77 = arith.constant 3 : index
    %c0_78 = arith.constant 0 : index
    %c112_79 = arith.constant 112 : index
    %114 = vector.load %arg12[%c3_77, %c0_78, %c112_79] : memref<10x2x160xf32, #tpu.memory_space<vmem>>, vector<1x2x16xf32>
    %115 = vector.shape_cast %114 : vector<1x2x16xf32> to vector<2x16xf32>
    %116 = vector.shape_cast %113 : vector<2x16xf32> to vector<1x2x16xf32>
    tpu.vector_store %arg12[%c3_77, %c0_78, %c112_79], %116 {strides = array<i32>} : memref<10x2x160xf32, #tpu.memory_space<vmem>>, vector<1x2x16xf32>,
    %117 = vector.extract_strided_slice %24 {offsets = [46, 0], sizes = [2, 16], strides = [1, 1]} : vector<128x16xf32> to vector<2x16xf32>
    %c3_80 = arith.constant 3 : index
    %c0_81 = arith.constant 0 : index
    %c128_82 = arith.constant 128 : index
    %118 = vector.load %arg12[%c3_80, %c0_81, %c128_82] : memref<10x2x160xf32, #tpu.memory_space<vmem>>, vector<1x2x16xf32>
    %119 = vector.shape_cast %118 : vector<1x2x16xf32> to vector<2x16xf32>
    %120 = vector.shape_cast %117 : vector<2x16xf32> to vector<1x2x16xf32>
    tpu.vector_store %arg12[%c3_80, %c0_81, %c128_82], %120 {strides = array<i32>} : memref<10x2x160xf32, #tpu.memory_space<vmem>>, vector<1x2x16xf32>,
    %121 = vector.extract_strided_slice %24 {offsets = [48, 0], sizes = [2, 16], strides = [1, 1]} : vector<128x16xf32> to vector<2x16xf32>
    %c4 = arith.constant 4 : index
    %c0_83 = arith.constant 0 : index
    %c16_84 = arith.constant 16 : index
    %122 = vector.load %arg12[%c4, %c0_83, %c16_84] : memref<10x2x160xf32, #tpu.memory_space<vmem>>, vector<1x2x16xf32>
    %123 = vector.shape_cast %122 : vector<1x2x16xf32> to vector<2x16xf32>
    %124 = vector.shape_cast %121 : vector<2x16xf32> to vector<1x2x16xf32>
    tpu.vector_store %arg12[%c4, %c0_83, %c16_84], %124 {strides = array<i32>} : memref<10x2x160xf32, #tpu.memory_space<vmem>>, vector<1x2x16xf32>,
    %125 = vector.extract_strided_slice %24 {offsets = [50, 0], sizes = [2, 16], strides = [1, 1]} : vector<128x16xf32> to vector<2x16xf32>
    %c4_85 = arith.constant 4 : index
    %c0_86 = arith.constant 0 : index
    %c32_87 = arith.constant 32 : index
    %126 = vector.load %arg12[%c4_85, %c0_86, %c32_87] : memref<10x2x160xf32, #tpu.memory_space<vmem>>, vector<1x2x16xf32>
    %127 = vector.shape_cast %126 : vector<1x2x16xf32> to vector<2x16xf32>
    %128 = vector.shape_cast %125 : vector<2x16xf32> to vector<1x2x16xf32>
    tpu.vector_store %arg12[%c4_85, %c0_86, %c32_87], %128 {strides = array<i32>} : memref<10x2x160xf32, #tpu.memory_space<vmem>>, vector<1x2x16xf32>,
    %129 = vector.extract_strided_slice %24 {offsets = [52, 0], sizes = [2, 16], strides = [1, 1]} : vector<128x16xf32> to vector<2x16xf32>
    %c4_88 = arith.constant 4 : index
    %c0_89 = arith.constant 0 : index
    %c48_90 = arith.constant 48 : index
    %130 = vector.load %arg12[%c4_88, %c0_89, %c48_90] : memref<10x2x160xf32, #tpu.memory_space<vmem>>, vector<1x2x16xf32>
    %131 = vector.shape_cast %130 : vector<1x2x16xf32> to vector<2x16xf32>
    %132 = vector.shape_cast %129 : vector<2x16xf32> to vector<1x2x16xf32>
    tpu.vector_store %arg12[%c4_88, %c0_89, %c48_90], %132 {strides = array<i32>} : memref<10x2x160xf32, #tpu.memory_space<vmem>>, vector<1x2x16xf32>,
    %133 = vector.extract_strided_slice %24 {offsets = [54, 0], sizes = [2, 16], strides = [1, 1]} : vector<128x16xf32> to vector<2x16xf32>
    %c4_91 = arith.constant 4 : index
    %c0_92 = arith.constant 0 : index
    %c64_93 = arith.constant 64 : index
    %134 = vector.load %arg12[%c4_91, %c0_92, %c64_93] : memref<10x2x160xf32, #tpu.memory_space<vmem>>, vector<1x2x16xf32>
    %135 = vector.shape_cast %134 : vector<1x2x16xf32> to vector<2x16xf32>
    %136 = vector.shape_cast %133 : vector<2x16xf32> to vector<1x2x16xf32>
    tpu.vector_store %arg12[%c4_91, %c0_92, %c64_93], %136 {strides = array<i32>} : memref<10x2x160xf32, #tpu.memory_space<vmem>>, vector<1x2x16xf32>,
    %137 = vector.extract_strided_slice %24 {offsets = [56, 0], sizes = [2, 16], strides = [1, 1]} : vector<128x16xf32> to vector<2x16xf32>
    %c4_94 = arith.constant 4 : index
    %c0_95 = arith.constant 0 : index
    %c80_96 = arith.constant 80 : index
    %138 = vector.load %arg12[%c4_94, %c0_95, %c80_96] : memref<10x2x160xf32, #tpu.memory_space<vmem>>, vector<1x2x16xf32>
    %139 = vector.shape_cast %138 : vector<1x2x16xf32> to vector<2x16xf32>
    %140 = vector.shape_cast %137 : vector<2x16xf32> to vector<1x2x16xf32>
    tpu.vector_store %arg12[%c4_94, %c0_95, %c80_96], %140 {strides = array<i32>} : memref<10x2x160xf32, #tpu.memory_space<vmem>>, vector<1x2x16xf32>,
    %141 = vector.extract_strided_slice %24 {offsets = [58, 0], sizes = [2, 16], strides = [1, 1]} : vector<128x16xf32> to vector<2x16xf32>
    %c4_97 = arith.constant 4 : index
    %c0_98 = arith.constant 0 : index
    %c96_99 = arith.constant 96 : index
    %142 = vector.load %arg12[%c4_97, %c0_98, %c96_99] : memref<10x2x160xf32, #tpu.memory_space<vmem>>, vector<1x2x16xf32>
    %143 = vector.shape_cast %142 : vector<1x2x16xf32> to vector<2x16xf32>
    %144 = vector.shape_cast %141 : vector<2x16xf32> to vector<1x2x16xf32>
    tpu.vector_store %arg12[%c4_97, %c0_98, %c96_99], %144 {strides = array<i32>} : memref<10x2x160xf32, #tpu.memory_space<vmem>>, vector<1x2x16xf32>,
    %145 = vector.extract_strided_slice %24 {offsets = [60, 0], sizes = [2, 16], strides = [1, 1]} : vector<128x16xf32> to vector<2x16xf32>
    %c4_100 = arith.constant 4 : index
    %c0_101 = arith.constant 0 : index
    %c112_102 = arith.constant 112 : index
    %146 = vector.load %arg12[%c4_100, %c0_101, %c112_102] : memref<10x2x160xf32, #tpu.memory_space<vmem>>, vector<1x2x16xf32>
    %147 = vector.shape_cast %146 : vector<1x2x16xf32> to vector<2x16xf32>
    %148 = vector.shape_cast %145 : vector<2x16xf32> to vector<1x2x16xf32>
    tpu.vector_store %arg12[%c4_100, %c0_101, %c112_102], %148 {strides = array<i32>} : memref<10x2x160xf32, #tpu.memory_space<vmem>>, vector<1x2x16xf32>,
    %149 = vector.extract_strided_slice %24 {offsets = [62, 0], sizes = [2, 16], strides = [1, 1]} : vector<128x16xf32> to vector<2x16xf32>
    %c4_103 = arith.constant 4 : index
    %c0_104 = arith.constant 0 : index
    %c128_105 = arith.constant 128 : index
    %150 = vector.load %arg12[%c4_103, %c0_104, %c128_105] : memref<10x2x160xf32, #tpu.memory_space<vmem>>, vector<1x2x16xf32>
    %151 = vector.shape_cast %150 : vector<1x2x16xf32> to vector<2x16xf32>
    %152 = vector.shape_cast %149 : vector<2x16xf32> to vector<1x2x16xf32>
    tpu.vector_store %arg12[%c4_103, %c0_104, %c128_105], %152 {strides = array<i32>} : memref<10x2x160xf32, #tpu.memory_space<vmem>>, vector<1x2x16xf32>,
    %153 = vector.extract_strided_slice %24 {offsets = [64, 0], sizes = [2, 16], strides = [1, 1]} : vector<128x16xf32> to vector<2x16xf32>
    %c5 = arith.constant 5 : index
    %c0_106 = arith.constant 0 : index
    %c16_107 = arith.constant 16 : index
    %154 = vector.load %arg12[%c5, %c0_106, %c16_107] : memref<10x2x160xf32, #tpu.memory_space<vmem>>, vector<1x2x16xf32>
    %155 = vector.shape_cast %154 : vector<1x2x16xf32> to vector<2x16xf32>
    %156 = vector.shape_cast %153 : vector<2x16xf32> to vector<1x2x16xf32>
    tpu.vector_store %arg12[%c5, %c0_106, %c16_107], %156 {strides = array<i32>} : memref<10x2x160xf32, #tpu.memory_space<vmem>>, vector<1x2x16xf32>,
    %157 = vector.extract_strided_slice %24 {offsets = [66, 0], sizes = [2, 16], strides = [1, 1]} : vector<128x16xf32> to vector<2x16xf32>
    %c5_108 = arith.constant 5 : index
    %c0_109 = arith.constant 0 : index
    %c32_110 = arith.constant 32 : index
    %158 = vector.load %arg12[%c5_108, %c0_109, %c32_110] : memref<10x2x160xf32, #tpu.memory_space<vmem>>, vector<1x2x16xf32>
    %159 = vector.shape_cast %158 : vector<1x2x16xf32> to vector<2x16xf32>
    %160 = vector.shape_cast %157 : vector<2x16xf32> to vector<1x2x16xf32>
    tpu.vector_store %arg12[%c5_108, %c0_109, %c32_110], %160 {strides = array<i32>} : memref<10x2x160xf32, #tpu.memory_space<vmem>>, vector<1x2x16xf32>,
    %161 = vector.extract_strided_slice %24 {offsets = [68, 0], sizes = [2, 16], strides = [1, 1]} : vector<128x16xf32> to vector<2x16xf32>
    %c5_111 = arith.constant 5 : index
    %c0_112 = arith.constant 0 : index
    %c48_113 = arith.constant 48 : index
    %162 = vector.load %arg12[%c5_111, %c0_112, %c48_113] : memref<10x2x160xf32, #tpu.memory_space<vmem>>, vector<1x2x16xf32>
    %163 = vector.shape_cast %162 : vector<1x2x16xf32> to vector<2x16xf32>
    %164 = vector.shape_cast %161 : vector<2x16xf32> to vector<1x2x16xf32>
    tpu.vector_store %arg12[%c5_111, %c0_112, %c48_113], %164 {strides = array<i32>} : memref<10x2x160xf32, #tpu.memory_space<vmem>>, vector<1x2x16xf32>,
    %165 = vector.extract_strided_slice %24 {offsets = [70, 0], sizes = [2, 16], strides = [1, 1]} : vector<128x16xf32> to vector<2x16xf32>
    %c5_114 = arith.constant 5 : index
    %c0_115 = arith.constant 0 : index
    %c64_116 = arith.constant 64 : index
    %166 = vector.load %arg12[%c5_114, %c0_115, %c64_116] : memref<10x2x160xf32, #tpu.memory_space<vmem>>, vector<1x2x16xf32>
    %167 = vector.shape_cast %166 : vector<1x2x16xf32> to vector<2x16xf32>
    %168 = vector.shape_cast %165 : vector<2x16xf32> to vector<1x2x16xf32>
    tpu.vector_store %arg12[%c5_114, %c0_115, %c64_116], %168 {strides = array<i32>} : memref<10x2x160xf32, #tpu.memory_space<vmem>>, vector<1x2x16xf32>,
    %169 = vector.extract_strided_slice %24 {offsets = [72, 0], sizes = [2, 16], strides = [1, 1]} : vector<128x16xf32> to vector<2x16xf32>
    %c5_117 = arith.constant 5 : index
    %c0_118 = arith.constant 0 : index
    %c80_119 = arith.constant 80 : index
    %170 = vector.load %arg12[%c5_117, %c0_118, %c80_119] : memref<10x2x160xf32, #tpu.memory_space<vmem>>, vector<1x2x16xf32>
    %171 = vector.shape_cast %170 : vector<1x2x16xf32> to vector<2x16xf32>
    %172 = vector.shape_cast %169 : vector<2x16xf32> to vector<1x2x16xf32>
    tpu.vector_store %arg12[%c5_117, %c0_118, %c80_119], %172 {strides = array<i32>} : memref<10x2x160xf32, #tpu.memory_space<vmem>>, vector<1x2x16xf32>,
    %173 = vector.extract_strided_slice %24 {offsets = [74, 0], sizes = [2, 16], strides = [1, 1]} : vector<128x16xf32> to vector<2x16xf32>
    %c5_120 = arith.constant 5 : index
    %c0_121 = arith.constant 0 : index
    %c96_122 = arith.constant 96 : index
    %174 = vector.load %arg12[%c5_120, %c0_121, %c96_122] : memref<10x2x160xf32, #tpu.memory_space<vmem>>, vector<1x2x16xf32>
    %175 = vector.shape_cast %174 : vector<1x2x16xf32> to vector<2x16xf32>
    %176 = vector.shape_cast %173 : vector<2x16xf32> to vector<1x2x16xf32>
    tpu.vector_store %arg12[%c5_120, %c0_121, %c96_122], %176 {strides = array<i32>} : memref<10x2x160xf32, #tpu.memory_space<vmem>>, vector<1x2x16xf32>,
    %177 = vector.extract_strided_slice %24 {offsets = [76, 0], sizes = [2, 16], strides = [1, 1]} : vector<128x16xf32> to vector<2x16xf32>
    %c5_123 = arith.constant 5 : index
    %c0_124 = arith.constant 0 : index
    %c112_125 = arith.constant 112 : index
    %178 = vector.load %arg12[%c5_123, %c0_124, %c112_125] : memref<10x2x160xf32, #tpu.memory_space<vmem>>, vector<1x2x16xf32>
    %179 = vector.shape_cast %178 : vector<1x2x16xf32> to vector<2x16xf32>
    %180 = vector.shape_cast %177 : vector<2x16xf32> to vector<1x2x16xf32>
    tpu.vector_store %arg12[%c5_123, %c0_124, %c112_125], %180 {strides = array<i32>} : memref<10x2x160xf32, #tpu.memory_space<vmem>>, vector<1x2x16xf32>,
    %181 = vector.extract_strided_slice %24 {offsets = [78, 0], sizes = [2, 16], strides = [1, 1]} : vector<128x16xf32> to vector<2x16xf32>
    %c5_126 = arith.constant 5 : index
    %c0_127 = arith.constant 0 : index
    %c128_128 = arith.constant 128 : index
    %182 = vector.load %arg12[%c5_126, %c0_127, %c128_128] : memref<10x2x160xf32, #tpu.memory_space<vmem>>, vector<1x2x16xf32>
    %183 = vector.shape_cast %182 : vector<1x2x16xf32> to vector<2x16xf32>
    %184 = vector.shape_cast %181 : vector<2x16xf32> to vector<1x2x16xf32>
    tpu.vector_store %arg12[%c5_126, %c0_127, %c128_128], %184 {strides = array<i32>} : memref<10x2x160xf32, #tpu.memory_space<vmem>>, vector<1x2x16xf32>,
    %185 = vector.extract_strided_slice %24 {offsets = [80, 0], sizes = [2, 16], strides = [1, 1]} : vector<128x16xf32> to vector<2x16xf32>
    %c6 = arith.constant 6 : index
    %c0_129 = arith.constant 0 : index
    %c16_130 = arith.constant 16 : index
    %186 = vector.load %arg12[%c6, %c0_129, %c16_130] : memref<10x2x160xf32, #tpu.memory_space<vmem>>, vector<1x2x16xf32>
    %187 = vector.shape_cast %186 : vector<1x2x16xf32> to vector<2x16xf32>
    %188 = vector.shape_cast %185 : vector<2x16xf32> to vector<1x2x16xf32>
    tpu.vector_store %arg12[%c6, %c0_129, %c16_130], %188 {strides = array<i32>} : memref<10x2x160xf32, #tpu.memory_space<vmem>>, vector<1x2x16xf32>,
    %189 = vector.extract_strided_slice %24 {offsets = [82, 0], sizes = [2, 16], strides = [1, 1]} : vector<128x16xf32> to vector<2x16xf32>
    %c6_131 = arith.constant 6 : index
    %c0_132 = arith.constant 0 : index
    %c32_133 = arith.constant 32 : index
    %190 = vector.load %arg12[%c6_131, %c0_132, %c32_133] : memref<10x2x160xf32, #tpu.memory_space<vmem>>, vector<1x2x16xf32>
    %191 = vector.shape_cast %190 : vector<1x2x16xf32> to vector<2x16xf32>
    %192 = vector.shape_cast %189 : vector<2x16xf32> to vector<1x2x16xf32>
    tpu.vector_store %arg12[%c6_131, %c0_132, %c32_133], %192 {strides = array<i32>} : memref<10x2x160xf32, #tpu.memory_space<vmem>>, vector<1x2x16xf32>,
    %193 = vector.extract_strided_slice %24 {offsets = [84, 0], sizes = [2, 16], strides = [1, 1]} : vector<128x16xf32> to vector<2x16xf32>
    %c6_134 = arith.constant 6 : index
    %c0_135 = arith.constant 0 : index
    %c48_136 = arith.constant 48 : index
    %194 = vector.load %arg12[%c6_134, %c0_135, %c48_136] : memref<10x2x160xf32, #tpu.memory_space<vmem>>, vector<1x2x16xf32>
    %195 = vector.shape_cast %194 : vector<1x2x16xf32> to vector<2x16xf32>
    %196 = vector.shape_cast %193 : vector<2x16xf32> to vector<1x2x16xf32>
    tpu.vector_store %arg12[%c6_134, %c0_135, %c48_136], %196 {strides = array<i32>} : memref<10x2x160xf32, #tpu.memory_space<vmem>>, vector<1x2x16xf32>,
    %197 = vector.extract_strided_slice %24 {offsets = [86, 0], sizes = [2, 16], strides = [1, 1]} : vector<128x16xf32> to vector<2x16xf32>
    %c6_137 = arith.constant 6 : index
    %c0_138 = arith.constant 0 : index
    %c64_139 = arith.constant 64 : index
    %198 = vector.load %arg12[%c6_137, %c0_138, %c64_139] : memref<10x2x160xf32, #tpu.memory_space<vmem>>, vector<1x2x16xf32>
    %199 = vector.shape_cast %198 : vector<1x2x16xf32> to vector<2x16xf32>
    %200 = vector.shape_cast %197 : vector<2x16xf32> to vector<1x2x16xf32>
    tpu.vector_store %arg12[%c6_137, %c0_138, %c64_139], %200 {strides = array<i32>} : memref<10x2x160xf32, #tpu.memory_space<vmem>>, vector<1x2x16xf32>,
    %201 = vector.extract_strided_slice %24 {offsets = [88, 0], sizes = [2, 16], strides = [1, 1]} : vector<128x16xf32> to vector<2x16xf32>
    %c6_140 = arith.constant 6 : index
    %c0_141 = arith.constant 0 : index
    %c80_142 = arith.constant 80 : index
    %202 = vector.load %arg12[%c6_140, %c0_141, %c80_142] : memref<10x2x160xf32, #tpu.memory_space<vmem>>, vector<1x2x16xf32>
    %203 = vector.shape_cast %202 : vector<1x2x16xf32> to vector<2x16xf32>
    %204 = vector.shape_cast %201 : vector<2x16xf32> to vector<1x2x16xf32>
    tpu.vector_store %arg12[%c6_140, %c0_141, %c80_142], %204 {strides = array<i32>} : memref<10x2x160xf32, #tpu.memory_space<vmem>>, vector<1x2x16xf32>,
    %205 = vector.extract_strided_slice %24 {offsets = [90, 0], sizes = [2, 16], strides = [1, 1]} : vector<128x16xf32> to vector<2x16xf32>
    %c6_143 = arith.constant 6 : index
    %c0_144 = arith.constant 0 : index
    %c96_145 = arith.constant 96 : index
    %206 = vector.load %arg12[%c6_143, %c0_144, %c96_145] : memref<10x2x160xf32, #tpu.memory_space<vmem>>, vector<1x2x16xf32>
    %207 = vector.shape_cast %206 : vector<1x2x16xf32> to vector<2x16xf32>
    %208 = vector.shape_cast %205 : vector<2x16xf32> to vector<1x2x16xf32>
    tpu.vector_store %arg12[%c6_143, %c0_144, %c96_145], %208 {strides = array<i32>} : memref<10x2x160xf32, #tpu.memory_space<vmem>>, vector<1x2x16xf32>,
    %209 = vector.extract_strided_slice %24 {offsets = [92, 0], sizes = [2, 16], strides = [1, 1]} : vector<128x16xf32> to vector<2x16xf32>
    %c6_146 = arith.constant 6 : index
    %c0_147 = arith.constant 0 : index
    %c112_148 = arith.constant 112 : index
    %210 = vector.load %arg12[%c6_146, %c0_147, %c112_148] : memref<10x2x160xf32, #tpu.memory_space<vmem>>, vector<1x2x16xf32>
    %211 = vector.shape_cast %210 : vector<1x2x16xf32> to vector<2x16xf32>
    %212 = vector.shape_cast %209 : vector<2x16xf32> to vector<1x2x16xf32>
    tpu.vector_store %arg12[%c6_146, %c0_147, %c112_148], %212 {strides = array<i32>} : memref<10x2x160xf32, #tpu.memory_space<vmem>>, vector<1x2x16xf32>,
    %213 = vector.extract_strided_slice %24 {offsets = [94, 0], sizes = [2, 16], strides = [1, 1]} : vector<128x16xf32> to vector<2x16xf32>
    %c6_149 = arith.constant 6 : index
    %c0_150 = arith.constant 0 : index
    %c128_151 = arith.constant 128 : index
    %214 = vector.load %arg12[%c6_149, %c0_150, %c128_151] : memref<10x2x160xf32, #tpu.memory_space<vmem>>, vector<1x2x16xf32>
    %215 = vector.shape_cast %214 : vector<1x2x16xf32> to vector<2x16xf32>
    %216 = vector.shape_cast %213 : vector<2x16xf32> to vector<1x2x16xf32>
    tpu.vector_store %arg12[%c6_149, %c0_150, %c128_151], %216 {strides = array<i32>} : memref<10x2x160xf32, #tpu.memory_space<vmem>>, vector<1x2x16xf32>,
    %217 = vector.extract_strided_slice %24 {offsets = [96, 0], sizes = [2, 16], strides = [1, 1]} : vector<128x16xf32> to vector<2x16xf32>
    %c7 = arith.constant 7 : index
    %c0_152 = arith.constant 0 : index
    %c16_153 = arith.constant 16 : index
    %218 = vector.load %arg12[%c7, %c0_152, %c16_153] : memref<10x2x160xf32, #tpu.memory_space<vmem>>, vector<1x2x16xf32>
    %219 = vector.shape_cast %218 : vector<1x2x16xf32> to vector<2x16xf32>
    %220 = vector.shape_cast %217 : vector<2x16xf32> to vector<1x2x16xf32>
    tpu.vector_store %arg12[%c7, %c0_152, %c16_153], %220 {strides = array<i32>} : memref<10x2x160xf32, #tpu.memory_space<vmem>>, vector<1x2x16xf32>,
    %221 = vector.extract_strided_slice %24 {offsets = [98, 0], sizes = [2, 16], strides = [1, 1]} : vector<128x16xf32> to vector<2x16xf32>
    %c7_154 = arith.constant 7 : index
    %c0_155 = arith.constant 0 : index
    %c32_156 = arith.constant 32 : index
    %222 = vector.load %arg12[%c7_154, %c0_155, %c32_156] : memref<10x2x160xf32, #tpu.memory_space<vmem>>, vector<1x2x16xf32>
    %223 = vector.shape_cast %222 : vector<1x2x16xf32> to vector<2x16xf32>
    %224 = vector.shape_cast %221 : vector<2x16xf32> to vector<1x2x16xf32>
    tpu.vector_store %arg12[%c7_154, %c0_155, %c32_156], %224 {strides = array<i32>} : memref<10x2x160xf32, #tpu.memory_space<vmem>>, vector<1x2x16xf32>,
    %225 = vector.extract_strided_slice %24 {offsets = [100, 0], sizes = [2, 16], strides = [1, 1]} : vector<128x16xf32> to vector<2x16xf32>
    %c7_157 = arith.constant 7 : index
    %c0_158 = arith.constant 0 : index
    %c48_159 = arith.constant 48 : index
    %226 = vector.load %arg12[%c7_157, %c0_158, %c48_159] : memref<10x2x160xf32, #tpu.memory_space<vmem>>, vector<1x2x16xf32>
    %227 = vector.shape_cast %226 : vector<1x2x16xf32> to vector<2x16xf32>
    %228 = vector.shape_cast %225 : vector<2x16xf32> to vector<1x2x16xf32>
    tpu.vector_store %arg12[%c7_157, %c0_158, %c48_159], %228 {strides = array<i32>} : memref<10x2x160xf32, #tpu.memory_space<vmem>>, vector<1x2x16xf32>,
    %229 = vector.extract_strided_slice %24 {offsets = [102, 0], sizes = [2, 16], strides = [1, 1]} : vector<128x16xf32> to vector<2x16xf32>
    %c7_160 = arith.constant 7 : index
    %c0_161 = arith.constant 0 : index
    %c64_162 = arith.constant 64 : index
    %230 = vector.load %arg12[%c7_160, %c0_161, %c64_162] : memref<10x2x160xf32, #tpu.memory_space<vmem>>, vector<1x2x16xf32>
    %231 = vector.shape_cast %230 : vector<1x2x16xf32> to vector<2x16xf32>
    %232 = vector.shape_cast %229 : vector<2x16xf32> to vector<1x2x16xf32>
    tpu.vector_store %arg12[%c7_160, %c0_161, %c64_162], %232 {strides = array<i32>} : memref<10x2x160xf32, #tpu.memory_space<vmem>>, vector<1x2x16xf32>,
    %233 = vector.extract_strided_slice %24 {offsets = [104, 0], sizes = [2, 16], strides = [1, 1]} : vector<128x16xf32> to vector<2x16xf32>
    %c7_163 = arith.constant 7 : index
    %c0_164 = arith.constant 0 : index
    %c80_165 = arith.constant 80 : index
    %234 = vector.load %arg12[%c7_163, %c0_164, %c80_165] : memref<10x2x160xf32, #tpu.memory_space<vmem>>, vector<1x2x16xf32>
    %235 = vector.shape_cast %234 : vector<1x2x16xf32> to vector<2x16xf32>
    %236 = vector.shape_cast %233 : vector<2x16xf32> to vector<1x2x16xf32>
    tpu.vector_store %arg12[%c7_163, %c0_164, %c80_165], %236 {strides = array<i32>} : memref<10x2x160xf32, #tpu.memory_space<vmem>>, vector<1x2x16xf32>,
    %237 = vector.extract_strided_slice %24 {offsets = [106, 0], sizes = [2, 16], strides = [1, 1]} : vector<128x16xf32> to vector<2x16xf32>
    %c7_166 = arith.constant 7 : index
    %c0_167 = arith.constant 0 : index
    %c96_168 = arith.constant 96 : index
    %238 = vector.load %arg12[%c7_166, %c0_167, %c96_168] : memref<10x2x160xf32, #tpu.memory_space<vmem>>, vector<1x2x16xf32>
    %239 = vector.shape_cast %238 : vector<1x2x16xf32> to vector<2x16xf32>
    %240 = vector.shape_cast %237 : vector<2x16xf32> to vector<1x2x16xf32>
    tpu.vector_store %arg12[%c7_166, %c0_167, %c96_168], %240 {strides = array<i32>} : memref<10x2x160xf32, #tpu.memory_space<vmem>>, vector<1x2x16xf32>,
    %241 = vector.extract_strided_slice %24 {offsets = [108, 0], sizes = [2, 16], strides = [1, 1]} : vector<128x16xf32> to vector<2x16xf32>
    %c7_169 = arith.constant 7 : index
    %c0_170 = arith.constant 0 : index
    %c112_171 = arith.constant 112 : index
    %242 = vector.load %arg12[%c7_169, %c0_170, %c112_171] : memref<10x2x160xf32, #tpu.memory_space<vmem>>, vector<1x2x16xf32>
    %243 = vector.shape_cast %242 : vector<1x2x16xf32> to vector<2x16xf32>
    %244 = vector.shape_cast %241 : vector<2x16xf32> to vector<1x2x16xf32>
    tpu.vector_store %arg12[%c7_169, %c0_170, %c112_171], %244 {strides = array<i32>} : memref<10x2x160xf32, #tpu.memory_space<vmem>>, vector<1x2x16xf32>,
    %245 = vector.extract_strided_slice %24 {offsets = [110, 0], sizes = [2, 16], strides = [1, 1]} : vector<128x16xf32> to vector<2x16xf32>
    %c7_172 = arith.constant 7 : index
    %c0_173 = arith.constant 0 : index
    %c128_174 = arith.constant 128 : index
    %246 = vector.load %arg12[%c7_172, %c0_173, %c128_174] : memref<10x2x160xf32, #tpu.memory_space<vmem>>, vector<1x2x16xf32>
    %247 = vector.shape_cast %246 : vector<1x2x16xf32> to vector<2x16xf32>
    %248 = vector.shape_cast %245 : vector<2x16xf32> to vector<1x2x16xf32>
    tpu.vector_store %arg12[%c7_172, %c0_173, %c128_174], %248 {strides = array<i32>} : memref<10x2x160xf32, #tpu.memory_space<vmem>>, vector<1x2x16xf32>,
    %249 = vector.extract_strided_slice %24 {offsets = [112, 0], sizes = [2, 16], strides = [1, 1]} : vector<128x16xf32> to vector<2x16xf32>
    %c8 = arith.constant 8 : index
    %c0_175 = arith.constant 0 : index
    %c16_176 = arith.constant 16 : index
    %250 = vector.load %arg12[%c8, %c0_175, %c16_176] : memref<10x2x160xf32, #tpu.memory_space<vmem>>, vector<1x2x16xf32>
    %251 = vector.shape_cast %250 : vector<1x2x16xf32> to vector<2x16xf32>
    %252 = vector.shape_cast %249 : vector<2x16xf32> to vector<1x2x16xf32>
    tpu.vector_store %arg12[%c8, %c0_175, %c16_176], %252 {strides = array<i32>} : memref<10x2x160xf32, #tpu.memory_space<vmem>>, vector<1x2x16xf32>,
    %253 = vector.extract_strided_slice %24 {offsets = [114, 0], sizes = [2, 16], strides = [1, 1]} : vector<128x16xf32> to vector<2x16xf32>
    %c8_177 = arith.constant 8 : index
    %c0_178 = arith.constant 0 : index
    %c32_179 = arith.constant 32 : index
    %254 = vector.load %arg12[%c8_177, %c0_178, %c32_179] : memref<10x2x160xf32, #tpu.memory_space<vmem>>, vector<1x2x16xf32>
    %255 = vector.shape_cast %254 : vector<1x2x16xf32> to vector<2x16xf32>
    %256 = vector.shape_cast %253 : vector<2x16xf32> to vector<1x2x16xf32>
    tpu.vector_store %arg12[%c8_177, %c0_178, %c32_179], %256 {strides = array<i32>} : memref<10x2x160xf32, #tpu.memory_space<vmem>>, vector<1x2x16xf32>,
    %257 = vector.extract_strided_slice %24 {offsets = [116, 0], sizes = [2, 16], strides = [1, 1]} : vector<128x16xf32> to vector<2x16xf32>
    %c8_180 = arith.constant 8 : index
    %c0_181 = arith.constant 0 : index
    %c48_182 = arith.constant 48 : index
    %258 = vector.load %arg12[%c8_180, %c0_181, %c48_182] : memref<10x2x160xf32, #tpu.memory_space<vmem>>, vector<1x2x16xf32>
    %259 = vector.shape_cast %258 : vector<1x2x16xf32> to vector<2x16xf32>
    %260 = vector.shape_cast %257 : vector<2x16xf32> to vector<1x2x16xf32>
    tpu.vector_store %arg12[%c8_180, %c0_181, %c48_182], %260 {strides = array<i32>} : memref<10x2x160xf32, #tpu.memory_space<vmem>>, vector<1x2x16xf32>,
    %261 = vector.extract_strided_slice %24 {offsets = [118, 0], sizes = [2, 16], strides = [1, 1]} : vector<128x16xf32> to vector<2x16xf32>
    %c8_183 = arith.constant 8 : index
    %c0_184 = arith.constant 0 : index
    %c64_185 = arith.constant 64 : index
    %262 = vector.load %arg12[%c8_183, %c0_184, %c64_185] : memref<10x2x160xf32, #tpu.memory_space<vmem>>, vector<1x2x16xf32>
    %263 = vector.shape_cast %262 : vector<1x2x16xf32> to vector<2x16xf32>
    %264 = vector.shape_cast %261 : vector<2x16xf32> to vector<1x2x16xf32>
    tpu.vector_store %arg12[%c8_183, %c0_184, %c64_185], %264 {strides = array<i32>} : memref<10x2x160xf32, #tpu.memory_space<vmem>>, vector<1x2x16xf32>,
    %265 = vector.extract_strided_slice %24 {offsets = [120, 0], sizes = [2, 16], strides = [1, 1]} : vector<128x16xf32> to vector<2x16xf32>
    %c8_186 = arith.constant 8 : index
    %c0_187 = arith.constant 0 : index
    %c80_188 = arith.constant 80 : index
    %266 = vector.load %arg12[%c8_186, %c0_187, %c80_188] : memref<10x2x160xf32, #tpu.memory_space<vmem>>, vector<1x2x16xf32>
    %267 = vector.shape_cast %266 : vector<1x2x16xf32> to vector<2x16xf32>
    %268 = vector.shape_cast %265 : vector<2x16xf32> to vector<1x2x16xf32>
    tpu.vector_store %arg12[%c8_186, %c0_187, %c80_188], %268 {strides = array<i32>} : memref<10x2x160xf32, #tpu.memory_space<vmem>>, vector<1x2x16xf32>,
    %269 = vector.extract_strided_slice %24 {offsets = [122, 0], sizes = [2, 16], strides = [1, 1]} : vector<128x16xf32> to vector<2x16xf32>
    %c8_189 = arith.constant 8 : index
    %c0_190 = arith.constant 0 : index
    %c96_191 = arith.constant 96 : index
    %270 = vector.load %arg12[%c8_189, %c0_190, %c96_191] : memref<10x2x160xf32, #tpu.memory_space<vmem>>, vector<1x2x16xf32>
    %271 = vector.shape_cast %270 : vector<1x2x16xf32> to vector<2x16xf32>
    %272 = vector.shape_cast %269 : vector<2x16xf32> to vector<1x2x16xf32>
    tpu.vector_store %arg12[%c8_189, %c0_190, %c96_191], %272 {strides = array<i32>} : memref<10x2x160xf32, #tpu.memory_space<vmem>>, vector<1x2x16xf32>,
    %273 = vector.extract_strided_slice %24 {offsets = [124, 0], sizes = [2, 16], strides = [1, 1]} : vector<128x16xf32> to vector<2x16xf32>
    %c8_192 = arith.constant 8 : index
    %c0_193 = arith.constant 0 : index
    %c112_194 = arith.constant 112 : index
    %274 = vector.load %arg12[%c8_192, %c0_193, %c112_194] : memref<10x2x160xf32, #tpu.memory_space<vmem>>, vector<1x2x16xf32>
    %275 = vector.shape_cast %274 : vector<1x2x16xf32> to vector<2x16xf32>
    %276 = vector.shape_cast %273 : vector<2x16xf32> to vector<1x2x16xf32>
    tpu.vector_store %arg12[%c8_192, %c0_193, %c112_194], %276 {strides = array<i32>} : memref<10x2x160xf32, #tpu.memory_space<vmem>>, vector<1x2x16xf32>,
    %277 = vector.extract_strided_slice %24 {offsets = [126, 0], sizes = [2, 16], strides = [1, 1]} : vector<128x16xf32> to vector<2x16xf32>
    %c8_195 = arith.constant 8 : index
    %c0_196 = arith.constant 0 : index
    %c128_197 = arith.constant 128 : index
    %278 = vector.load %arg12[%c8_195, %c0_196, %c128_197] : memref<10x2x160xf32, #tpu.memory_space<vmem>>, vector<1x2x16xf32>
    %279 = vector.shape_cast %278 : vector<1x2x16xf32> to vector<2x16xf32>
    %280 = vector.shape_cast %277 : vector<2x16xf32> to vector<1x2x16xf32>
    tpu.vector_store %arg12[%c8_195, %c0_196, %c128_197], %280 {strides = array<i32>} : memref<10x2x160xf32, #tpu.memory_space<vmem>>, vector<1x2x16xf32>,
    %c0_198 = arith.constant 0 : index
    %c0_199 = arith.constant 0 : index
    %c0_200 = arith.constant 0 : index
    %281 = vector.load %arg12[%c0_198, %c0_199, %c0_200] : memref<10x2x160xf32, #tpu.memory_space<vmem>>, vector<1x2x48xf32>
    %282 = vector.shape_cast %281 : vector<1x2x48xf32> to vector<2x48xf32>
    %c1_201 = arith.constant 1 : index
    %c0_202 = arith.constant 0 : index
    %c0_203 = arith.constant 0 : index
    %283 = vector.load %arg12[%c1_201, %c0_202, %c0_203] : memref<10x2x160xf32, #tpu.memory_space<vmem>>, vector<1x2x48xf32>
    %284 = vector.shape_cast %283 : vector<1x2x48xf32> to vector<2x48xf32>
    %c2_204 = arith.constant 2 : index
    %c0_205 = arith.constant 0 : index
    %c0_206 = arith.constant 0 : index
    %285 = vector.load %arg12[%c2_204, %c0_205, %c0_206] : memref<10x2x160xf32, #tpu.memory_space<vmem>>, vector<1x2x48xf32>
    %286 = vector.shape_cast %285 : vector<1x2x48xf32> to vector<2x48xf32>
    %287 = tpu.concatenate %282, %284, %286 in 1 : vector<2x48xf32>, vector<2x48xf32>, vector<2x48xf32> -> vector<2x144xf32>
    %c0_207 = arith.constant 0 : index
    %c0_208 = arith.constant 0 : index
    %c32_209 = arith.constant 32 : index
    %288 = vector.load %arg12[%c0_207, %c0_208, %c32_209] : memref<10x2x160xf32, #tpu.memory_space<vmem>>, vector<1x2x48xf32>
    %289 = vector.shape_cast %288 : vector<1x2x48xf32> to vector<2x48xf32>
    %c1_210 = arith.constant 1 : index
    %c0_211 = arith.constant 0 : index
    %c32_212 = arith.constant 32 : index
    %290 = vector.load %arg12[%c1_210, %c0_211, %c32_212] : memref<10x2x160xf32, #tpu.memory_space<vmem>>, vector<1x2x48xf32>
    %291 = vector.shape_cast %290 : vector<1x2x48xf32> to vector<2x48xf32>
    %c2_213 = arith.constant 2 : index
    %c0_214 = arith.constant 0 : index
    %c32_215 = arith.constant 32 : index
    %292 = vector.load %arg12[%c2_213, %c0_214, %c32_215] : memref<10x2x160xf32, #tpu.memory_space<vmem>>, vector<1x2x48xf32>
    %293 = vector.shape_cast %292 : vector<1x2x48xf32> to vector<2x48xf32>
    %294 = tpu.concatenate %289, %291, %293 in 1 : vector<2x48xf32>, vector<2x48xf32>, vector<2x48xf32> -> vector<2x144xf32>
    %c0_216 = arith.constant 0 : index
    %c0_217 = arith.constant 0 : index
    %c64_218 = arith.constant 64 : index
    %295 = vector.load %arg12[%c0_216, %c0_217, %c64_218] : memref<10x2x160xf32, #tpu.memory_space<vmem>>, vector<1x2x48xf32>
    %296 = vector.shape_cast %295 : vector<1x2x48xf32> to vector<2x48xf32>
    %c1_219 = arith.constant 1 : index
    %c0_220 = arith.constant 0 : index
    %c64_221 = arith.constant 64 : index
    %297 = vector.load %arg12[%c1_219, %c0_220, %c64_221] : memref<10x2x160xf32, #tpu.memory_space<vmem>>, vector<1x2x48xf32>
    %298 = vector.shape_cast %297 : vector<1x2x48xf32> to vector<2x48xf32>
    %c2_222 = arith.constant 2 : index
    %c0_223 = arith.constant 0 : index
    %c64_224 = arith.constant 64 : index
    %299 = vector.load %arg12[%c2_222, %c0_223, %c64_224] : memref<10x2x160xf32, #tpu.memory_space<vmem>>, vector<1x2x48xf32>
    %300 = vector.shape_cast %299 : vector<1x2x48xf32> to vector<2x48xf32>
    %301 = tpu.concatenate %296, %298, %300 in 1 : vector<2x48xf32>, vector<2x48xf32>, vector<2x48xf32> -> vector<2x144xf32>
    %c0_225 = arith.constant 0 : index
    %c0_226 = arith.constant 0 : index
    %c96_227 = arith.constant 96 : index
    %302 = vector.load %arg12[%c0_225, %c0_226, %c96_227] : memref<10x2x160xf32, #tpu.memory_space<vmem>>, vector<1x2x48xf32>
    %303 = vector.shape_cast %302 : vector<1x2x48xf32> to vector<2x48xf32>
    %c1_228 = arith.constant 1 : index
    %c0_229 = arith.constant 0 : index
    %c96_230 = arith.constant 96 : index
    %304 = vector.load %arg12[%c1_228, %c0_229, %c96_230] : memref<10x2x160xf32, #tpu.memory_space<vmem>>, vector<1x2x48xf32>
    %305 = vector.shape_cast %304 : vector<1x2x48xf32> to vector<2x48xf32>
    %c2_231 = arith.constant 2 : index
    %c0_232 = arith.constant 0 : index
    %c96_233 = arith.constant 96 : index
    %306 = vector.load %arg12[%c2_231, %c0_232, %c96_233] : memref<10x2x160xf32, #tpu.memory_space<vmem>>, vector<1x2x48xf32>
    %307 = vector.shape_cast %306 : vector<1x2x48xf32> to vector<2x48xf32>
    %308 = tpu.concatenate %303, %305, %307 in 1 : vector<2x48xf32>, vector<2x48xf32>, vector<2x48xf32> -> vector<2x144xf32>
    %c2_234 = arith.constant 2 : index
    %c0_235 = arith.constant 0 : index
    %c0_236 = arith.constant 0 : index
    %309 = vector.load %arg12[%c2_234, %c0_235, %c0_236] : memref<10x2x160xf32, #tpu.memory_space<vmem>>, vector<1x2x48xf32>
    %310 = vector.shape_cast %309 : vector<1x2x48xf32> to vector<2x48xf32>
    %c3_237 = arith.constant 3 : index
    %c0_238 = arith.constant 0 : index
    %c0_239 = arith.constant 0 : index
    %311 = vector.load %arg12[%c3_237, %c0_238, %c0_239] : memref<10x2x160xf32, #tpu.memory_space<vmem>>, vector<1x2x48xf32>
    %312 = vector.shape_cast %311 : vector<1x2x48xf32> to vector<2x48xf32>
    %c4_240 = arith.constant 4 : index
    %c0_241 = arith.constant 0 : index
    %c0_242 = arith.constant 0 : index
    %313 = vector.load %arg12[%c4_240, %c0_241, %c0_242] : memref<10x2x160xf32, #tpu.memory_space<vmem>>, vector<1x2x48xf32>
    %314 = vector.shape_cast %313 : vector<1x2x48xf32> to vector<2x48xf32>
    %315 = tpu.concatenate %310, %312, %314 in 1 : vector<2x48xf32>, vector<2x48xf32>, vector<2x48xf32> -> vector<2x144xf32>
    %c2_243 = arith.constant 2 : index
    %c0_244 = arith.constant 0 : index
    %c32_245 = arith.constant 32 : index
    %316 = vector.load %arg12[%c2_243, %c0_244, %c32_245] : memref<10x2x160xf32, #tpu.memory_space<vmem>>, vector<1x2x48xf32>
    %317 = vector.shape_cast %316 : vector<1x2x48xf32> to vector<2x48xf32>
    %c3_246 = arith.constant 3 : index
    %c0_247 = arith.constant 0 : index
    %c32_248 = arith.constant 32 : index
    %318 = vector.load %arg12[%c3_246, %c0_247, %c32_248] : memref<10x2x160xf32, #tpu.memory_space<vmem>>, vector<1x2x48xf32>
    %319 = vector.shape_cast %318 : vector<1x2x48xf32> to vector<2x48xf32>
    %c4_249 = arith.constant 4 : index
    %c0_250 = arith.constant 0 : index
    %c32_251 = arith.constant 32 : index
    %320 = vector.load %arg12[%c4_249, %c0_250, %c32_251] : memref<10x2x160xf32, #tpu.memory_space<vmem>>, vector<1x2x48xf32>
    %321 = vector.shape_cast %320 : vector<1x2x48xf32> to vector<2x48xf32>
    %322 = tpu.concatenate %317, %319, %321 in 1 : vector<2x48xf32>, vector<2x48xf32>, vector<2x48xf32> -> vector<2x144xf32>
    %c2_252 = arith.constant 2 : index
    %c0_253 = arith.constant 0 : index
    %c64_254 = arith.constant 64 : index
    %323 = vector.load %arg12[%c2_252, %c0_253, %c64_254] : memref<10x2x160xf32, #tpu.memory_space<vmem>>, vector<1x2x48xf32>
    %324 = vector.shape_cast %323 : vector<1x2x48xf32> to vector<2x48xf32>
    %c3_255 = arith.constant 3 : index
    %c0_256 = arith.constant 0 : index
    %c64_257 = arith.constant 64 : index
    %325 = vector.load %arg12[%c3_255, %c0_256, %c64_257] : memref<10x2x160xf32, #tpu.memory_space<vmem>>, vector<1x2x48xf32>
    %326 = vector.shape_cast %325 : vector<1x2x48xf32> to vector<2x48xf32>
    %c4_258 = arith.constant 4 : index
    %c0_259 = arith.constant 0 : index
    %c64_260 = arith.constant 64 : index
    %327 = vector.load %arg12[%c4_258, %c0_259, %c64_260] : memref<10x2x160xf32, #tpu.memory_space<vmem>>, vector<1x2x48xf32>
    %328 = vector.shape_cast %327 : vector<1x2x48xf32> to vector<2x48xf32>
    %329 = tpu.concatenate %324, %326, %328 in 1 : vector<2x48xf32>, vector<2x48xf32>, vector<2x48xf32> -> vector<2x144xf32>
    %c2_261 = arith.constant 2 : index
    %c0_262 = arith.constant 0 : index
    %c96_263 = arith.constant 96 : index
    %330 = vector.load %arg12[%c2_261, %c0_262, %c96_263] : memref<10x2x160xf32, #tpu.memory_space<vmem>>, vector<1x2x48xf32>
    %331 = vector.shape_cast %330 : vector<1x2x48xf32> to vector<2x48xf32>
    %c3_264 = arith.constant 3 : index
    %c0_265 = arith.constant 0 : index
    %c96_266 = arith.constant 96 : index
    %332 = vector.load %arg12[%c3_264, %c0_265, %c96_266] : memref<10x2x160xf32, #tpu.memory_space<vmem>>, vector<1x2x48xf32>
    %333 = vector.shape_cast %332 : vector<1x2x48xf32> to vector<2x48xf32>
    %c4_267 = arith.constant 4 : index
    %c0_268 = arith.constant 0 : index
    %c96_269 = arith.constant 96 : index
    %334 = vector.load %arg12[%c4_267, %c0_268, %c96_269] : memref<10x2x160xf32, #tpu.memory_space<vmem>>, vector<1x2x48xf32>
    %335 = vector.shape_cast %334 : vector<1x2x48xf32> to vector<2x48xf32>
    %336 = tpu.concatenate %331, %333, %335 in 1 : vector<2x48xf32>, vector<2x48xf32>, vector<2x48xf32> -> vector<2x144xf32>
    %c4_270 = arith.constant 4 : index
    %c0_271 = arith.constant 0 : index
    %c0_272 = arith.constant 0 : index
    %337 = vector.load %arg12[%c4_270, %c0_271, %c0_272] : memref<10x2x160xf32, #tpu.memory_space<vmem>>, vector<1x2x48xf32>
    %338 = vector.shape_cast %337 : vector<1x2x48xf32> to vector<2x48xf32>
    %c5_273 = arith.constant 5 : index
    %c0_274 = arith.constant 0 : index
    %c0_275 = arith.constant 0 : index
    %339 = vector.load %arg12[%c5_273, %c0_274, %c0_275] : memref<10x2x160xf32, #tpu.memory_space<vmem>>, vector<1x2x48xf32>
    %340 = vector.shape_cast %339 : vector<1x2x48xf32> to vector<2x48xf32>
    %c6_276 = arith.constant 6 : index
    %c0_277 = arith.constant 0 : index
    %c0_278 = arith.constant 0 : index
    %341 = vector.load %arg12[%c6_276, %c0_277, %c0_278] : memref<10x2x160xf32, #tpu.memory_space<vmem>>, vector<1x2x48xf32>
    %342 = vector.shape_cast %341 : vector<1x2x48xf32> to vector<2x48xf32>
    %343 = tpu.concatenate %338, %340, %342 in 1 : vector<2x48xf32>, vector<2x48xf32>, vector<2x48xf32> -> vector<2x144xf32>
    %c4_279 = arith.constant 4 : index
    %c0_280 = arith.constant 0 : index
    %c32_281 = arith.constant 32 : index
    %344 = vector.load %arg12[%c4_279, %c0_280, %c32_281] : memref<10x2x160xf32, #tpu.memory_space<vmem>>, vector<1x2x48xf32>
    %345 = vector.shape_cast %344 : vector<1x2x48xf32> to vector<2x48xf32>
    %c5_282 = arith.constant 5 : index
    %c0_283 = arith.constant 0 : index
    %c32_284 = arith.constant 32 : index
    %346 = vector.load %arg12[%c5_282, %c0_283, %c32_284] : memref<10x2x160xf32, #tpu.memory_space<vmem>>, vector<1x2x48xf32>
    %347 = vector.shape_cast %346 : vector<1x2x48xf32> to vector<2x48xf32>
    %c6_285 = arith.constant 6 : index
    %c0_286 = arith.constant 0 : index
    %c32_287 = arith.constant 32 : index
    %348 = vector.load %arg12[%c6_285, %c0_286, %c32_287] : memref<10x2x160xf32, #tpu.memory_space<vmem>>, vector<1x2x48xf32>
    %349 = vector.shape_cast %348 : vector<1x2x48xf32> to vector<2x48xf32>
    %350 = tpu.concatenate %345, %347, %349 in 1 : vector<2x48xf32>, vector<2x48xf32>, vector<2x48xf32> -> vector<2x144xf32>
    %c4_288 = arith.constant 4 : index
    %c0_289 = arith.constant 0 : index
    %c64_290 = arith.constant 64 : index
    %351 = vector.load %arg12[%c4_288, %c0_289, %c64_290] : memref<10x2x160xf32, #tpu.memory_space<vmem>>, vector<1x2x48xf32>
    %352 = vector.shape_cast %351 : vector<1x2x48xf32> to vector<2x48xf32>
    %c5_291 = arith.constant 5 : index
    %c0_292 = arith.constant 0 : index
    %c64_293 = arith.constant 64 : index
    %353 = vector.load %arg12[%c5_291, %c0_292, %c64_293] : memref<10x2x160xf32, #tpu.memory_space<vmem>>, vector<1x2x48xf32>
    %354 = vector.shape_cast %353 : vector<1x2x48xf32> to vector<2x48xf32>
    %c6_294 = arith.constant 6 : index
    %c0_295 = arith.constant 0 : index
    %c64_296 = arith.constant 64 : index
    %355 = vector.load %arg12[%c6_294, %c0_295, %c64_296] : memref<10x2x160xf32, #tpu.memory_space<vmem>>, vector<1x2x48xf32>
    %356 = vector.shape_cast %355 : vector<1x2x48xf32> to vector<2x48xf32>
    %357 = tpu.concatenate %352, %354, %356 in 1 : vector<2x48xf32>, vector<2x48xf32>, vector<2x48xf32> -> vector<2x144xf32>
    %c4_297 = arith.constant 4 : index
    %c0_298 = arith.constant 0 : index
    %c96_299 = arith.constant 96 : index
    %358 = vector.load %arg12[%c4_297, %c0_298, %c96_299] : memref<10x2x160xf32, #tpu.memory_space<vmem>>, vector<1x2x48xf32>
    %359 = vector.shape_cast %358 : vector<1x2x48xf32> to vector<2x48xf32>
    %c5_300 = arith.constant 5 : index
    %c0_301 = arith.constant 0 : index
    %c96_302 = arith.constant 96 : index
    %360 = vector.load %arg12[%c5_300, %c0_301, %c96_302] : memref<10x2x160xf32, #tpu.memory_space<vmem>>, vector<1x2x48xf32>
    %361 = vector.shape_cast %360 : vector<1x2x48xf32> to vector<2x48xf32>
    %c6_303 = arith.constant 6 : index
    %c0_304 = arith.constant 0 : index
    %c96_305 = arith.constant 96 : index
    %362 = vector.load %arg12[%c6_303, %c0_304, %c96_305] : memref<10x2x160xf32, #tpu.memory_space<vmem>>, vector<1x2x48xf32>
    %363 = vector.shape_cast %362 : vector<1x2x48xf32> to vector<2x48xf32>
    %364 = tpu.concatenate %359, %361, %363 in 1 : vector<2x48xf32>, vector<2x48xf32>, vector<2x48xf32> -> vector<2x144xf32>
    %c6_306 = arith.constant 6 : index
    %c0_307 = arith.constant 0 : index
    %c0_308 = arith.constant 0 : index
    %365 = vector.load %arg12[%c6_306, %c0_307, %c0_308] : memref<10x2x160xf32, #tpu.memory_space<vmem>>, vector<1x2x48xf32>
    %366 = vector.shape_cast %365 : vector<1x2x48xf32> to vector<2x48xf32>
    %c7_309 = arith.constant 7 : index
    %c0_310 = arith.constant 0 : index
    %c0_311 = arith.constant 0 : index
    %367 = vector.load %arg12[%c7_309, %c0_310, %c0_311] : memref<10x2x160xf32, #tpu.memory_space<vmem>>, vector<1x2x48xf32>
    %368 = vector.shape_cast %367 : vector<1x2x48xf32> to vector<2x48xf32>
    %c8_312 = arith.constant 8 : index
    %c0_313 = arith.constant 0 : index
    %c0_314 = arith.constant 0 : index
    %369 = vector.load %arg12[%c8_312, %c0_313, %c0_314] : memref<10x2x160xf32, #tpu.memory_space<vmem>>, vector<1x2x48xf32>
    %370 = vector.shape_cast %369 : vector<1x2x48xf32> to vector<2x48xf32>
    %371 = tpu.concatenate %366, %368, %370 in 1 : vector<2x48xf32>, vector<2x48xf32>, vector<2x48xf32> -> vector<2x144xf32>
    %c6_315 = arith.constant 6 : index
    %c0_316 = arith.constant 0 : index
    %c32_317 = arith.constant 32 : index
    %372 = vector.load %arg12[%c6_315, %c0_316, %c32_317] : memref<10x2x160xf32, #tpu.memory_space<vmem>>, vector<1x2x48xf32>
    %373 = vector.shape_cast %372 : vector<1x2x48xf32> to vector<2x48xf32>
    %c7_318 = arith.constant 7 : index
    %c0_319 = arith.constant 0 : index
    %c32_320 = arith.constant 32 : index
    %374 = vector.load %arg12[%c7_318, %c0_319, %c32_320] : memref<10x2x160xf32, #tpu.memory_space<vmem>>, vector<1x2x48xf32>
    %375 = vector.shape_cast %374 : vector<1x2x48xf32> to vector<2x48xf32>
    %c8_321 = arith.constant 8 : index
    %c0_322 = arith.constant 0 : index
    %c32_323 = arith.constant 32 : index
    %376 = vector.load %arg12[%c8_321, %c0_322, %c32_323] : memref<10x2x160xf32, #tpu.memory_space<vmem>>, vector<1x2x48xf32>
    %377 = vector.shape_cast %376 : vector<1x2x48xf32> to vector<2x48xf32>
    %378 = tpu.concatenate %373, %375, %377 in 1 : vector<2x48xf32>, vector<2x48xf32>, vector<2x48xf32> -> vector<2x144xf32>
    %c6_324 = arith.constant 6 : index
    %c0_325 = arith.constant 0 : index
    %c64_326 = arith.constant 64 : index
    %379 = vector.load %arg12[%c6_324, %c0_325, %c64_326] : memref<10x2x160xf32, #tpu.memory_space<vmem>>, vector<1x2x48xf32>
    %380 = vector.shape_cast %379 : vector<1x2x48xf32> to vector<2x48xf32>
    %c7_327 = arith.constant 7 : index
    %c0_328 = arith.constant 0 : index
    %c64_329 = arith.constant 64 : index
    %381 = vector.load %arg12[%c7_327, %c0_328, %c64_329] : memref<10x2x160xf32, #tpu.memory_space<vmem>>, vector<1x2x48xf32>
    %382 = vector.shape_cast %381 : vector<1x2x48xf32> to vector<2x48xf32>
    %c8_330 = arith.constant 8 : index
    %c0_331 = arith.constant 0 : index
    %c64_332 = arith.constant 64 : index
    %383 = vector.load %arg12[%c8_330, %c0_331, %c64_332] : memref<10x2x160xf32, #tpu.memory_space<vmem>>, vector<1x2x48xf32>
    %384 = vector.shape_cast %383 : vector<1x2x48xf32> to vector<2x48xf32>
    %385 = tpu.concatenate %380, %382, %384 in 1 : vector<2x48xf32>, vector<2x48xf32>, vector<2x48xf32> -> vector<2x144xf32>
    %c6_333 = arith.constant 6 : index
    %c0_334 = arith.constant 0 : index
    %c96_335 = arith.constant 96 : index
    %386 = vector.load %arg12[%c6_333, %c0_334, %c96_335] : memref<10x2x160xf32, #tpu.memory_space<vmem>>, vector<1x2x48xf32>
    %387 = vector.shape_cast %386 : vector<1x2x48xf32> to vector<2x48xf32>
    %c7_336 = arith.constant 7 : index
    %c0_337 = arith.constant 0 : index
    %c96_338 = arith.constant 96 : index
    %388 = vector.load %arg12[%c7_336, %c0_337, %c96_338] : memref<10x2x160xf32, #tpu.memory_space<vmem>>, vector<1x2x48xf32>
    %389 = vector.shape_cast %388 : vector<1x2x48xf32> to vector<2x48xf32>
    %c8_339 = arith.constant 8 : index
    %c0_340 = arith.constant 0 : index
    %c96_341 = arith.constant 96 : index
    %390 = vector.load %arg12[%c8_339, %c0_340, %c96_341] : memref<10x2x160xf32, #tpu.memory_space<vmem>>, vector<1x2x48xf32>
    %391 = vector.shape_cast %390 : vector<1x2x48xf32> to vector<2x48xf32>
    %392 = tpu.concatenate %387, %389, %391 in 1 : vector<2x48xf32>, vector<2x48xf32>, vector<2x48xf32> -> vector<2x144xf32>
    %393 = tpu.concatenate %287, %294, %301, %308, %315, %322, %329, %336, %343, %350, %357, %364, %371, %378, %385, %392 in 0 : vector<2x144xf32>, vector<2x144xf32>, vector<2x144xf32>, vector<2x144xf32>, vector<2x144xf32>, vector<2x144xf32>, vector<2x144xf32>, vector<2x144xf32>, vector<2x144xf32>, vector<2x144xf32>, vector<2x144xf32>, vector<2x144xf32>, vector<2x144xf32>, vector<2x144xf32>, vector<2x144xf32>, vector<2x144xf32> -> vector<32x144xf32>
    %c0_342 = arith.constant 0 : index
    %c0_343 = arith.constant 0 : index
    %394 = vector.load %arg3[%c0_342, %c0_343] : memref<144x32xf32, #tpu.memory_space<vmem>>, vector<144x32xf32>
    %cst_344 = arith.constant dense<0.000000e+00> : vector<32x32xf32>
    %395 = tpu.matmul %393, %394, %cst_344 {dimension_numbers = #tpu.dot_dimension_numbers<[1], [0], [0], [1], [0, 0, 1, 1], [], []>} : vector<32x144xf32>, vector<144x32xf32>, vector<32x32xf32> -> vector<32x32xf32>
    %c0_345 = arith.constant 0 : index
    %c0_346 = arith.constant 0 : index
    %396 = vector.load %arg4[%c0_345, %c0_346] : memref<3x32xf32, #tpu.memory_space<vmem>>, vector<1x32xf32>
    %397 = vector.broadcast %396 : vector<1x32xf32> to vector<32x32xf32>
    %398 = arith.addf %395, %397 : vector<32x32xf32>
    %cst_347 = arith.constant 2.000000e-01 : f32
    %399 = vector.broadcast %cst_347 : f32 to vector<32x32xf32>
    %400 = arith.mulf %399, %398 : vector<32x32xf32>
    %401 = arith.maximumf %398, %400 : vector<32x32xf32>
    %c1_348 = arith.constant 1 : index
    %c0_349 = arith.constant 0 : index
    %402 = vector.load %arg4[%c1_348, %c0_349] : memref<3x32xf32, #tpu.memory_space<vmem>>, vector<1x32xf32>
    %403 = vector.broadcast %402 : vector<1x32xf32> to vector<32x32xf32>
    %404 = arith.mulf %401, %403 : vector<32x32xf32>
    %c2_350 = arith.constant 2 : index
    %c0_351 = arith.constant 0 : index
    %405 = vector.load %arg4[%c2_350, %c0_351] : memref<3x32xf32, #tpu.memory_space<vmem>>, vector<1x32xf32>
    %406 = vector.broadcast %405 : vector<1x32xf32> to vector<32x32xf32>
    %407 = arith.addf %404, %406 : vector<32x32xf32>
    %408 = vector.extract_strided_slice %407 {offsets = [0, 0], sizes = [2, 32], strides = [1, 1]} : vector<32x32xf32> to vector<2x32xf32>
    %c1_352 = arith.constant 1 : index
    %c0_353 = arith.constant 0 : index
    %c32_354 = arith.constant 32 : index
    %409 = vector.load %arg13[%c1_352, %c0_353, %c32_354] : memref<6x2x192xf32, #tpu.memory_space<vmem>>, vector<1x2x32xf32>
    %410 = vector.shape_cast %409 : vector<1x2x32xf32> to vector<2x32xf32>
    %411 = vector.shape_cast %408 : vector<2x32xf32> to vector<1x2x32xf32>
    tpu.vector_store %arg13[%c1_352, %c0_353, %c32_354], %411 {strides = array<i32>} : memref<6x2x192xf32, #tpu.memory_space<vmem>>, vector<1x2x32xf32>,
    %412 = vector.extract_strided_slice %407 {offsets = [2, 0], sizes = [2, 32], strides = [1, 1]} : vector<32x32xf32> to vector<2x32xf32>
    %c1_355 = arith.constant 1 : index
    %c0_356 = arith.constant 0 : index
    %c64_357 = arith.constant 64 : index
    %413 = vector.load %arg13[%c1_355, %c0_356, %c64_357] : memref<6x2x192xf32, #tpu.memory_space<vmem>>, vector<1x2x32xf32>
    %414 = vector.shape_cast %413 : vector<1x2x32xf32> to vector<2x32xf32>
    %415 = vector.shape_cast %412 : vector<2x32xf32> to vector<1x2x32xf32>
    tpu.vector_store %arg13[%c1_355, %c0_356, %c64_357], %415 {strides = array<i32>} : memref<6x2x192xf32, #tpu.memory_space<vmem>>, vector<1x2x32xf32>,
    %416 = vector.extract_strided_slice %407 {offsets = [4, 0], sizes = [2, 32], strides = [1, 1]} : vector<32x32xf32> to vector<2x32xf32>
    %c1_358 = arith.constant 1 : index
    %c0_359 = arith.constant 0 : index
    %c96_360 = arith.constant 96 : index
    %417 = vector.load %arg13[%c1_358, %c0_359, %c96_360] : memref<6x2x192xf32, #tpu.memory_space<vmem>>, vector<1x2x32xf32>
    %418 = vector.shape_cast %417 : vector<1x2x32xf32> to vector<2x32xf32>
    %419 = vector.shape_cast %416 : vector<2x32xf32> to vector<1x2x32xf32>
    tpu.vector_store %arg13[%c1_358, %c0_359, %c96_360], %419 {strides = array<i32>} : memref<6x2x192xf32, #tpu.memory_space<vmem>>, vector<1x2x32xf32>,
    %420 = vector.extract_strided_slice %407 {offsets = [6, 0], sizes = [2, 32], strides = [1, 1]} : vector<32x32xf32> to vector<2x32xf32>
    %c1_361 = arith.constant 1 : index
    %c0_362 = arith.constant 0 : index
    %c128_363 = arith.constant 128 : index
    %421 = vector.load %arg13[%c1_361, %c0_362, %c128_363] : memref<6x2x192xf32, #tpu.memory_space<vmem>>, vector<1x2x32xf32>
    %422 = vector.shape_cast %421 : vector<1x2x32xf32> to vector<2x32xf32>
    %423 = vector.shape_cast %420 : vector<2x32xf32> to vector<1x2x32xf32>
    tpu.vector_store %arg13[%c1_361, %c0_362, %c128_363], %423 {strides = array<i32>} : memref<6x2x192xf32, #tpu.memory_space<vmem>>, vector<1x2x32xf32>,
    %424 = vector.extract_strided_slice %407 {offsets = [8, 0], sizes = [2, 32], strides = [1, 1]} : vector<32x32xf32> to vector<2x32xf32>
    %c2_364 = arith.constant 2 : index
    %c0_365 = arith.constant 0 : index
    %c32_366 = arith.constant 32 : index
    %425 = vector.load %arg13[%c2_364, %c0_365, %c32_366] : memref<6x2x192xf32, #tpu.memory_space<vmem>>, vector<1x2x32xf32>
    %426 = vector.shape_cast %425 : vector<1x2x32xf32> to vector<2x32xf32>
    %427 = vector.shape_cast %424 : vector<2x32xf32> to vector<1x2x32xf32>
    tpu.vector_store %arg13[%c2_364, %c0_365, %c32_366], %427 {strides = array<i32>} : memref<6x2x192xf32, #tpu.memory_space<vmem>>, vector<1x2x32xf32>,
    %428 = vector.extract_strided_slice %407 {offsets = [10, 0], sizes = [2, 32], strides = [1, 1]} : vector<32x32xf32> to vector<2x32xf32>
    %c2_367 = arith.constant 2 : index
    %c0_368 = arith.constant 0 : index
    %c64_369 = arith.constant 64 : index
    %429 = vector.load %arg13[%c2_367, %c0_368, %c64_369] : memref<6x2x192xf32, #tpu.memory_space<vmem>>, vector<1x2x32xf32>
    %430 = vector.shape_cast %429 : vector<1x2x32xf32> to vector<2x32xf32>
    %431 = vector.shape_cast %428 : vector<2x32xf32> to vector<1x2x32xf32>
    tpu.vector_store %arg13[%c2_367, %c0_368, %c64_369], %431 {strides = array<i32>} : memref<6x2x192xf32, #tpu.memory_space<vmem>>, vector<1x2x32xf32>,
    %432 = vector.extract_strided_slice %407 {offsets = [12, 0], sizes = [2, 32], strides = [1, 1]} : vector<32x32xf32> to vector<2x32xf32>
    %c2_370 = arith.constant 2 : index
    %c0_371 = arith.constant 0 : index
    %c96_372 = arith.constant 96 : index
    %433 = vector.load %arg13[%c2_370, %c0_371, %c96_372] : memref<6x2x192xf32, #tpu.memory_space<vmem>>, vector<1x2x32xf32>
    %434 = vector.shape_cast %433 : vector<1x2x32xf32> to vector<2x32xf32>
    %435 = vector.shape_cast %432 : vector<2x32xf32> to vector<1x2x32xf32>
    tpu.vector_store %arg13[%c2_370, %c0_371, %c96_372], %435 {strides = array<i32>} : memref<6x2x192xf32, #tpu.memory_space<vmem>>, vector<1x2x32xf32>,
    %436 = vector.extract_strided_slice %407 {offsets = [14, 0], sizes = [2, 32], strides = [1, 1]} : vector<32x32xf32> to vector<2x32xf32>
    %c2_373 = arith.constant 2 : index
    %c0_374 = arith.constant 0 : index
    %c128_375 = arith.constant 128 : index
    %437 = vector.load %arg13[%c2_373, %c0_374, %c128_375] : memref<6x2x192xf32, #tpu.memory_space<vmem>>, vector<1x2x32xf32>
    %438 = vector.shape_cast %437 : vector<1x2x32xf32> to vector<2x32xf32>
    %439 = vector.shape_cast %436 : vector<2x32xf32> to vector<1x2x32xf32>
    tpu.vector_store %arg13[%c2_373, %c0_374, %c128_375], %439 {strides = array<i32>} : memref<6x2x192xf32, #tpu.memory_space<vmem>>, vector<1x2x32xf32>,
    %440 = vector.extract_strided_slice %407 {offsets = [16, 0], sizes = [2, 32], strides = [1, 1]} : vector<32x32xf32> to vector<2x32xf32>
    %c3_376 = arith.constant 3 : index
    %c0_377 = arith.constant 0 : index
    %c32_378 = arith.constant 32 : index
    %441 = vector.load %arg13[%c3_376, %c0_377, %c32_378] : memref<6x2x192xf32, #tpu.memory_space<vmem>>, vector<1x2x32xf32>
    %442 = vector.shape_cast %441 : vector<1x2x32xf32> to vector<2x32xf32>
    %443 = vector.shape_cast %440 : vector<2x32xf32> to vector<1x2x32xf32>
    tpu.vector_store %arg13[%c3_376, %c0_377, %c32_378], %443 {strides = array<i32>} : memref<6x2x192xf32, #tpu.memory_space<vmem>>, vector<1x2x32xf32>,
    %444 = vector.extract_strided_slice %407 {offsets = [18, 0], sizes = [2, 32], strides = [1, 1]} : vector<32x32xf32> to vector<2x32xf32>
    %c3_379 = arith.constant 3 : index
    %c0_380 = arith.constant 0 : index
    %c64_381 = arith.constant 64 : index
    %445 = vector.load %arg13[%c3_379, %c0_380, %c64_381] : memref<6x2x192xf32, #tpu.memory_space<vmem>>, vector<1x2x32xf32>
    %446 = vector.shape_cast %445 : vector<1x2x32xf32> to vector<2x32xf32>
    %447 = vector.shape_cast %444 : vector<2x32xf32> to vector<1x2x32xf32>
    tpu.vector_store %arg13[%c3_379, %c0_380, %c64_381], %447 {strides = array<i32>} : memref<6x2x192xf32, #tpu.memory_space<vmem>>, vector<1x2x32xf32>,
    %448 = vector.extract_strided_slice %407 {offsets = [20, 0], sizes = [2, 32], strides = [1, 1]} : vector<32x32xf32> to vector<2x32xf32>
    %c3_382 = arith.constant 3 : index
    %c0_383 = arith.constant 0 : index
    %c96_384 = arith.constant 96 : index
    %449 = vector.load %arg13[%c3_382, %c0_383, %c96_384] : memref<6x2x192xf32, #tpu.memory_space<vmem>>, vector<1x2x32xf32>
    %450 = vector.shape_cast %449 : vector<1x2x32xf32> to vector<2x32xf32>
    %451 = vector.shape_cast %448 : vector<2x32xf32> to vector<1x2x32xf32>
    tpu.vector_store %arg13[%c3_382, %c0_383, %c96_384], %451 {strides = array<i32>} : memref<6x2x192xf32, #tpu.memory_space<vmem>>, vector<1x2x32xf32>,
    %452 = vector.extract_strided_slice %407 {offsets = [22, 0], sizes = [2, 32], strides = [1, 1]} : vector<32x32xf32> to vector<2x32xf32>
    %c3_385 = arith.constant 3 : index
    %c0_386 = arith.constant 0 : index
    %c128_387 = arith.constant 128 : index
    %453 = vector.load %arg13[%c3_385, %c0_386, %c128_387] : memref<6x2x192xf32, #tpu.memory_space<vmem>>, vector<1x2x32xf32>
    %454 = vector.shape_cast %453 : vector<1x2x32xf32> to vector<2x32xf32>
    %455 = vector.shape_cast %452 : vector<2x32xf32> to vector<1x2x32xf32>
    tpu.vector_store %arg13[%c3_385, %c0_386, %c128_387], %455 {strides = array<i32>} : memref<6x2x192xf32, #tpu.memory_space<vmem>>, vector<1x2x32xf32>,
    %456 = vector.extract_strided_slice %407 {offsets = [24, 0], sizes = [2, 32], strides = [1, 1]} : vector<32x32xf32> to vector<2x32xf32>
    %c4_388 = arith.constant 4 : index
    %c0_389 = arith.constant 0 : index
    %c32_390 = arith.constant 32 : index
    %457 = vector.load %arg13[%c4_388, %c0_389, %c32_390] : memref<6x2x192xf32, #tpu.memory_space<vmem>>, vector<1x2x32xf32>
    %458 = vector.shape_cast %457 : vector<1x2x32xf32> to vector<2x32xf32>
    %459 = vector.shape_cast %456 : vector<2x32xf32> to vector<1x2x32xf32>
    tpu.vector_store %arg13[%c4_388, %c0_389, %c32_390], %459 {strides = array<i32>} : memref<6x2x192xf32, #tpu.memory_space<vmem>>, vector<1x2x32xf32>,
    %460 = vector.extract_strided_slice %407 {offsets = [26, 0], sizes = [2, 32], strides = [1, 1]} : vector<32x32xf32> to vector<2x32xf32>
    %c4_391 = arith.constant 4 : index
    %c0_392 = arith.constant 0 : index
    %c64_393 = arith.constant 64 : index
    %461 = vector.load %arg13[%c4_391, %c0_392, %c64_393] : memref<6x2x192xf32, #tpu.memory_space<vmem>>, vector<1x2x32xf32>
    %462 = vector.shape_cast %461 : vector<1x2x32xf32> to vector<2x32xf32>
    %463 = vector.shape_cast %460 : vector<2x32xf32> to vector<1x2x32xf32>
    tpu.vector_store %arg13[%c4_391, %c0_392, %c64_393], %463 {strides = array<i32>} : memref<6x2x192xf32, #tpu.memory_space<vmem>>, vector<1x2x32xf32>,
    %464 = vector.extract_strided_slice %407 {offsets = [28, 0], sizes = [2, 32], strides = [1, 1]} : vector<32x32xf32> to vector<2x32xf32>
    %c4_394 = arith.constant 4 : index
    %c0_395 = arith.constant 0 : index
    %c96_396 = arith.constant 96 : index
    %465 = vector.load %arg13[%c4_394, %c0_395, %c96_396] : memref<6x2x192xf32, #tpu.memory_space<vmem>>, vector<1x2x32xf32>
    %466 = vector.shape_cast %465 : vector<1x2x32xf32> to vector<2x32xf32>
    %467 = vector.shape_cast %464 : vector<2x32xf32> to vector<1x2x32xf32>
    tpu.vector_store %arg13[%c4_394, %c0_395, %c96_396], %467 {strides = array<i32>} : memref<6x2x192xf32, #tpu.memory_space<vmem>>, vector<1x2x32xf32>,
    %468 = vector.extract_strided_slice %407 {offsets = [30, 0], sizes = [2, 32], strides = [1, 1]} : vector<32x32xf32> to vector<2x32xf32>
    %c4_397 = arith.constant 4 : index
    %c0_398 = arith.constant 0 : index
    %c128_399 = arith.constant 128 : index
    %469 = vector.load %arg13[%c4_397, %c0_398, %c128_399] : memref<6x2x192xf32, #tpu.memory_space<vmem>>, vector<1x2x32xf32>
    %470 = vector.shape_cast %469 : vector<1x2x32xf32> to vector<2x32xf32>
    %471 = vector.shape_cast %468 : vector<2x32xf32> to vector<1x2x32xf32>
    tpu.vector_store %arg13[%c4_397, %c0_398, %c128_399], %471 {strides = array<i32>} : memref<6x2x192xf32, #tpu.memory_space<vmem>>, vector<1x2x32xf32>,
    %c0_400 = arith.constant 0 : index
    %c0_401 = arith.constant 0 : index
    %c0_402 = arith.constant 0 : index
    %472 = vector.load %arg13[%c0_400, %c0_401, %c0_402] : memref<6x2x192xf32, #tpu.memory_space<vmem>>, vector<1x2x96xf32>
    %473 = vector.shape_cast %472 : vector<1x2x96xf32> to vector<2x96xf32>
    %c1_403 = arith.constant 1 : index
    %c0_404 = arith.constant 0 : index
    %c0_405 = arith.constant 0 : index
    %474 = vector.load %arg13[%c1_403, %c0_404, %c0_405] : memref<6x2x192xf32, #tpu.memory_space<vmem>>, vector<1x2x96xf32>
    %475 = vector.shape_cast %474 : vector<1x2x96xf32> to vector<2x96xf32>
    %c2_406 = arith.constant 2 : index
    %c0_407 = arith.constant 0 : index
    %c0_408 = arith.constant 0 : index
    %476 = vector.load %arg13[%c2_406, %c0_407, %c0_408] : memref<6x2x192xf32, #tpu.memory_space<vmem>>, vector<1x2x96xf32>
    %477 = vector.shape_cast %476 : vector<1x2x96xf32> to vector<2x96xf32>
    %478 = tpu.concatenate %473, %475, %477 in 1 : vector<2x96xf32>, vector<2x96xf32>, vector<2x96xf32> -> vector<2x288xf32>
    %c0_409 = arith.constant 0 : index
    %c0_410 = arith.constant 0 : index
    %c64_411 = arith.constant 64 : index
    %479 = vector.load %arg13[%c0_409, %c0_410, %c64_411] : memref<6x2x192xf32, #tpu.memory_space<vmem>>, vector<1x2x96xf32>
    %480 = vector.shape_cast %479 : vector<1x2x96xf32> to vector<2x96xf32>
    %c1_412 = arith.constant 1 : index
    %c0_413 = arith.constant 0 : index
    %c64_414 = arith.constant 64 : index
    %481 = vector.load %arg13[%c1_412, %c0_413, %c64_414] : memref<6x2x192xf32, #tpu.memory_space<vmem>>, vector<1x2x96xf32>
    %482 = vector.shape_cast %481 : vector<1x2x96xf32> to vector<2x96xf32>
    %c2_415 = arith.constant 2 : index
    %c0_416 = arith.constant 0 : index
    %c64_417 = arith.constant 64 : index
    %483 = vector.load %arg13[%c2_415, %c0_416, %c64_417] : memref<6x2x192xf32, #tpu.memory_space<vmem>>, vector<1x2x96xf32>
    %484 = vector.shape_cast %483 : vector<1x2x96xf32> to vector<2x96xf32>
    %485 = tpu.concatenate %480, %482, %484 in 1 : vector<2x96xf32>, vector<2x96xf32>, vector<2x96xf32> -> vector<2x288xf32>
    %c2_418 = arith.constant 2 : index
    %c0_419 = arith.constant 0 : index
    %c0_420 = arith.constant 0 : index
    %486 = vector.load %arg13[%c2_418, %c0_419, %c0_420] : memref<6x2x192xf32, #tpu.memory_space<vmem>>, vector<1x2x96xf32>
    %487 = vector.shape_cast %486 : vector<1x2x96xf32> to vector<2x96xf32>
    %c3_421 = arith.constant 3 : index
    %c0_422 = arith.constant 0 : index
    %c0_423 = arith.constant 0 : index
    %488 = vector.load %arg13[%c3_421, %c0_422, %c0_423] : memref<6x2x192xf32, #tpu.memory_space<vmem>>, vector<1x2x96xf32>
    %489 = vector.shape_cast %488 : vector<1x2x96xf32> to vector<2x96xf32>
    %c4_424 = arith.constant 4 : index
    %c0_425 = arith.constant 0 : index
    %c0_426 = arith.constant 0 : index
    %490 = vector.load %arg13[%c4_424, %c0_425, %c0_426] : memref<6x2x192xf32, #tpu.memory_space<vmem>>, vector<1x2x96xf32>
    %491 = vector.shape_cast %490 : vector<1x2x96xf32> to vector<2x96xf32>
    %492 = tpu.concatenate %487, %489, %491 in 1 : vector<2x96xf32>, vector<2x96xf32>, vector<2x96xf32> -> vector<2x288xf32>
    %c2_427 = arith.constant 2 : index
    %c0_428 = arith.constant 0 : index
    %c64_429 = arith.constant 64 : index
    %493 = vector.load %arg13[%c2_427, %c0_428, %c64_429] : memref<6x2x192xf32, #tpu.memory_space<vmem>>, vector<1x2x96xf32>
    %494 = vector.shape_cast %493 : vector<1x2x96xf32> to vector<2x96xf32>
    %c3_430 = arith.constant 3 : index
    %c0_431 = arith.constant 0 : index
    %c64_432 = arith.constant 64 : index
    %495 = vector.load %arg13[%c3_430, %c0_431, %c64_432] : memref<6x2x192xf32, #tpu.memory_space<vmem>>, vector<1x2x96xf32>
    %496 = vector.shape_cast %495 : vector<1x2x96xf32> to vector<2x96xf32>
    %c4_433 = arith.constant 4 : index
    %c0_434 = arith.constant 0 : index
    %c64_435 = arith.constant 64 : index
    %497 = vector.load %arg13[%c4_433, %c0_434, %c64_435] : memref<6x2x192xf32, #tpu.memory_space<vmem>>, vector<1x2x96xf32>
    %498 = vector.shape_cast %497 : vector<1x2x96xf32> to vector<2x96xf32>
    %499 = tpu.concatenate %494, %496, %498 in 1 : vector<2x96xf32>, vector<2x96xf32>, vector<2x96xf32> -> vector<2x288xf32>
    %500 = tpu.concatenate %478, %485, %492, %499 in 0 : vector<2x288xf32>, vector<2x288xf32>, vector<2x288xf32>, vector<2x288xf32> -> vector<8x288xf32>
    %c0_i32_436 = arith.constant 0 : i32
    %501 = tpu.memref_slice %arg17[%c0_i32_436] : memref<2x!tpu.dma_semaphore, #tpu.memory_space<semaphore_mem>> -> memref<1x!tpu.dma_semaphore, #tpu.memory_space<semaphore_mem>>
    %502 = tpu.memref_squeeze %501 : memref<1x!tpu.dma_semaphore, #tpu.memory_space<semaphore_mem>> -> memref<!tpu.dma_semaphore, #tpu.memory_space<semaphore_mem>>
    tpu.wait_dma2 semaphore(%502 : memref<!tpu.dma_semaphore, #tpu.memory_space<semaphore_mem>>) src(%arg5 : memref<288x64xbf16, #tpu.memory_space<any>>) dst(%arg15 : memref<288x64xbf16, #tpu.memory_space<vmem>>)
    %c0_437 = arith.constant 0 : index
    %c0_438 = arith.constant 0 : index
    %503 = vector.load %arg15[%c0_437, %c0_438] : memref<288x64xbf16, #tpu.memory_space<vmem>>, vector<288x64xbf16>
    %504 = arith.extf %503 : vector<288x64xbf16> to vector<288x64xf32>
    %cst_439 = arith.constant dense<0.000000e+00> : vector<8x64xf32>
    %505 = tpu.matmul %500, %504, %cst_439 {dimension_numbers = #tpu.dot_dimension_numbers<[1], [0], [0], [1], [0, 0, 1, 1], [], []>} : vector<8x288xf32>, vector<288x64xf32>, vector<8x64xf32> -> vector<8x64xf32>
    %c0_440 = arith.constant 0 : index
    %c0_441 = arith.constant 0 : index
    %506 = vector.load %arg6[%c0_440, %c0_441] : memref<3x64xf32, #tpu.memory_space<vmem>>, vector<1x64xf32>
    %507 = vector.broadcast %506 : vector<1x64xf32> to vector<8x64xf32>
    %508 = arith.addf %505, %507 : vector<8x64xf32>
    %cst_442 = arith.constant 2.000000e-01 : f32
    %509 = vector.broadcast %cst_442 : f32 to vector<8x64xf32>
    %510 = arith.mulf %509, %508 : vector<8x64xf32>
    %511 = arith.maximumf %508, %510 : vector<8x64xf32>
    %c1_443 = arith.constant 1 : index
    %c0_444 = arith.constant 0 : index
    %512 = vector.load %arg6[%c1_443, %c0_444] : memref<3x64xf32, #tpu.memory_space<vmem>>, vector<1x64xf32>
    %513 = vector.broadcast %512 : vector<1x64xf32> to vector<8x64xf32>
    %514 = arith.mulf %511, %513 : vector<8x64xf32>
    %c2_445 = arith.constant 2 : index
    %c0_446 = arith.constant 0 : index
    %515 = vector.load %arg6[%c2_445, %c0_446] : memref<3x64xf32, #tpu.memory_space<vmem>>, vector<1x64xf32>
    %516 = vector.broadcast %515 : vector<1x64xf32> to vector<8x64xf32>
    %517 = arith.addf %514, %516 : vector<8x64xf32>
    %518 = vector.extract_strided_slice %517 {offsets = [0, 0], sizes = [2, 64], strides = [1, 1]} : vector<8x64xf32> to vector<2x64xf32>
    %c1_447 = arith.constant 1 : index
    %c0_448 = arith.constant 0 : index
    %c64_449 = arith.constant 64 : index
    %519 = vector.load %arg14[%c1_447, %c0_448, %c64_449] : memref<4x2x256xf32, #tpu.memory_space<vmem>>, vector<1x2x64xf32>
    %520 = vector.shape_cast %519 : vector<1x2x64xf32> to vector<2x64xf32>
    %521 = vector.shape_cast %518 : vector<2x64xf32> to vector<1x2x64xf32>
    tpu.vector_store %arg14[%c1_447, %c0_448, %c64_449], %521 {strides = array<i32>} : memref<4x2x256xf32, #tpu.memory_space<vmem>>, vector<1x2x64xf32>,
    %522 = vector.extract_strided_slice %517 {offsets = [2, 0], sizes = [2, 64], strides = [1, 1]} : vector<8x64xf32> to vector<2x64xf32>
    %c1_450 = arith.constant 1 : index
    %c0_451 = arith.constant 0 : index
    %c128_452 = arith.constant 128 : index
    %523 = vector.load %arg14[%c1_450, %c0_451, %c128_452] : memref<4x2x256xf32, #tpu.memory_space<vmem>>, vector<1x2x64xf32>
    %524 = vector.shape_cast %523 : vector<1x2x64xf32> to vector<2x64xf32>
    %525 = vector.shape_cast %522 : vector<2x64xf32> to vector<1x2x64xf32>
    tpu.vector_store %arg14[%c1_450, %c0_451, %c128_452], %525 {strides = array<i32>} : memref<4x2x256xf32, #tpu.memory_space<vmem>>, vector<1x2x64xf32>,
    %526 = vector.extract_strided_slice %517 {offsets = [4, 0], sizes = [2, 64], strides = [1, 1]} : vector<8x64xf32> to vector<2x64xf32>
    %c2_453 = arith.constant 2 : index
    %c0_454 = arith.constant 0 : index
    %c64_455 = arith.constant 64 : index
    %527 = vector.load %arg14[%c2_453, %c0_454, %c64_455] : memref<4x2x256xf32, #tpu.memory_space<vmem>>, vector<1x2x64xf32>
    %528 = vector.shape_cast %527 : vector<1x2x64xf32> to vector<2x64xf32>
    %529 = vector.shape_cast %526 : vector<2x64xf32> to vector<1x2x64xf32>
    tpu.vector_store %arg14[%c2_453, %c0_454, %c64_455], %529 {strides = array<i32>} : memref<4x2x256xf32, #tpu.memory_space<vmem>>, vector<1x2x64xf32>,
    %530 = vector.extract_strided_slice %517 {offsets = [6, 0], sizes = [2, 64], strides = [1, 1]} : vector<8x64xf32> to vector<2x64xf32>
    %c2_456 = arith.constant 2 : index
    %c0_457 = arith.constant 0 : index
    %c128_458 = arith.constant 128 : index
    %531 = vector.load %arg14[%c2_456, %c0_457, %c128_458] : memref<4x2x256xf32, #tpu.memory_space<vmem>>, vector<1x2x64xf32>
    %532 = vector.shape_cast %531 : vector<1x2x64xf32> to vector<2x64xf32>
    %533 = vector.shape_cast %530 : vector<2x64xf32> to vector<1x2x64xf32>
    tpu.vector_store %arg14[%c2_456, %c0_457, %c128_458], %533 {strides = array<i32>} : memref<4x2x256xf32, #tpu.memory_space<vmem>>, vector<1x2x64xf32>,
    %c0_459 = arith.constant 0 : index
    %c0_460 = arith.constant 0 : index
    %c0_461 = arith.constant 0 : index
    %534 = vector.load %arg14[%c0_459, %c0_460, %c0_461] : memref<4x2x256xf32, #tpu.memory_space<vmem>>, vector<1x2x192xf32>
    %535 = vector.shape_cast %534 : vector<1x2x192xf32> to vector<2x192xf32>
    %c1_462 = arith.constant 1 : index
    %c0_463 = arith.constant 0 : index
    %c0_464 = arith.constant 0 : index
    %536 = vector.load %arg14[%c1_462, %c0_463, %c0_464] : memref<4x2x256xf32, #tpu.memory_space<vmem>>, vector<1x2x192xf32>
    %537 = vector.shape_cast %536 : vector<1x2x192xf32> to vector<2x192xf32>
    %c2_465 = arith.constant 2 : index
    %c0_466 = arith.constant 0 : index
    %c0_467 = arith.constant 0 : index
    %538 = vector.load %arg14[%c2_465, %c0_466, %c0_467] : memref<4x2x256xf32, #tpu.memory_space<vmem>>, vector<1x2x192xf32>
    %539 = vector.shape_cast %538 : vector<1x2x192xf32> to vector<2x192xf32>
    %540 = tpu.concatenate %535, %537, %539 in 1 : vector<2x192xf32>, vector<2x192xf32>, vector<2x192xf32> -> vector<2x576xf32>
    %c1_i32_468 = arith.constant 1 : i32
    %541 = tpu.memref_slice %arg17[%c1_i32_468] : memref<2x!tpu.dma_semaphore, #tpu.memory_space<semaphore_mem>> -> memref<1x!tpu.dma_semaphore, #tpu.memory_space<semaphore_mem>>
    %542 = tpu.memref_squeeze %541 : memref<1x!tpu.dma_semaphore, #tpu.memory_space<semaphore_mem>> -> memref<!tpu.dma_semaphore, #tpu.memory_space<semaphore_mem>>
    tpu.wait_dma2 semaphore(%542 : memref<!tpu.dma_semaphore, #tpu.memory_space<semaphore_mem>>) src(%arg7 : memref<576x128xbf16, #tpu.memory_space<any>>) dst(%arg16 : memref<576x128xbf16, #tpu.memory_space<vmem>>)
    %c0_469 = arith.constant 0 : index
    %c0_470 = arith.constant 0 : index
    %543 = vector.load %arg16[%c0_469, %c0_470] : memref<576x128xbf16, #tpu.memory_space<vmem>>, vector<576x128xbf16>
    %544 = arith.extf %543 : vector<576x128xbf16> to vector<576x128xf32>
    %cst_471 = arith.constant dense<0.000000e+00> : vector<2x128xf32>
    %545 = tpu.matmul %540, %544, %cst_471 {dimension_numbers = #tpu.dot_dimension_numbers<[1], [0], [0], [1], [0, 0, 1, 1], [], []>} : vector<2x576xf32>, vector<576x128xf32>, vector<2x128xf32> -> vector<2x128xf32>
    %c0_472 = arith.constant 0 : index
    %c0_473 = arith.constant 0 : index
    %546 = vector.load %arg8[%c0_472, %c0_473] : memref<3x128xf32, #tpu.memory_space<vmem>>, vector<1x128xf32>
    %547 = vector.broadcast %546 : vector<1x128xf32> to vector<2x128xf32>
    %548 = arith.addf %545, %547 : vector<2x128xf32>
    %cst_474 = arith.constant 2.000000e-01 : f32
    %549 = vector.broadcast %cst_474 : f32 to vector<2x128xf32>
    %550 = arith.mulf %549, %548 : vector<2x128xf32>
    %551 = arith.maximumf %548, %550 : vector<2x128xf32>
    %c1_475 = arith.constant 1 : index
    %c0_476 = arith.constant 0 : index
    %552 = vector.load %arg8[%c1_475, %c0_476] : memref<3x128xf32, #tpu.memory_space<vmem>>, vector<1x128xf32>
    %553 = vector.broadcast %552 : vector<1x128xf32> to vector<2x128xf32>
    %554 = arith.mulf %551, %553 : vector<2x128xf32>
    %c2_477 = arith.constant 2 : index
    %c0_478 = arith.constant 0 : index
    %555 = vector.load %arg8[%c2_477, %c0_478] : memref<3x128xf32, #tpu.memory_space<vmem>>, vector<1x128xf32>
    %556 = vector.broadcast %555 : vector<1x128xf32> to vector<2x128xf32>
    %557 = arith.addf %554, %556 : vector<2x128xf32>
    %c0_479 = arith.constant 0 : index
    %c0_480 = arith.constant 0 : index
    %558 = vector.load %arg10[%c0_479, %c0_480] : memref<1x11xf32, #tpu.memory_space<vmem>>, vector<1x11xf32>
    %c0_481 = arith.constant 0 : index
    %c0_482 = arith.constant 0 : index
    %c0_483 = arith.constant 0 : index
    %559 = vector.load %arg9[%c0_481, %c0_482, %c0_483] : memref<1x128x11xf32, #tpu.memory_space<vmem>>, vector<1x128x11xf32>
    %560 = vector.shape_cast %559 : vector<1x128x11xf32> to vector<128x11xf32>
    %cst_484 = arith.constant dense<0.000000e+00> : vector<2x11xf32>
    %561 = tpu.matmul %557, %560, %cst_484 {dimension_numbers = #tpu.dot_dimension_numbers<[1], [0], [0], [1], [0, 0, 1, 1], [], []>} : vector<2x128xf32>, vector<128x11xf32>, vector<2x11xf32> -> vector<2x11xf32>
    %562 = vector.broadcast %558 : vector<1x11xf32> to vector<2x11xf32>
    %563 = arith.addf %562, %561 : vector<2x11xf32>
    %564 = vector.extract_strided_slice %563 {offsets = [0, 0], sizes = [2, 1], strides = [1, 1]} : vector<2x11xf32> to vector<2x1xf32>
    %cst_485 = arith.constant 0.000000e+00 : f32
    %565 = vector.broadcast %cst_485 : f32 to vector<2x1xf32>
    %566 = arith.subf %565, %564 : vector<2x1xf32>
    %567 = math.exp %566 : vector<2x1xf32>
    %cst_486 = arith.constant 1.000000e+00 : f32
    %568 = vector.broadcast %cst_486 : f32 to vector<2x1xf32>
    %569 = arith.addf %568, %567 : vector<2x1xf32>
    %cst_487 = arith.constant 1.000000e+00 : f32
    %570 = vector.broadcast %cst_487 : f32 to vector<2x1xf32>
    %571 = arith.divf %570, %569 : vector<2x1xf32>
    %572 = vector.extract_strided_slice %563 {offsets = [0, 1], sizes = [2, 10], strides = [1, 1]} : vector<2x11xf32> to vector<2x10xf32>
    %cst_488 = arith.constant dense<0xFF800000> : vector<2xf32>
    %573 = vector.multi_reduction <maximumf>, %572, %cst_488 [1] : vector<2x10xf32> to vector<2xf32>
    %574 = vector.shape_cast %573 : vector<2xf32> to vector<2x1xf32>
    %575 = vector.broadcast %574 : vector<2x1xf32> to vector<2x10xf32>
    %576 = arith.subf %572, %575 : vector<2x10xf32>
    %577 = math.exp %576 : vector<2x10xf32>
    %cst_489 = arith.constant dense<0.000000e+00> : vector<2xf32>
    %578 = vector.multi_reduction <add>, %577, %cst_489 [1] : vector<2x10xf32> to vector<2xf32>
    %579 = vector.shape_cast %578 : vector<2xf32> to vector<2x1xf32>
    %580 = vector.broadcast %579 : vector<2x1xf32> to vector<2x10xf32>
    %581 = arith.divf %577, %580 : vector<2x10xf32>
    %582 = tpu.concatenate %571, %581 in 1 : vector<2x1xf32>, vector<2x10xf32> -> vector<2x11xf32>
    %cst_490 = arith.constant 0.000000e+00 : f32
    %583 = vector.broadcast %cst_490 : f32 to vector<2x117xf32>
    %584 = tpu.concatenate %582, %583 in 1 : vector<2x11xf32>, vector<2x117xf32> -> vector<2x128xf32>
    %c0_491 = arith.constant 0 : index
    %c0_492 = arith.constant 0 : index
    %585 = vector.load %arg11[%c0_491, %c0_492] : memref<2x128xf32, #tpu.memory_space<vmem>>, vector<2x128xf32>
    tpu.vector_store %arg11[%c0_491, %c0_492], %584 {strides = array<i32>} : memref<2x128xf32, #tpu.memory_space<vmem>>, vector<2x128xf32>,
    return
  }
}

</mosaic_0001>

<llo_original>
// kernel: discriminator_forward.1
$region0: #{discriminator_forward.1}
  #allocation0 [shape = 'u32[]', space=smem, size = 0x4, offset = 0x4, fixed_abs, tag = 'smem constant byte address 0x4 - core index']
  #allocation1 [shape = 'u32[144,128]{1,0:T(1,128)}', space=vmem, size = 0x12000, scoped, tag = 'internal scratch']
  #allocation2 [shape = 'f32[10,2,160]{2,1,0:T(2,128)}', space=vmem, size = 0x5000, scoped, tag = 'scratch operand']
  #allocation3 [shape = 'f32[6,2,192]{2,1,0:T(2,128)}', space=vmem, size = 0x3000, scoped, tag = 'scratch operand']
  #allocation4 [shape = 'f32[4,2,256]{2,1,0:T(2,128)}', space=vmem, size = 0x2000, scoped, tag = 'scratch operand']
  #allocation5 [shape = 'bf16[288,64]{1,0:T(16,128)(2,1)}', space=vmem, size = 0x12000, scoped, tag = 'scratch operand']
  #allocation6 [shape = 'bf16[576,128]{1,0:T(16,128)(2,1)}', space=vmem, size = 0x24000, scoped, tag = 'scratch operand']
  #allocation7 [shape = 's32[2]{0}', space=sflag, size = 0x8, scoped, tag = 'scratch operand']
  #allocation8 [shape = 's32[]', space=sflag, size = 0x4, offset = 0, fixed_abs, tag = 'sflag constant byte address 0x0 - dummy sync flag']
  #allocation9 [shape = 's32[]', space=sflag, size = 0x4, offset = 0, fixed_abs, tag = 'sflag constant byte address 0x0 - dummy sync flag']
  %s0 = inlined_call_operand.vmem [shape: f32[128,36], index: 0, kind: input, shape index: {}]
  %s1 = inlined_call_operand.vmem [shape: f32[36,16], index: 1, kind: input, shape index: {}]
  %s2 = inlined_call_operand.vmem [shape: f32[3,16], index: 2, kind: input, shape index: {}]
  %s3 = inlined_call_operand.vmem [shape: f32[144,32], index: 3, kind: input, shape index: {}]
  %s4 = inlined_call_operand.vmem [shape: f32[3,32], index: 4, kind: input, shape index: {}]
  %s5 = inlined_call_operand.vmem [shape: bf16[288,64], index: 5, kind: input, shape index: {}]
  %s6 = inlined_call_operand.vmem [shape: f32[3,64], index: 6, kind: input, shape index: {}]
  %s7 = inlined_call_operand.vmem [shape: bf16[576,128], index: 7, kind: input, shape index: {}]
  %s8 = inlined_call_operand.vmem [shape: f32[3,128], index: 8, kind: input, shape index: {}]
  %s9 = inlined_call_operand.vmem [shape: f32[1,128,11], index: 9, kind: input, shape index: {}]
  %s10 = inlined_call_operand.vmem [shape: f32[1,11], index: 10, kind: input, shape index: {}]
  %s11 = inlined_call_operand.vmem [shape: f32[2,128], index: 11, kind: output, shape index: {}]
  %s12 = sld [smem:[#allocation0]]
  $region114: #{discriminator_forward.1} parent=0
    _
  %s14 = ssub.s32 1, %s12
  %s15 = scalar_select 0, %s14, %s12
  // Predicated region
  $region2: #{discriminator_forward.1} parent=0 // pred_check
    _
  $region3: #{discriminator_forward.1} parent=0 // pred_check_branch
    %17 = sbr.rel (0) target = $region5
  $region4: #{discriminator_forward.1} parent=0 // pred_region
    _
  $region5: #{discriminator_forward.1} parent=0 // pred_fallthru
    _
  // Predicated region
  $region6: #{discriminator_forward.1} parent=0 // pred_check
    _
  $region7: #{discriminator_forward.1} parent=0 // pred_check_branch
    %19 = sbr.rel (0) target = $region9
  $region8: #{discriminator_forward.1} parent=0 // pred_region
    _
  $region9: #{discriminator_forward.1} parent=0 // pred_fallthru
    _
  // Predicated region
  $region10: #{discriminator_forward.1} parent=0 // pred_check
    _
  $region11: #{discriminator_forward.1} parent=0 // pred_check_branch
    %21 = sbr.rel (0) target = $region13
  $region12: #{discriminator_forward.1} parent=0 // pred_region
    _
  $region13: #{discriminator_forward.1} parent=0 // pred_fallthru
    _
  // Predicated region
  $region14: #{discriminator_forward.1} parent=0 // pred_check
    _
  $region15: #{discriminator_forward.1} parent=0 // pred_check_branch
    %23 = sbr.rel (0) target = $region17
  $region16: #{discriminator_forward.1} parent=0 // pred_region
    _
  $region17: #{discriminator_forward.1} parent=0 // pred_fallthru
    _
  // Predicated region
  $region18: #{discriminator_forward.1} parent=0 // pred_check
    _
  $region19: #{discriminator_forward.1} parent=0 // pred_check_branch
    %25 = sbr.rel (0) target = $region21
  $region20: #{discriminator_forward.1} parent=0 // pred_region
    _
  $region21: #{discriminator_forward.1} parent=0 // pred_fallthru
    _
  // Predicated region
  $region22: #{discriminator_forward.1} parent=0 // pred_check
    _
  $region23: #{discriminator_forward.1} parent=0 // pred_check_branch
    %27 = sbr.rel (0) target = $region25
  $region24: #{discriminator_forward.1} parent=0 // pred_region
    _
  $region25: #{discriminator_forward.1} parent=0 // pred_fallthru
    _
  // Predicated region
  $region26: #{discriminator_forward.1} parent=0 // pred_check
    _
  $region27: #{discriminator_forward.1} parent=0 // pred_check_branch
    %29 = sbr.rel (0) target = $region29
  $region28: #{discriminator_forward.1} parent=0 // pred_region
    _
  $region29: #{discriminator_forward.1} parent=0 // pred_fallthru
    _
  // Predicated region
  $region30: #{discriminator_forward.1} parent=0 // pred_check
    _
  $region31: #{discriminator_forward.1} parent=0 // pred_check_branch
    %31 = sbr.rel (0) target = $region33
  $region32: #{discriminator_forward.1} parent=0 // pred_region
    _
  $region33: #{discriminator_forward.1} parent=0 // pred_fallthru
    _
  // Predicated region
  $region34: #{discriminator_forward.1} parent=0 // pred_check
    _
  $region35: #{discriminator_forward.1} parent=0 // pred_check_branch
    %33 = sbr.rel (0) target = $region37
  $region36: #{discriminator_forward.1} parent=0 // pred_region
    _
  $region37: #{discriminator_forward.1} parent=0 // pred_fallthru
    _
  %p35 = scmp.lt.u32.totalorder 144, 8
  %p36 = pneg %p35
  // Predicated region
  $region38: #{discriminator_forward.1} parent=0 // pred_check
    _
  $region39: #{discriminator_forward.1} parent=0 // pred_check_branch
    %38 = sbr.rel (%p35) target = $region41
  $region40: #{discriminator_forward.1} parent=0 // pred_region
    %s53 = sand.u32 144, 7
    %p54 = scmp.eq.s32.totalorder %s53, 0
    // Predicated region
    $region53: #{discriminator_forward.1} parent=40 // pred_check
      %p55 = pneg %p54
    $region54: #{discriminator_forward.1} parent=40 // pred_check_branch
      %57 = sbr.rel (%p55) target = $region56
    $region55: #{discriminator_forward.1} parent=40 // pred_region
      loop: start=0, step=1, limit=1
      $region57: #{discriminator_forward.1} parent=55 // loop_pre_header
        _
      $region58: #{discriminator_forward.1} parent=55 // loop_header
        %s59 = sphi 0, %s63
        %p60 = scmp.ge.s32.totalorder %s59, 1
        %s64 = sphi %s5, %s5
        %s65 = sphi [#allocation5], [#allocation5]
      $region59: #{discriminator_forward.1} parent=55 // loop_header_branch
        %62 = sbr.rel (%p60) target = $region63
      $region60: #{discriminator_forward.1} parent=55 // loop_body
        %v66 = vld [vmem:[%s64] sm:$0xff]
        %67 = vst [vmem:[%s65] sm:$0xff] %v66
        %v68 = vld [vmem:[%s64 + $0x8] sm:$0xff]
        %69 = vst [vmem:[%s65 + $0x8] sm:$0xff] %v68
        %v70 = vld [vmem:[%s64 + $0x10] sm:$0xff]
        %71 = vst [vmem:[%s65 + $0x10] sm:$0xff] %v70
        %v72 = vld [vmem:[%s64 + $0x18] sm:$0xff]
        %73 = vst [vmem:[%s65 + $0x18] sm:$0xff] %v72
        %v74 = vld [vmem:[%s64 + $0x20] sm:$0xff]
        %75 = vst [vmem:[%s65 + $0x20] sm:$0xff] %v74
        %v76 = vld [vmem:[%s64 + $0x28] sm:$0xff]
        %77 = vst [vmem:[%s65 + $0x28] sm:$0xff] %v76
        %v78 = vld [vmem:[%s64 + $0x30] sm:$0xff]
        %79 = vst [vmem:[%s65 + $0x30] sm:$0xff] %v78
        %v80 = vld [vmem:[%s64 + $0x38] sm:$0xff]
        %81 = vst [vmem:[%s65 + $0x38] sm:$0xff] %v80
        %v82 = vld [vmem:[%s64 + $0x40] sm:$0xff]
        %83 = vst [vmem:[%s65 + $0x40] sm:$0xff] %v82
        %v84 = vld [vmem:[%s64 + $0x48] sm:$0xff]
        %85 = vst [vmem:[%s65 + $0x48] sm:$0xff] %v84
        %v86 = vld [vmem:[%s64 + $0x50] sm:$0xff]
        %87 = vst [vmem:[%s65 + $0x50] sm:$0xff] %v86
        %v88 = vld [vmem:[%s64 + $0x58] sm:$0xff]
        %89 = vst [vmem:[%s65 + $0x58] sm:$0xff] %v88
        %v90 = vld [vmem:[%s64 + $0x60] sm:$0xff]
        %91 = vst [vmem:[%s65 + $0x60] sm:$0xff] %v90
        %v92 = vld [vmem:[%s64 + $0x68] sm:$0xff]
        %93 = vst [vmem:[%s65 + $0x68] sm:$0xff] %v92
        %v94 = vld [vmem:[%s64 + $0x70] sm:$0xff]
        %95 = vst [vmem:[%s65 + $0x70] sm:$0xff] %v94
        %v96 = vld [vmem:[%s64 + $0x78] sm:$0xff]
        %97 = vst [vmem:[%s65 + $0x78] sm:$0xff] %v96
        %v98 = vld [vmem:[%s64 + $0x80] sm:$0xff]
        %99 = vst [vmem:[%s65 + $0x80] sm:$0xff] %v98
        %v100 = vld [vmem:[%s64 + $0x88] sm:$0xff]
        %101 = vst [vmem:[%s65 + $0x88] sm:$0xff] %v100
      $region61: #{discriminator_forward.1} parent=55 // loop_footer
        %s63 = sadd.s32 1, %s59
      $region62: #{discriminator_forward.1} parent=55 // loop_footer_branch
        %58 = sbr.rel target = $region58
      $region63: #{discriminator_forward.1} parent=55 // loop_exit
        _
    $region56: #{discriminator_forward.1} parent=40 // pred_fallthru
      _
    %p102 = pneg %p54
    // Predicated region
    $region64: #{discriminator_forward.1} parent=40 // pred_check
      _
    $region65: #{discriminator_forward.1} parent=40 // pred_check_branch
      %104 = sbr.rel (%p54) target = $region67
    $region66: #{discriminator_forward.1} parent=40 // pred_region
      %s105 = sand.u32 144, 7
    $region67: #{discriminator_forward.1} parent=40 // pred_fallthru
      _
  $region41: #{discriminator_forward.1} parent=0 // pred_fallthru
    _
  // Predicated region
  $region42: #{discriminator_forward.1} parent=0 // pred_check
    %p39 = pneg %p35
  $region43: #{discriminator_forward.1} parent=0 // pred_check_branch
    %41 = sbr.rel (%p39) target = $region45
  $region44: #{discriminator_forward.1} parent=0 // pred_region
    %s42 = sshllo.u32 0, 144
    loop: start=0, step=1, limit=1
    $region46: #{discriminator_forward.1} parent=44 // loop_pre_header
      _
    $region47: #{discriminator_forward.1} parent=44 // loop_header
      %s44 = sphi 0, %s48
      %p45 = scmp.ge.s32.totalorder %s44, 1
      %s49 = sphi %s5, %s5
      %s50 = sphi [#allocation5], [#allocation5]
    $region48: #{discriminator_forward.1} parent=44 // loop_header_branch
      %47 = sbr.rel (%p45) target = $region52
    $region49: #{discriminator_forward.1} parent=44 // loop_body
      %v51 = vld [vmem:[%s49] sm:%s42]
      %52 = vst [vmem:[%s50] sm:%s42] %v51
    $region50: #{discriminator_forward.1} parent=44 // loop_footer
      %s48 = sadd.s32 1, %s44
    $region51: #{discriminator_forward.1} parent=44 // loop_footer_branch
      %43 = sbr.rel target = $region47
    $region52: #{discriminator_forward.1} parent=44 // loop_exit
      _
  $region45: #{discriminator_forward.1} parent=0 // pred_fallthru
    _
  // Predicated region
  $region68: #{discriminator_forward.1} parent=0 // pred_check
    _
  $region69: #{discriminator_forward.1} parent=0 // pred_check_branch
    %108 = sbr.rel (0) target = $region71
  $region70: #{discriminator_forward.1} parent=0 // pred_region
    %109 = vsyncadd [#allocation7], 2304
  $region71: #{discriminator_forward.1} parent=0 // pred_fallthru
    _
  %s110 = scalar_lea.sflag [#allocation7], 1
  %p112 = scmp.lt.u32.totalorder 288, 8
  %p113 = pneg %p112
  // Predicated region
  $region72: #{discriminator_forward.1} parent=0 // pred_check
    _
  $region73: #{discriminator_forward.1} parent=0 // pred_check_branch
    %115 = sbr.rel (%p112) target = $region75
  $region74: #{discriminator_forward.1} parent=0 // pred_region
    %s130 = sand.u32 288, 7
    %p131 = scmp.eq.s32.totalorder %s130, 0
    // Predicated region
    $region87: #{discriminator_forward.1} parent=74 // pred_check
      %p132 = pneg %p131
    $region88: #{discriminator_forward.1} parent=74 // pred_check_branch
      %134 = sbr.rel (%p132) target = $region90
    $region89: #{discriminator_forward.1} parent=74 // pred_region
      loop: start=0, step=1, limit=1
      $region91: #{discriminator_forward.1} parent=89 // loop_pre_header
        _
      $region92: #{discriminator_forward.1} parent=89 // loop_header
        %s136 = sphi 0, %s140
        %p137 = scmp.ge.s32.totalorder %s136, 1
        %s141 = sphi %s7, %s7
        %s142 = sphi [#allocation6], [#allocation6]
      $region93: #{discriminator_forward.1} parent=89 // loop_header_branch
        %139 = sbr.rel (%p137) target = $region97
      $region94: #{discriminator_forward.1} parent=89 // loop_body
        %v143 = vld [vmem:[%s141] sm:$0xff]
        %144 = vst [vmem:[%s142] sm:$0xff] %v143
        %v145 = vld [vmem:[%s141 + $0x8] sm:$0xff]
        %146 = vst [vmem:[%s142 + $0x8] sm:$0xff] %v145
        %v147 = vld [vmem:[%s141 + $0x10] sm:$0xff]
        %148 = vst [vmem:[%s142 + $0x10] sm:$0xff] %v147
        %v149 = vld [vmem:[%s141 + $0x18] sm:$0xff]
        %150 = vst [vmem:[%s142 + $0x18] sm:$0xff] %v149
        %v151 = vld [vmem:[%s141 + $0x20] sm:$0xff]
        %152 = vst [vmem:[%s142 + $0x20] sm:$0xff] %v151
        %v153 = vld [vmem:[%s141 + $0x28] sm:$0xff]
        %154 = vst [vmem:[%s142 + $0x28] sm:$0xff] %v153
        %v155 = vld [vmem:[%s141 + $0x30] sm:$0xff]
        %156 = vst [vmem:[%s142 + $0x30] sm:$0xff] %v155
        %v157 = vld [vmem:[%s141 + $0x38] sm:$0xff]
        %158 = vst [vmem:[%s142 + $0x38] sm:$0xff] %v157
        %v159 = vld [vmem:[%s141 + $0x40] sm:$0xff]
        %160 = vst [vmem:[%s142 + $0x40] sm:$0xff] %v159
        %v161 = vld [vmem:[%s141 + $0x48] sm:$0xff]
        %162 = vst [vmem:[%s142 + $0x48] sm:$0xff] %v161
        %v163 = vld [vmem:[%s141 + $0x50] sm:$0xff]
        %164 = vst [vmem:[%s142 + $0x50] sm:$0xff] %v163
        %v165 = vld [vmem:[%s141 + $0x58] sm:$0xff]
        %166 = vst [vmem:[%s142 + $0x58] sm:$0xff] %v165
        %v167 = vld [vmem:[%s141 + $0x60] sm:$0xff]
        %168 = vst [vmem:[%s142 + $0x60] sm:$0xff] %v167
        %v169 = vld [vmem:[%s141 + $0x68] sm:$0xff]
        %170 = vst [vmem:[%s142 + $0x68] sm:$0xff] %v169
        %v171 = vld [vmem:[%s141 + $0x70] sm:$0xff]
        %172 = vst [vmem:[%s142 + $0x70] sm:$0xff] %v171
        %v173 = vld [vmem:[%s141 + $0x78] sm:$0xff]
        %174 = vst [vmem:[%s142 + $0x78] sm:$0xff] %v173
        %v175 = vld [vmem:[%s141 + $0x80] sm:$0xff]
        %176 = vst [vmem:[%s142 + $0x80] sm:$0xff] %v175
        %v177 = vld [vmem:[%s141 + $0x88] sm:$0xff]
        %178 = vst [vmem:[%s142 + $0x88] sm:$0xff] %v177
        %v179 = vld [vmem:[%s141 + $0x90] sm:$0xff]
        %180 = vst [vmem:[%s142 + $0x90] sm:$0xff] %v179
        %v181 = vld [vmem:[%s141 + $0x98] sm:$0xff]
        %182 = vst [vmem:[%s142 + $0x98] sm:$0xff] %v181
        %v183 = vld [vmem:[%s141 + $0xa0] sm:$0xff]
        %184 = vst [vmem:[%s142 + $0xa0] sm:$0xff] %v183
        %v185 = vld [vmem:[%s141 + $0xa8] sm:$0xff]
        %186 = vst [vmem:[%s142 + $0xa8] sm:$0xff] %v185
        %v187 = vld [vmem:[%s141 + $0xb0] sm:$0xff]
        %188 = vst [vmem:[%s142 + $0xb0] sm:$0xff] %v187
        %v189 = vld [vmem:[%s141 + $0xb8] sm:$0xff]
        %190 = vst [vmem:[%s142 + $0xb8] sm:$0xff] %v189
        %v191 = vld [vmem:[%s141 + $0xc0] sm:$0xff]
        %192 = vst [vmem:[%s142 + $0xc0] sm:$0xff] %v191
        %v193 = vld [vmem:[%s141 + $0xc8] sm:$0xff]
        %194 = vst [vmem:[%s142 + $0xc8] sm:$0xff] %v193
        %v195 = vld [vmem:[%s141 + $0xd0] sm:$0xff]
        %196 = vst [vmem:[%s142 + $0xd0] sm:$0xff] %v195
        %v197 = vld [vmem:[%s141 + $0xd8] sm:$0xff]
        %198 = vst [vmem:[%s142 + $0xd8] sm:$0xff] %v197
        %v199 = vld [vmem:[%s141 + $0xe0] sm:$0xff]
        %200 = vst [vmem:[%s142 + $0xe0] sm:$0xff] %v199
        %v201 = vld [vmem:[%s141 + $0xe8] sm:$0xff]
        %202 = vst [vmem:[%s142 + $0xe8] sm:$0xff] %v201
        %v203 = vld [vmem:[%s141 + $0xf0] sm:$0xff]
        %204 = vst [vmem:[%s142 + $0xf0] sm:$0xff] %v203
        %v205 = vld [vmem:[%s141 + $0xf8] sm:$0xff]
        %206 = vst [vmem:[%s142 + $0xf8] sm:$0xff] %v205
        %v207 = vld [vmem:[%s141 + $0x100] sm:$0xff]
        %208 = vst [vmem:[%s142 + $0x100] sm:$0xff] %v207
        %v209 = vld [vmem:[%s141 + $0x108] sm:$0xff]
        %210 = vst [vmem:[%s142 + $0x108] sm:$0xff] %v209
        %v211 = vld [vmem:[%s141 + $0x110] sm:$0xff]
        %212 = vst [vmem:[%s142 + $0x110] sm:$0xff] %v211
        %v213 = vld [vmem:[%s141 + $0x118] sm:$0xff]
        %214 = vst [vmem:[%s142 + $0x118] sm:$0xff] %v213
      $region95: #{discriminator_forward.1} parent=89 // loop_footer
        %s140 = sadd.s32 1, %s136
      $region96: #{discriminator_forward.1} parent=89 // loop_footer_branch
        %135 = sbr.rel target = $region92
      $region97: #{discriminator_forward.1} parent=89 // loop_exit
        _
    $region90: #{discriminator_forward.1} parent=74 // pred_fallthru
      _
    %p215 = pneg %p131
    // Predicated region
    $region98: #{discriminator_forward.1} parent=74 // pred_check
      _
    $region99: #{discriminator_forward.1} parent=74 // pred_check_branch
      %217 = sbr.rel (%p131) target = $region101
    $region100: #{discriminator_forward.1} parent=74 // pred_region
      %s218 = sand.u32 288, 7
    $region101: #{discriminator_forward.1} parent=74 // pred_fallthru
      _
  $region75: #{discriminator_forward.1} parent=0 // pred_fallthru
    _
  // Predicated region
  $region76: #{discriminator_forward.1} parent=0 // pred_check
    %p116 = pneg %p112
  $region77: #{discriminator_forward.1} parent=0 // pred_check_branch
    %118 = sbr.rel (%p116) target = $region79
  $region78: #{discriminator_forward.1} parent=0 // pred_region
    %s119 = sshllo.u32 0, 288
    loop: start=0, step=1, limit=1
    $region80: #{discriminator_forward.1} parent=78 // loop_pre_header
      _
    $region81: #{discriminator_forward.1} parent=78 // loop_header
      %s121 = sphi 0, %s125
      %p122 = scmp.ge.s32.totalorder %s121, 1
      %s126 = sphi %s7, %s7
      %s127 = sphi [#allocation6], [#allocation6]
    $region82: #{discriminator_forward.1} parent=78 // loop_header_branch
      %124 = sbr.rel (%p122) target = $region86
    $region83: #{discriminator_forward.1} parent=78 // loop_body
      %v128 = vld [vmem:[%s126] sm:%s119]
      %129 = vst [vmem:[%s127] sm:%s119] %v128
    $region84: #{discriminator_forward.1} parent=78 // loop_footer
      %s125 = sadd.s32 1, %s121
    $region85: #{discriminator_forward.1} parent=78 // loop_footer_branch
      %120 = sbr.rel target = $region81
    $region86: #{discriminator_forward.1} parent=78 // loop_exit
      _
  $region79: #{discriminator_forward.1} parent=0 // pred_fallthru
    _
  // Predicated region
  $region102: #{discriminator_forward.1} parent=0 // pred_check
    _
  $region103: #{discriminator_forward.1} parent=0 // pred_check_branch
    %221 = sbr.rel (0) target = $region105
  $region104: #{discriminator_forward.1} parent=0 // pred_region
    %222 = vsyncadd %s110, 4608
  $region105: #{discriminator_forward.1} parent=0 // pred_fallthru
    _
  %vm223 = vcmask 1041408
  %vm224 = vcmask 257026
  %vm225 = vmor %vm224, %vm223
  %226 = vst.msk [vmem:[#allocation2] sm:$0xf] %vm225, 0.0
  %227 = vst.msk [vmem:[#allocation2 + $0x4] sm:$0xf] %vm225, 0.0
  %228 = vst.msk [vmem:[#allocation2 + $0x8] sm:$0xf] %vm225, 0.0
  %229 = vst.msk [vmem:[#allocation2 + $0xc] sm:$0xf] %vm225, 0.0
  %230 = vst.msk [vmem:[#allocation2 + $0x10] sm:$0xf] %vm225, 0.0
  %231 = vst.msk [vmem:[#allocation2 + $0x14] sm:$0xf] %vm225, 0.0
  %232 = vst.msk [vmem:[#allocation2 + $0x18] sm:$0xf] %vm225, 0.0
  %233 = vst.msk [vmem:[#allocation2 + $0x1c] sm:$0xf] %vm225, 0.0
  %234 = vst.msk [vmem:[#allocation2 + $0x20] sm:$0xf] %vm225, 0.0
  %235 = vst.msk [vmem:[#allocation2 + $0x24] sm:$0xf] %vm225, 0.0
  %vm236 = vcmask 519170
  %vm237 = vmor %vm236, %vm223
  %238 = vst.msk [vmem:[#allocation3] sm:$0xf] %vm237, 0.0
  %239 = vst.msk [vmem:[#allocation3 + $0x4] sm:$0xf] %vm237, 0.0
  %240 = vst.msk [vmem:[#allocation3 + $0x8] sm:$0xf] %vm237, 0.0
  %241 = vst.msk [vmem:[#allocation3 + $0xc] sm:$0xf] %vm237, 0.0
  %242 = vst.msk [vmem:[#allocation3 + $0x10] sm:$0xf] %vm237, 0.0
  %243 = vst.msk [vmem:[#allocation3 + $0x14] sm:$0xf] %vm237, 0.0
  %244 = vst [vmem:[#allocation4] sm:$0xf] 0.0
  %245 = vst [vmem:[#allocation4 + $0x4] sm:$0xf] 0.0
  %246 = vst [vmem:[#allocation4 + $0x8] sm:$0xf] 0.0
  %247 = vst [vmem:[#allocation4 + $0xc] sm:$0xf] 0.0
  %v248 = vld [vmem:[%s0] sm:$0xff]
  %v249 = vld [vmem:[%s0 + $0x8] sm:$0xff]
  %v250 = vld [vmem:[%s0 + $0x10] sm:$0xff]
  %v251 = vld [vmem:[%s0 + $0x18] sm:$0xff]
  %v252 = vld [vmem:[%s0 + $0x20] sm:$0xff]
  %v253 = vld [vmem:[%s0 + $0x28] sm:$0xff]
  %v254 = vld [vmem:[%s0 + $0x30] sm:$0xff]
  %v255 = vld [vmem:[%s0 + $0x38] sm:$0xff]
  %v256 = vld [vmem:[%s0 + $0x40] sm:$0xff]
  %v257 = vld [vmem:[%s0 + $0x48] sm:$0xff]
  %v258 = vld [vmem:[%s0 + $0x50] sm:$0xff]
  %v259 = vld [vmem:[%s0 + $0x58] sm:$0xff]
  %v260 = vld [vmem:[%s0 + $0x60] sm:$0xff]
  %v261 = vld [vmem:[%s0 + $0x68] sm:$0xff]
  %v262 = vld [vmem:[%s0 + $0x70] sm:$0xff]
  %v263 = vld [vmem:[%s0 + $0x78] sm:$0xff]
  %v264 = vld [vmem:[%s1] sm:$0xff]
  %v265 = vld [vmem:[%s1 + $0x8] sm:$0xff]
  %v266 = vld [vmem:[%s1 + $0x10] sm:$0xff]
  %v267 = vld [vmem:[%s1 + $0x18] sm:$0xff]
  %v268 = vld [vmem:[%s1 + $0x20] sm:$0xf]
  %v269 = vld [vmem:[%s2] sm:$0x1]
  %v270 = vlaneseq
  %v271 = vshrl.u32 %v270, 7
  %v272 = vsub.s32 0, %v271
  %v273 = vrot.slane %v269, %v272
  %vm274 = vcmask 293888
  %v276 = vsel %vm274, %v248, 0
  %v279 = vsel %vm274, %v249, 0
  %v282 = vsel %vm274, %v250, 0
  %v285 = vsel %vm274, %v251, 0
  %v288 = vsel %vm274, %v252, 0
  %v291 = vsel %vm274, %v253, 0
  %v294 = vsel %vm274, %v254, 0
  %v297 = vsel %vm274, %v255, 0
  %v300 = vsel %vm274, %v256, 0
  %v303 = vsel %vm274, %v257, 0
  %v306 = vsel %vm274, %v258, 0
  %v309 = vsel %vm274, %v259, 0
  %v312 = vsel %vm274, %v260, 0
  %v315 = vsel %vm274, %v261, 0
  %v318 = vsel %vm274, %v262, 0
  %v321 = vsel %vm274, %v263, 0
  %vm323 = vcmask 1043456
  %v325 = vsel %vm323, %v268, 0
  %327 = vmatprep.subr.mxu0 0.0
  %328 = vmatpush1.msra.mxu0 %v264
  %329 = vmatprep.subr.mxu0 0.0
  %330 = vmatpush1.msra.mxu0 %v265
  %331 = vmatprep.subr.mxu0 0.0
  %332 = vmatpush1.msra.mxu0 %v266
  %333 = vmatprep.subr.mxu0 0.0
  %334 = vmatpush1.msra.mxu0 %v267
  %335 = vmatprep.subr.mxu0 0.0
  %336 = vmatpush1.msra.mxu0 %v325
  %337 = vmatprep.subr.mxu0 0.0
  %338 = vmatpush1.msra.mxu0 0.0
  %339 = vmatprep.subr.mxu0 0.0
  %340 = vmatpush1.msra.mxu0 0.0
  %341 = vmatprep.subr.mxu0 0.0
  %342 = vmatpush1.msra.mxu0 0.0
  %343 = vmatprep.subr.mxu0 0.0
  %344 = vmatpush1.msra.mxu0 0.0
  %345 = vmatprep.subr.mxu0 0.0
  %346 = vmatpush1.msra.mxu0 0.0
  %347 = vmatprep.subr.mxu0 0.0
  %348 = vmatpush1.msra.mxu0 0.0
  %349 = vmatprep.subr.mxu0 0.0
  %350 = vmatpush1.msra.mxu0 0.0
  %351 = vmatprep.subr.mxu0 0.0
  %352 = vmatpush1.msra.mxu0 0.0
  %353 = vmatprep.subr.mxu0 0.0
  %354 = vmatpush1.msra.mxu0 0.0
  %355 = vmatprep.subr.mxu0 0.0
  %356 = vmatpush1.msra.mxu0 0.0
  %357 = vmatprep.subr.mxu0 0.0
  %358 = vmatpush1.msra.mxu0 0.0
  %359 = vmatprep.subr.mxu0 0.0
  %360 = vmatpush1.msra.mxu0 0.0
  %361 = vmatprep.subr.mxu0 0.0
  %362 = vmatpush1.msra.mxu0 0.0
  %363 = vmatprep.subr.mxu0 0.0
  %364 = vmatpush1.msra.mxu0 0.0
  %365 = vmatprep.subr.mxu0 0.0
  %366 = vmatpush1.msra.mxu0 0.0
  %367 = vmatprep.subr.mxu0 0.0
  %368 = vmatpush1.msra.mxu0 0.0
  %369 = vmatprep.subr.mxu0 0.0
  %370 = vmatpush1.msra.mxu0 0.0
  %371 = vmatprep.subr.mxu0 0.0
  %372 = vmatpush1.msra.mxu0 0.0
  %373 = vmatprep.subr.mxu0 0.0
  %374 = vmatpush1.msra.mxu0 0.0
  %375 = vmatprep.subr.mxu0 0.0
  %376 = vmatpush1.msra.mxu0 0.0
  %377 = vmatprep.subr.mxu0 0.0
  %378 = vmatpush1.msra.mxu0 0.0
  %379 = vmatprep.subr.mxu0 0.0
  %380 = vmatpush1.msra.mxu0 0.0
  %381 = vmatprep.subr.mxu0 0.0
  %382 = vmatpush1.msra.mxu0 0.0
  %383 = vmatprep.subr.mxu0 0.0
  %384 = vmatpush1.msra.mxu0 0.0
  %385 = vmatprep.subr.mxu0 0.0
  %386 = vmatpush1.msra.mxu0 0.0
  %387 = vmatprep.subr.mxu0 0.0
  %388 = vmatpush1.msra.mxu0 0.0
  %389 = vmatprep.subr.mxu0 0.0
  %390 = vmatpush1.msra.mxu0 0.0
  %391 = vmatprep.mubr.f32.mxu0 0.0
  %392 = vmatmul.mubr.f32.gmra.mrb[0].mxu0 %v276
  %v393 = vpop.f32.mrb[0].mxu0
  %v394 = vadd.f32 %v273, %v393
  %v395 = vpop.f32.mrb[0].mxu0
  %396 = vmatprep.mubr.f32.mxu0 0.0
  %397 = vmatmul.mubr.f32.gmra.mrb[0].mxu0 %v279
  %v398 = vpop.f32.mrb[0].mxu0
  %v399 = vadd.f32 %v273, %v398
  %v400 = vpop.f32.mrb[0].mxu0
  %401 = vmatprep.mubr.f32.mxu0 0.0
  %402 = vmatmul.mubr.f32.gmra.mrb[0].mxu0 %v282
  %v403 = vpop.f32.mrb[0].mxu0
  %v404 = vadd.f32 %v273, %v403
  %v405 = vpop.f32.mrb[0].mxu0
  %406 = vmatprep.mubr.f32.mxu0 0.0
  %407 = vmatmul.mubr.f32.gmra.mrb[0].mxu0 %v285
  %v408 = vpop.f32.mrb[0].mxu0
  %v409 = vadd.f32 %v273, %v408
  %v410 = vpop.f32.mrb[0].mxu0
  %411 = vmatprep.mubr.f32.mxu0 0.0
  %412 = vmatmul.mubr.f32.gmra.mrb[0].mxu0 %v288
  %v413 = vpop.f32.mrb[0].mxu0
  %v414 = vadd.f32 %v273, %v413
  %v415 = vpop.f32.mrb[0].mxu0
  %416 = vmatprep.mubr.f32.mxu0 0.0
  %417 = vmatmul.mubr.f32.gmra.mrb[0].mxu0 %v291
  %v418 = vpop.f32.mrb[0].mxu0
  %v419 = vadd.f32 %v273, %v418
  %v420 = vpop.f32.mrb[0].mxu0
  %421 = vmatprep.mubr.f32.mxu0 0.0
  %422 = vmatmul.mubr.f32.gmra.mrb[0].mxu0 %v294
  %v423 = vpop.f32.mrb[0].mxu0
  %v424 = vadd.f32 %v273, %v423
  %v425 = vpop.f32.mrb[0].mxu0
  %426 = vmatprep.mubr.f32.mxu0 0.0
  %427 = vmatmul.mubr.f32.gmra.mrb[0].mxu0 %v297
  %v428 = vpop.f32.mrb[0].mxu0
  %v429 = vadd.f32 %v273, %v428
  %v430 = vpop.f32.mrb[0].mxu0
  %431 = vmatprep.mubr.f32.mxu0 0.0
  %432 = vmatmul.mubr.f32.gmra.mrb[0].mxu0 %v300
  %v433 = vpop.f32.mrb[0].mxu0
  %v434 = vadd.f32 %v273, %v433
  %v435 = vpop.f32.mrb[0].mxu0
  %436 = vmatprep.mubr.f32.mxu0 0.0
  %437 = vmatmul.mubr.f32.gmra.mrb[0].mxu0 %v303
  %v438 = vpop.f32.mrb[0].mxu0
  %v439 = vadd.f32 %v273, %v438
  %v440 = vpop.f32.mrb[0].mxu0
  %441 = vmatprep.mubr.f32.mxu0 0.0
  %442 = vmatmul.mubr.f32.gmra.mrb[0].mxu0 %v306
  %v443 = vpop.f32.mrb[0].mxu0
  %v444 = vadd.f32 %v273, %v443
  %v445 = vpop.f32.mrb[0].mxu0
  %446 = vmatprep.mubr.f32.mxu0 0.0
  %447 = vmatmul.mubr.f32.gmra.mrb[0].mxu0 %v309
  %v448 = vpop.f32.mrb[0].mxu0
  %v449 = vadd.f32 %v273, %v448
  %v450 = vpop.f32.mrb[0].mxu0
  %451 = vmatprep.mubr.f32.mxu0 0.0
  %452 = vmatmul.mubr.f32.gmra.mrb[0].mxu0 %v312
  %v453 = vpop.f32.mrb[0].mxu0
  %v454 = vadd.f32 %v273, %v453
  %v455 = vpop.f32.mrb[0].mxu0
  %456 = vmatprep.mubr.f32.mxu0 0.0
  %457 = vmatmul.mubr.f32.gmra.mrb[0].mxu0 %v315
  %v458 = vpop.f32.mrb[0].mxu0
  %v459 = vadd.f32 %v273, %v458
  %v460 = vpop.f32.mrb[0].mxu0
  %461 = vmatprep.mubr.f32.mxu0 0.0
  %462 = vmatmul.mubr.f32.gmra.mrb[0].mxu0 %v318
  %v463 = vpop.f32.mrb[0].mxu0
  %v464 = vadd.f32 %v273, %v463
  %v465 = vpop.f32.mrb[0].mxu0
  %466 = vmatprep.mubr.f32.mxu0 0.0
  %467 = vmatmul.mubr.f32.gmra.mrb[0].mxu0 %v321
  %v468 = vpop.f32.mrb[0].mxu0
  %v469 = vadd.f32 %v273, %v468
  %v470 = vpop.f32.mrb[0].mxu0
  %471 = vdwg.mxu0
  %v472 = vmul.f32 %v394, 0.2
  %v473 = vmul.f32 %v399, 0.2
  %v474 = vmul.f32 %v404, 0.2
  %v475 = vmul.f32 %v409, 0.2
  %v476 = vmul.f32 %v414, 0.2
  %v477 = vmul.f32 %v419, 0.2
  %v478 = vmul.f32 %v424, 0.2
  %v479 = vmul.f32 %v429, 0.2
  %v480 = vmul.f32 %v434, 0.2
  %v481 = vmul.f32 %v439, 0.2
  %v482 = vmul.f32 %v444, 0.2
  %v483 = vmul.f32 %v449, 0.2
  %v484 = vmul.f32 %v454, 0.2
  %v485 = vmul.f32 %v459, 0.2
  %v486 = vmul.f32 %v464, 0.2
  %v487 = vmul.f32 %v469, 0.2
  %v488 = vmax.f32 %v394, %v472
  %v489 = vmax.f32 %v399, %v473
  %v490 = vmax.f32 %v404, %v474
  %v491 = vmax.f32 %v409, %v475
  %v492 = vmax.f32 %v414, %v476
  %v493 = vmax.f32 %v419, %v477
  %v494 = vmax.f32 %v424, %v478
  %v495 = vmax.f32 %v429, %v479
  %v496 = vmax.f32 %v434, %v480
  %v497 = vmax.f32 %v439, %v481
  %v498 = vmax.f32 %v444, %v482
  %v499 = vmax.f32 %v449, %v483
  %v500 = vmax.f32 %v454, %v484
  %v501 = vmax.f32 %v459, %v485
  %v502 = vmax.f32 %v464, %v486
  %v503 = vmax.f32 %v469, %v487
  %v504 = vld [vmem:[%s2 + $0x1] sm:$0x1]
  %v505 = vlaneseq
  %v506 = vshrl.u32 %v505, 7
  %v507 = vsub.s32 0, %v506
  %v508 = vrot.slane %v504, %v507
  %v509 = vmul.f32 %v488, %v508
  %v510 = vmul.f32 %v489, %v508
  %v511 = vmul.f32 %v490, %v508
  %v512 = vmul.f32 %v491, %v508
  %v513 = vmul.f32 %v492, %v508
  %v514 = vmul.f32 %v493, %v508
  %v515 = vmul.f32 %v494, %v508
  %v516 = vmul.f32 %v495, %v508
  %v517 = vmul.f32 %v496, %v508
  %v518 = vmul.f32 %v497, %v508
  %v519 = vmul.f32 %v498, %v508
  %v520 = vmul.f32 %v499, %v508
  %v521 = vmul.f32 %v500, %v508
  %v522 = vmul.f32 %v501, %v508
  %v523 = vmul.f32 %v502, %v508
  %v524 = vmul.f32 %v503, %v508
  %v525 = vld [vmem:[%s2 + $0x2] sm:$0x1]
  %v526 = vlaneseq
  %v527 = vshrl.u32 %v526, 7
  %v528 = vsub.s32 0, %v527
  %v529 = vrot.slane %v525, %v528
  %v530 = vadd.f32 %v509, %v529
  %v531 = vadd.f32 %v510, %v529
  %v532 = vadd.f32 %v511, %v529
  %v533 = vadd.f32 %v512, %v529
  %v534 = vadd.f32 %v513, %v529
  %v535 = vadd.f32 %v514, %v529
  %v536 = vadd.f32 %v515, %v529
  %v537 = vadd.f32 %v516, %v529
  %v538 = vadd.f32 %v517, %v529
  %v539 = vadd.f32 %v518, %v529
  %v540 = vadd.f32 %v519, %v529
  %v541 = vadd.f32 %v520, %v529
  %v542 = vadd.f32 %v521, %v529
  %v543 = vadd.f32 %v522, %v529
  %v544 = vadd.f32 %v523, %v529
  %v545 = vadd.f32 %v524, %v529
  %v548 = vunpack.c.l.s4 1983009808
  %v549 = vunpack.c.0.s8 %v548
  %v550 = vlaneseq
  %v551 = vshrl.u32 %v550, 7
  %v552 = vsub.s32 %v549, %v551
  %v553 = vrot.slane %v530, %v552
  %554 = vrot.lane.b32.xlu0 %v553, 16
  %v555 = vpop.permute.xlu0 %554
  %s557 = scalar_lea.vmem [#allocation2], 4
  %vm558 = vcmask 255104
  %559 = vst.msk [vmem:[%s557] sm:$0x3] %vm558, %v555
  %v560 = vcombine.high %v553, %v553
  %561 = vrot.lane.b32.xlu0 %v560, 32
  %v562 = vpop.permute.xlu0 %561
  %vm564 = vcmask 386304
  %565 = vst.msk [vmem:[%s557] sm:$0x3] %vm564, %v562
  %v566 = vcombine.high %v530, %v530
  %v568 = vunpack.c.l.s4 1983009808
  %v569 = vunpack.c.0.s8 %v568
  %v570 = vlaneseq
  %v571 = vshrl.u32 %v570, 7
  %v572 = vsub.s32 %v569, %v571
  %v573 = vrot.slane %v566, %v572
  %574 = vrot.lane.b32.xlu0 %v573, 48
  %v575 = vpop.permute.xlu0 %574
  %vm577 = vcmask 517504
  %578 = vst.msk [vmem:[%s557] sm:$0x3] %vm577, %v575
  %v579 = vcombine.high %v573, %v573
  %580 = vrot.lane.b32.xlu0 %v579, 64
  %v581 = vpop.permute.xlu0 %580
  %vm583 = vcmask 648704
  %584 = vst.msk [vmem:[%s557] sm:$0x3] %vm583, %v581
  %v587 = vunpack.c.l.s4 1983009808
  %v588 = vunpack.c.0.s8 %v587
  %v589 = vlaneseq
  %v590 = vshrl.u32 %v589, 7
  %v591 = vsub.s32 %v588, %v590
  %v592 = vrot.slane %v531, %v591
  %593 = vrot.lane.b32.xlu0 %v592, 80
  %v594 = vpop.permute.xlu0 %593
  %vm596 = vcmask 779904
  %597 = vst.msk [vmem:[%s557] sm:$0x3] %vm596, %v594
  %v598 = vcombine.high %v592, %v592
  %599 = vrot.lane.b32.xlu0 %v598, 96
  %v600 = vpop.permute.xlu0 %599
  %vm602 = vcmask 911104
  %603 = vst.msk [vmem:[%s557] sm:$0x3] %vm602, %v600
  %v604 = vcombine.high %v531, %v531
  %v606 = vunpack.c.l.s4 1983009808
  %v607 = vunpack.c.0.s8 %v606
  %v608 = vlaneseq
  %v609 = vshrl.u32 %v608, 7
  %v610 = vsub.s32 %v607, %v609
  %v611 = vrot.slane %v604, %v610
  %612 = vrot.lane.b32.xlu0 %v611, 112
  %v613 = vpop.permute.xlu0 %612
  %vm615 = vcmask 1042304
  %616 = vst.msk [vmem:[%s557] sm:$0x3] %vm615, %v613
  %v617 = vcombine.high %v611, %v611
  %vm619 = vcmask 123904
  %620 = vst.msk [vmem:[%s557 + $0x2] sm:$0x3] %vm619, %v617
  %v623 = vunpack.c.l.s4 1983009808
  %v624 = vunpack.c.0.s8 %v623
  %v625 = vlaneseq
  %v626 = vshrl.u32 %v625, 7
  %v627 = vsub.s32 %v624, %v626
  %v628 = vrot.slane %v532, %v627
  %629 = vrot.lane.b32.xlu0 %v628, 16
  %v630 = vpop.permute.xlu0 %629
  %s632 = scalar_lea.vmem [#allocation2], 8
  %633 = vst.msk [vmem:[%s632] sm:$0x3] %vm558, %v630
  %v634 = vcombine.high %v628, %v628
  %635 = vrot.lane.b32.xlu0 %v634, 32
  %v636 = vpop.permute.xlu0 %635
  %638 = vst.msk [vmem:[%s632] sm:$0x3] %vm564, %v636
  %v639 = vcombine.high %v532, %v532
  %v641 = vunpack.c.l.s4 1983009808
  %v642 = vunpack.c.0.s8 %v641
  %v643 = vlaneseq
  %v644 = vshrl.u32 %v643, 7
  %v645 = vsub.s32 %v642, %v644
  %v646 = vrot.slane %v639, %v645
  %647 = vrot.lane.b32.xlu0 %v646, 48
  %v648 = vpop.permute.xlu0 %647
  %650 = vst.msk [vmem:[%s632] sm:$0x3] %vm577, %v648
  %v651 = vcombine.high %v646, %v646
  %652 = vrot.lane.b32.xlu0 %v651, 64
  %v653 = vpop.permute.xlu0 %652
  %655 = vst.msk [vmem:[%s632] sm:$0x3] %vm583, %v653
  %v658 = vunpack.c.l.s4 1983009808
  %v659 = vunpack.c.0.s8 %v658
  %v660 = vlaneseq
  %v661 = vshrl.u32 %v660, 7
  %v662 = vsub.s32 %v659, %v661
  %v663 = vrot.slane %v533, %v662
  %664 = vrot.lane.b32.xlu0 %v663, 80
  %v665 = vpop.permute.xlu0 %664
  %667 = vst.msk [vmem:[%s632] sm:$0x3] %vm596, %v665
  %v668 = vcombine.high %v663, %v663
  %669 = vrot.lane.b32.xlu0 %v668, 96
  %v670 = vpop.permute.xlu0 %669
  %672 = vst.msk [vmem:[%s632] sm:$0x3] %vm602, %v670
  %v673 = vcombine.high %v533, %v533
  %v675 = vunpack.c.l.s4 1983009808
  %v676 = vunpack.c.0.s8 %v675
  %v677 = vlaneseq
  %v678 = vshrl.u32 %v677, 7
  %v679 = vsub.s32 %v676, %v678
  %v680 = vrot.slane %v673, %v679
  %681 = vrot.lane.b32.xlu0 %v680, 112
  %v682 = vpop.permute.xlu0 %681
  %684 = vst.msk [vmem:[%s632] sm:$0x3] %vm615, %v682
  %v685 = vcombine.high %v680, %v680
  %687 = vst.msk [vmem:[%s632 + $0x2] sm:$0x3] %vm619, %v685
  %v690 = vunpack.c.l.s4 1983009808
  %v691 = vunpack.c.0.s8 %v690
  %v692 = vlaneseq
  %v693 = vshrl.u32 %v692, 7
  %v694 = vsub.s32 %v691, %v693
  %v695 = vrot.slane %v534, %v694
  %696 = vrot.lane.b32.xlu0 %v695, 16
  %v697 = vpop.permute.xlu0 %696
  %s699 = scalar_lea.vmem [#allocation2], 12
  %700 = vst.msk [vmem:[%s699] sm:$0x3] %vm558, %v697
  %v701 = vcombine.high %v695, %v695
  %702 = vrot.lane.b32.xlu0 %v701, 32
  %v703 = vpop.permute.xlu0 %702
  %705 = vst.msk [vmem:[%s699] sm:$0x3] %vm564, %v703
  %v706 = vcombine.high %v534, %v534
  %v708 = vunpack.c.l.s4 1983009808
  %v709 = vunpack.c.0.s8 %v708
  %v710 = vlaneseq
  %v711 = vshrl.u32 %v710, 7
  %v712 = vsub.s32 %v709, %v711
  %v713 = vrot.slane %v706, %v712
  %714 = vrot.lane.b32.xlu0 %v713, 48
  %v715 = vpop.permute.xlu0 %714
  %717 = vst.msk [vmem:[%s699] sm:$0x3] %vm577, %v715
  %v718 = vcombine.high %v713, %v713
  %719 = vrot.lane.b32.xlu0 %v718, 64
  %v720 = vpop.permute.xlu0 %719
  %722 = vst.msk [vmem:[%s699] sm:$0x3] %vm583, %v720
  %v725 = vunpack.c.l.s4 1983009808
  %v726 = vunpack.c.0.s8 %v725
  %v727 = vlaneseq
  %v728 = vshrl.u32 %v727, 7
  %v729 = vsub.s32 %v726, %v728
  %v730 = vrot.slane %v535, %v729
  %731 = vrot.lane.b32.xlu0 %v730, 80
  %v732 = vpop.permute.xlu0 %731
  %734 = vst.msk [vmem:[%s699] sm:$0x3] %vm596, %v732
  %v735 = vcombine.high %v730, %v730
  %736 = vrot.lane.b32.xlu0 %v735, 96
  %v737 = vpop.permute.xlu0 %736
  %739 = vst.msk [vmem:[%s699] sm:$0x3] %vm602, %v737
  %v740 = vcombine.high %v535, %v535
  %v742 = vunpack.c.l.s4 1983009808
  %v743 = vunpack.c.0.s8 %v742
  %v744 = vlaneseq
  %v745 = vshrl.u32 %v744, 7
  %v746 = vsub.s32 %v743, %v745
  %v747 = vrot.slane %v740, %v746
  %748 = vrot.lane.b32.xlu0 %v747, 112
  %v749 = vpop.permute.xlu0 %748
  %751 = vst.msk [vmem:[%s699] sm:$0x3] %vm615, %v749
  %v752 = vcombine.high %v747, %v747
  %754 = vst.msk [vmem:[%s699 + $0x2] sm:$0x3] %vm619, %v752
  %v757 = vunpack.c.l.s4 1983009808
  %v758 = vunpack.c.0.s8 %v757
  %v759 = vlaneseq
  %v760 = vshrl.u32 %v759, 7
  %v761 = vsub.s32 %v758, %v760
  %v762 = vrot.slane %v536, %v761
  %763 = vrot.lane.b32.xlu0 %v762, 16
  %v764 = vpop.permute.xlu0 %763
  %s766 = scalar_lea.vmem [#allocation2], 16
  %767 = vst.msk [vmem:[%s766] sm:$0x3] %vm558, %v764
  %v768 = vcombine.high %v762, %v762
  %769 = vrot.lane.b32.xlu0 %v768, 32
  %v770 = vpop.permute.xlu0 %769
  %772 = vst.msk [vmem:[%s766] sm:$0x3] %vm564, %v770
  %v773 = vcombine.high %v536, %v536
  %v775 = vunpack.c.l.s4 1983009808
  %v776 = vunpack.c.0.s8 %v775
  %v777 = vlaneseq
  %v778 = vshrl.u32 %v777, 7
  %v779 = vsub.s32 %v776, %v778
  %v780 = vrot.slane %v773, %v779
  %781 = vrot.lane.b32.xlu0 %v780, 48
  %v782 = vpop.permute.xlu0 %781
  %784 = vst.msk [vmem:[%s766] sm:$0x3] %vm577, %v782
  %v785 = vcombine.high %v780, %v780
  %786 = vrot.lane.b32.xlu0 %v785, 64
  %v787 = vpop.permute.xlu0 %786
  %789 = vst.msk [vmem:[%s766] sm:$0x3] %vm583, %v787
  %v792 = vunpack.c.l.s4 1983009808
  %v793 = vunpack.c.0.s8 %v792
  %v794 = vlaneseq
  %v795 = vshrl.u32 %v794, 7
  %v796 = vsub.s32 %v793, %v795
  %v797 = vrot.slane %v537, %v796
  %798 = vrot.lane.b32.xlu0 %v797, 80
  %v799 = vpop.permute.xlu0 %798
  %801 = vst.msk [vmem:[%s766] sm:$0x3] %vm596, %v799
  %v802 = vcombine.high %v797, %v797
  %803 = vrot.lane.b32.xlu0 %v802, 96
  %v804 = vpop.permute.xlu0 %803
  %806 = vst.msk [vmem:[%s766] sm:$0x3] %vm602, %v804
  %v807 = vcombine.high %v537, %v537
  %v809 = vunpack.c.l.s4 1983009808
  %v810 = vunpack.c.0.s8 %v809
  %v811 = vlaneseq
  %v812 = vshrl.u32 %v811, 7
  %v813 = vsub.s32 %v810, %v812
  %v814 = vrot.slane %v807, %v813
  %815 = vrot.lane.b32.xlu0 %v814, 112
  %v816 = vpop.permute.xlu0 %815
  %818 = vst.msk [vmem:[%s766] sm:$0x3] %vm615, %v816
  %v819 = vcombine.high %v814, %v814
  %821 = vst.msk [vmem:[%s766 + $0x2] sm:$0x3] %vm619, %v819
  %v824 = vunpack.c.l.s4 1983009808
  %v825 = vunpack.c.0.s8 %v824
  %v826 = vlaneseq
  %v827 = vshrl.u32 %v826, 7
  %v828 = vsub.s32 %v825, %v827
  %v829 = vrot.slane %v538, %v828
  %830 = vrot.lane.b32.xlu0 %v829, 16
  %v831 = vpop.permute.xlu0 %830
  %s833 = scalar_lea.vmem [#allocation2], 20
  %834 = vst.msk [vmem:[%s833] sm:$0x3] %vm558, %v831
  %v835 = vcombine.high %v829, %v829
  %836 = vrot.lane.b32.xlu0 %v835, 32
  %v837 = vpop.permute.xlu0 %836
  %839 = vst.msk [vmem:[%s833] sm:$0x3] %vm564, %v837
  %v840 = vcombine.high %v538, %v538
  %v842 = vunpack.c.l.s4 1983009808
  %v843 = vunpack.c.0.s8 %v842
  %v844 = vlaneseq
  %v845 = vshrl.u32 %v844, 7
  %v846 = vsub.s32 %v843, %v845
  %v847 = vrot.slane %v840, %v846
  %848 = vrot.lane.b32.xlu0 %v847, 48
  %v849 = vpop.permute.xlu0 %848
  %851 = vst.msk [vmem:[%s833] sm:$0x3] %vm577, %v849
  %v852 = vcombine.high %v847, %v847
  %853 = vrot.lane.b32.xlu0 %v852, 64
  %v854 = vpop.permute.xlu0 %853
  %856 = vst.msk [vmem:[%s833] sm:$0x3] %vm583, %v854
  %v859 = vunpack.c.l.s4 1983009808
  %v860 = vunpack.c.0.s8 %v859
  %v861 = vlaneseq
  %v862 = vshrl.u32 %v861, 7
  %v863 = vsub.s32 %v860, %v862
  %v864 = vrot.slane %v539, %v863
  %865 = vrot.lane.b32.xlu0 %v864, 80
  %v866 = vpop.permute.xlu0 %865
  %868 = vst.msk [vmem:[%s833] sm:$0x3] %vm596, %v866
  %v869 = vcombine.high %v864, %v864
  %870 = vrot.lane.b32.xlu0 %v869, 96
  %v871 = vpop.permute.xlu0 %870
  %873 = vst.msk [vmem:[%s833] sm:$0x3] %vm602, %v871
  %v874 = vcombine.high %v539, %v539
  %v876 = vunpack.c.l.s4 1983009808
  %v877 = vunpack.c.0.s8 %v876
  %v878 = vlaneseq
  %v879 = vshrl.u32 %v878, 7
  %v880 = vsub.s32 %v877, %v879
  %v881 = vrot.slane %v874, %v880
  %882 = vrot.lane.b32.xlu0 %v881, 112
  %v883 = vpop.permute.xlu0 %882
  %885 = vst.msk [vmem:[%s833] sm:$0x3] %vm615, %v883
  %v886 = vcombine.high %v881, %v881
  %888 = vst.msk [vmem:[%s833 + $0x2] sm:$0x3] %vm619, %v886
  %v891 = vunpack.c.l.s4 1983009808
  %v892 = vunpack.c.0.s8 %v891
  %v893 = vlaneseq
  %v894 = vshrl.u32 %v893, 7
  %v895 = vsub.s32 %v892, %v894
  %v896 = vrot.slane %v540, %v895
  %897 = vrot.lane.b32.xlu0 %v896, 16
  %v898 = vpop.permute.xlu0 %897
  %s900 = scalar_lea.vmem [#allocation2], 24
  %901 = vst.msk [vmem:[%s900] sm:$0x3] %vm558, %v898
  %v902 = vcombine.high %v896, %v896
  %903 = vrot.lane.b32.xlu0 %v902, 32
  %v904 = vpop.permute.xlu0 %903
  %906 = vst.msk [vmem:[%s900] sm:$0x3] %vm564, %v904
  %v907 = vcombine.high %v540, %v540
  %v909 = vunpack.c.l.s4 1983009808
  %v910 = vunpack.c.0.s8 %v909
  %v911 = vlaneseq
  %v912 = vshrl.u32 %v911, 7
  %v913 = vsub.s32 %v910, %v912
  %v914 = vrot.slane %v907, %v913
  %915 = vrot.lane.b32.xlu0 %v914, 48
  %v916 = vpop.permute.xlu0 %915
  %918 = vst.msk [vmem:[%s900] sm:$0x3] %vm577, %v916
  %v919 = vcombine.high %v914, %v914
  %920 = vrot.lane.b32.xlu0 %v919, 64
  %v921 = vpop.permute.xlu0 %920
  %923 = vst.msk [vmem:[%s900] sm:$0x3] %vm583, %v921
  %v926 = vunpack.c.l.s4 1983009808
  %v927 = vunpack.c.0.s8 %v926
  %v928 = vlaneseq
  %v929 = vshrl.u32 %v928, 7
  %v930 = vsub.s32 %v927, %v929
  %v931 = vrot.slane %v541, %v930
  %932 = vrot.lane.b32.xlu0 %v931, 80
  %v933 = vpop.permute.xlu0 %932
  %935 = vst.msk [vmem:[%s900] sm:$0x3] %vm596, %v933
  %v936 = vcombine.high %v931, %v931
  %937 = vrot.lane.b32.xlu0 %v936, 96
  %v938 = vpop.permute.xlu0 %937
  %940 = vst.msk [vmem:[%s900] sm:$0x3] %vm602, %v938
  %v941 = vcombine.high %v541, %v541
  %v943 = vunpack.c.l.s4 1983009808
  %v944 = vunpack.c.0.s8 %v943
  %v945 = vlaneseq
  %v946 = vshrl.u32 %v945, 7
  %v947 = vsub.s32 %v944, %v946
  %v948 = vrot.slane %v941, %v947
  %949 = vrot.lane.b32.xlu0 %v948, 112
  %v950 = vpop.permute.xlu0 %949
  %952 = vst.msk [vmem:[%s900] sm:$0x3] %vm615, %v950
  %v953 = vcombine.high %v948, %v948
  %955 = vst.msk [vmem:[%s900 + $0x2] sm:$0x3] %vm619, %v953
  %v958 = vunpack.c.l.s4 1983009808
  %v959 = vunpack.c.0.s8 %v958
  %v960 = vlaneseq
  %v961 = vshrl.u32 %v960, 7
  %v962 = vsub.s32 %v959, %v961
  %v963 = vrot.slane %v542, %v962
  %964 = vrot.lane.b32.xlu0 %v963, 16
  %v965 = vpop.permute.xlu0 %964
  %s967 = scalar_lea.vmem [#allocation2], 28
  %968 = vst.msk [vmem:[%s967] sm:$0x3] %vm558, %v965
  %v969 = vcombine.high %v963, %v963
  %970 = vrot.lane.b32.xlu0 %v969, 32
  %v971 = vpop.permute.xlu0 %970
  %973 = vst.msk [vmem:[%s967] sm:$0x3] %vm564, %v971
  %v974 = vcombine.high %v542, %v542
  %v976 = vunpack.c.l.s4 1983009808
  %v977 = vunpack.c.0.s8 %v976
  %v978 = vlaneseq
  %v979 = vshrl.u32 %v978, 7
  %v980 = vsub.s32 %v977, %v979
  %v981 = vrot.slane %v974, %v980
  %982 = vrot.lane.b32.xlu0 %v981, 48
  %v983 = vpop.permute.xlu0 %982
  %985 = vst.msk [vmem:[%s967] sm:$0x3] %vm577, %v983
  %v986 = vcombine.high %v981, %v981
  %987 = vrot.lane.b32.xlu0 %v986, 64
  %v988 = vpop.permute.xlu0 %987
  %990 = vst.msk [vmem:[%s967] sm:$0x3] %vm583, %v988
  %v993 = vunpack.c.l.s4 1983009808
  %v994 = vunpack.c.0.s8 %v993
  %v995 = vlaneseq
  %v996 = vshrl.u32 %v995, 7
  %v997 = vsub.s32 %v994, %v996
  %v998 = vrot.slane %v543, %v997
  %999 = vrot.lane.b32.xlu0 %v998, 80
  %v1000 = vpop.permute.xlu0 %999
  %1002 = vst.msk [vmem:[%s967] sm:$0x3] %vm596, %v1000
  %v1003 = vcombine.high %v998, %v998
  %1004 = vrot.lane.b32.xlu0 %v1003, 96
  %v1005 = vpop.permute.xlu0 %1004
  %1007 = vst.msk [vmem:[%s967] sm:$0x3] %vm602, %v1005
  %v1008 = vcombine.high %v543, %v543
  %v1010 = vunpack.c.l.s4 1983009808
  %v1011 = vunpack.c.0.s8 %v1010
  %v1012 = vlaneseq
  %v1013 = vshrl.u32 %v1012, 7
  %v1014 = vsub.s32 %v1011, %v1013
  %v1015 = vrot.slane %v1008, %v1014
  %1016 = vrot.lane.b32.xlu0 %v1015, 112
  %v1017 = vpop.permute.xlu0 %1016
  %1019 = vst.msk [vmem:[%s967] sm:$0x3] %vm615, %v1017
  %v1020 = vcombine.high %v1015, %v1015
  %1022 = vst.msk [vmem:[%s967 + $0x2] sm:$0x3] %vm619, %v1020
  %v1025 = vunpack.c.l.s4 1983009808
  %v1026 = vunpack.c.0.s8 %v1025
  %v1027 = vlaneseq
  %v1028 = vshrl.u32 %v1027, 7
  %v1029 = vsub.s32 %v1026, %v1028
  %v1030 = vrot.slane %v544, %v1029
  %1031 = vrot.lane.b32.xlu0 %v1030, 16
  %v1032 = vpop.permute.xlu0 %1031
  %s1034 = scalar_lea.vmem [#allocation2], 32
  %1035 = vst.msk [vmem:[%s1034] sm:$0x3] %vm558, %v1032
  %v1036 = vcombine.high %v1030, %v1030
  %1037 = vrot.lane.b32.xlu0 %v1036, 32
  %v1038 = vpop.permute.xlu0 %1037
  %1040 = vst.msk [vmem:[%s1034] sm:$0x3] %vm564, %v1038
  %v1041 = vcombine.high %v544, %v544
  %v1043 = vunpack.c.l.s4 1983009808
  %v1044 = vunpack.c.0.s8 %v1043
  %v1045 = vlaneseq
  %v1046 = vshrl.u32 %v1045, 7
  %v1047 = vsub.s32 %v1044, %v1046
  %v1048 = vrot.slane %v1041, %v1047
  %1049 = vrot.lane.b32.xlu0 %v1048, 48
  %v1050 = vpop.permute.xlu0 %1049
  %1052 = vst.msk [vmem:[%s1034] sm:$0x3] %vm577, %v1050
  %v1053 = vcombine.high %v1048, %v1048
  %1054 = vrot.lane.b32.xlu0 %v1053, 64
  %v1055 = vpop.permute.xlu0 %1054
  %1057 = vst.msk [vmem:[%s1034] sm:$0x3] %vm583, %v1055
  %v1060 = vunpack.c.l.s4 1983009808
  %v1061 = vunpack.c.0.s8 %v1060
  %v1062 = vlaneseq
  %v1063 = vshrl.u32 %v1062, 7
  %v1064 = vsub.s32 %v1061, %v1063
  %v1065 = vrot.slane %v545, %v1064
  %1066 = vrot.lane.b32.xlu0 %v1065, 80
  %v1067 = vpop.permute.xlu0 %1066
  %1069 = vst.msk [vmem:[%s1034] sm:$0x3] %vm596, %v1067
  %v1070 = vcombine.high %v1065, %v1065
  %1071 = vrot.lane.b32.xlu0 %v1070, 96
  %v1072 = vpop.permute.xlu0 %1071
  %1074 = vst.msk [vmem:[%s1034] sm:$0x3] %vm602, %v1072
  %v1075 = vcombine.high %v545, %v545
  %v1077 = vunpack.c.l.s4 1983009808
  %v1078 = vunpack.c.0.s8 %v1077
  %v1079 = vlaneseq
  %v1080 = vshrl.u32 %v1079, 7
  %v1081 = vsub.s32 %v1078, %v1080
  %v1082 = vrot.slane %v1075, %v1081
  %1083 = vrot.lane.b32.xlu0 %v1082, 112
  %v1084 = vpop.permute.xlu0 %1083
  %1086 = vst.msk [vmem:[%s1034] sm:$0x3] %vm615, %v1084
  %v1087 = vcombine.high %v1082, %v1082
  %1089 = vst.msk [vmem:[%s1034 + $0x2] sm:$0x3] %vm619, %v1087
  %v1090 = vld [vmem:[#allocation2] sm:$0x3]
  %v1091 = vld [vmem:[%s557] sm:$0x3]
  %v1092 = vld [vmem:[%s632] sm:$0x3]
  %v1095 = vunpack.c.l.s4 1983009808
  %v1096 = vunpack.c.0.s8 %v1095
  %v1097 = vlaneseq
  %v1098 = vshrl.u32 %v1097, 7
  %v1099 = vsub.s32 %v1096, %v1098
  %v1100 = vrot.slane %v1091, %v1099
  %1101 = vrot.lane.b32.xlu0 %v1100, 48
  %v1102 = vpop.permute.xlu0 %1101
  %v1106 = vunpack.c.l.s4 1983009808
  %v1107 = vunpack.c.0.s8 %v1106
  %v1108 = vlaneseq
  %v1109 = vshrl.u32 %v1108, 7
  %v1110 = vsub.s32 %v1107, %v1109
  %v1111 = vrot.slane %v1092, %v1110
  %1112 = vrot.lane.b32.xlu0 %v1111, 96
  %v1113 = vpop.permute.xlu0 %1112
  %vm1115 = vcmask 392192
  %v1116 = vsel %vm1115, %v1090, %v1102
  %vm1117 = vcmask 785408
  %v1118 = vsel %vm1117, %v1116, %v1113
  %v1121 = vunpack.c.l.s4 1983009808
  %v1122 = vunpack.c.0.s8 %v1121
  %v1123 = vlaneseq
  %v1124 = vshrl.u32 %v1123, 7
  %v1125 = vsub.s32 %v1122, %v1124
  %v1126 = vrot.slane %v1090, %v1125
  %1127 = vrot.lane.b32.xlu0 %v1126, 96
  %v1128 = vpop.permute.xlu0 %1127
  %1130 = vrot.lane.b32.xlu0 %v1100, 16
  %v1131 = vpop.permute.xlu0 %1130
  %1133 = vrot.lane.b32.xlu0 %v1111, 64
  %v1134 = vpop.permute.xlu0 %1133
  %v1136 = vsel %vm1115, %v1128, %v1131
  %v1137 = vsel %vm1117, %v1136, %v1134
  %1138 = vrot.lane.b32.xlu0 %v1126, 64
  %v1139 = vpop.permute.xlu0 %1138
  %1141 = vrot.lane.b32.xlu0 %v1100, 112
  %v1142 = vpop.permute.xlu0 %1141
  %1144 = vrot.lane.b32.xlu0 %v1111, 32
  %v1145 = vpop.permute.xlu0 %1144
  %v1147 = vsel %vm1115, %v1139, %v1142
  %v1148 = vsel %vm1117, %v1147, %v1145
  %v1149 = vld [vmem:[#allocation2] sm:$0xf]
  %v1150 = vld [vmem:[%s557] sm:$0xf]
  %v1151 = vld [vmem:[%s632] sm:$0xf]
  %v1154 = vunpack.c.l.s4 1983009808
  %v1155 = vunpack.c.0.s8 %v1154
  %v1156 = vlaneseq
  %v1157 = vshrl.u32 %v1156, 7
  %v1158 = vsub.s32 %v1155, %v1157
  %v1159 = vrot.slane %v1149, %v1158
  %v1160 = vcombine.high %v1159, %v1159
  %1161 = vrot.lane.b32.xlu0 %v1159, 32
  %v1162 = vpop.permute.xlu0 %1161
  %1163 = vrot.lane.b32.xlu0 %v1160, 32
  %v1164 = vpop.permute.xlu0 %1163
  %vm1165 = vcmask 261120
  %v1166 = vsel %vm1165, %v1162, %v1164
  %v1170 = vunpack.c.l.s4 1983009808
  %v1171 = vunpack.c.0.s8 %v1170
  %v1172 = vlaneseq
  %v1173 = vshrl.u32 %v1172, 7
  %v1174 = vsub.s32 %v1171, %v1173
  %v1175 = vrot.slane %v1150, %v1174
  %v1176 = vcombine.high %v1175, %v1175
  %1177 = vrot.lane.b32.xlu0 %v1175, 80
  %v1178 = vpop.permute.xlu0 %1177
  %1179 = vrot.lane.b32.xlu0 %v1176, 80
  %v1180 = vpop.permute.xlu0 %1179
  %vm1181 = vcmask 654336
  %v1182 = vsel %vm1181, %v1178, %v1180
  %v1186 = vunpack.c.l.s4 1983009808
  %v1187 = vunpack.c.0.s8 %v1186
  %v1188 = vlaneseq
  %v1189 = vshrl.u32 %v1188, 7
  %v1190 = vsub.s32 %v1187, %v1189
  %v1191 = vrot.slane %v1151, %v1190
  %v1192 = vcombine.high %v1191, %v1191
  %v1194 = vsel %vm1115, %v1166, %v1182
  %v1195 = vsel %vm1117, %v1194, %v1191
  %v1196 = vld [vmem:[%s699] sm:$0x3]
  %v1197 = vld [vmem:[%s766] sm:$0x3]
  %v1200 = vunpack.c.l.s4 1983009808
  %v1201 = vunpack.c.0.s8 %v1200
  %v1202 = vlaneseq
  %v1203 = vshrl.u32 %v1202, 7
  %v1204 = vsub.s32 %v1201, %v1203
  %v1205 = vrot.slane %v1196, %v1204
  %1206 = vrot.lane.b32.xlu0 %v1205, 48
  %v1207 = vpop.permute.xlu0 %1206
  %v1211 = vunpack.c.l.s4 1983009808
  %v1212 = vunpack.c.0.s8 %v1211
  %v1213 = vlaneseq
  %v1214 = vshrl.u32 %v1213, 7
  %v1215 = vsub.s32 %v1212, %v1214
  %v1216 = vrot.slane %v1197, %v1215
  %1217 = vrot.lane.b32.xlu0 %v1216, 96
  %v1218 = vpop.permute.xlu0 %1217
  %v1220 = vsel %vm1115, %v1092, %v1207
  %v1221 = vsel %vm1117, %v1220, %v1218
  %1222 = vrot.lane.b32.xlu0 %v1205, 16
  %v1223 = vpop.permute.xlu0 %1222
  %1225 = vrot.lane.b32.xlu0 %v1216, 64
  %v1226 = vpop.permute.xlu0 %1225
  %v1228 = vsel %vm1115, %v1113, %v1223
  %v1229 = vsel %vm1117, %v1228, %v1226
  %1230 = vrot.lane.b32.xlu0 %v1205, 112
  %v1231 = vpop.permute.xlu0 %1230
  %1233 = vrot.lane.b32.xlu0 %v1216, 32
  %v1234 = vpop.permute.xlu0 %1233
  %v1236 = vsel %vm1115, %v1134, %v1231
  %v1237 = vsel %vm1117, %v1236, %v1234
  %v1238 = vld [vmem:[%s699] sm:$0xf]
  %v1239 = vld [vmem:[%s766] sm:$0xf]
  %1240 = vrot.lane.b32.xlu0 %v1191, 32
  %v1241 = vpop.permute.xlu0 %1240
  %1242 = vrot.lane.b32.xlu0 %v1192, 32
  %v1243 = vpop.permute.xlu0 %1242
  %v1244 = vsel %vm1165, %v1241, %v1243
  %v1248 = vunpack.c.l.s4 1983009808
  %v1249 = vunpack.c.0.s8 %v1248
  %v1250 = vlaneseq
  %v1251 = vshrl.u32 %v1250, 7
  %v1252 = vsub.s32 %v1249, %v1251
  %v1253 = vrot.slane %v1238, %v1252
  %v1254 = vcombine.high %v1253, %v1253
  %1255 = vrot.lane.b32.xlu0 %v1253, 80
  %v1256 = vpop.permute.xlu0 %1255
  %1257 = vrot.lane.b32.xlu0 %v1254, 80
  %v1258 = vpop.permute.xlu0 %1257
  %v1259 = vsel %vm1181, %v1256, %v1258
  %v1263 = vunpack.c.l.s4 1983009808
  %v1264 = vunpack.c.0.s8 %v1263
  %v1265 = vlaneseq
  %v1266 = vshrl.u32 %v1265, 7
  %v1267 = vsub.s32 %v1264, %v1266
  %v1268 = vrot.slane %v1239, %v1267
  %v1269 = vcombine.high %v1268, %v1268
  %v1271 = vsel %vm1115, %v1244, %v1259
  %v1272 = vsel %vm1117, %v1271, %v1268
  %v1273 = vld [vmem:[%s833] sm:$0x3]
  %v1274 = vld [vmem:[%s900] sm:$0x3]
  %v1277 = vunpack.c.l.s4 1983009808
  %v1278 = vunpack.c.0.s8 %v1277
  %v1279 = vlaneseq
  %v1280 = vshrl.u32 %v1279, 7
  %v1281 = vsub.s32 %v1278, %v1280
  %v1282 = vrot.slane %v1273, %v1281
  %1283 = vrot.lane.b32.xlu0 %v1282, 48
  %v1284 = vpop.permute.xlu0 %1283
  %v1288 = vunpack.c.l.s4 1983009808
  %v1289 = vunpack.c.0.s8 %v1288
  %v1290 = vlaneseq
  %v1291 = vshrl.u32 %v1290, 7
  %v1292 = vsub.s32 %v1289, %v1291
  %v1293 = vrot.slane %v1274, %v1292
  %1294 = vrot.lane.b32.xlu0 %v1293, 96
  %v1295 = vpop.permute.xlu0 %1294
  %v1297 = vsel %vm1115, %v1197, %v1284
  %v1298 = vsel %vm1117, %v1297, %v1295
  %1299 = vrot.lane.b32.xlu0 %v1282, 16
  %v1300 = vpop.permute.xlu0 %1299
  %1302 = vrot.lane.b32.xlu0 %v1293, 64
  %v1303 = vpop.permute.xlu0 %1302
  %v1305 = vsel %vm1115, %v1218, %v1300
  %v1306 = vsel %vm1117, %v1305, %v1303
  %1307 = vrot.lane.b32.xlu0 %v1282, 112
  %v1308 = vpop.permute.xlu0 %1307
  %1310 = vrot.lane.b32.xlu0 %v1293, 32
  %v1311 = vpop.permute.xlu0 %1310
  %v1313 = vsel %vm1115, %v1226, %v1308
  %v1314 = vsel %vm1117, %v1313, %v1311
  %v1315 = vld [vmem:[%s833] sm:$0xf]
  %v1316 = vld [vmem:[%s900] sm:$0xf]
  %1317 = vrot.lane.b32.xlu0 %v1268, 32
  %v1318 = vpop.permute.xlu0 %1317
  %1319 = vrot.lane.b32.xlu0 %v1269, 32
  %v1320 = vpop.permute.xlu0 %1319
  %v1321 = vsel %vm1165, %v1318, %v1320
  %v1325 = vunpack.c.l.s4 1983009808
  %v1326 = vunpack.c.0.s8 %v1325
  %v1327 = vlaneseq
  %v1328 = vshrl.u32 %v1327, 7
  %v1329 = vsub.s32 %v1326, %v1328
  %v1330 = vrot.slane %v1315, %v1329
  %v1331 = vcombine.high %v1330, %v1330
  %1332 = vrot.lane.b32.xlu0 %v1330, 80
  %v1333 = vpop.permute.xlu0 %1332
  %1334 = vrot.lane.b32.xlu0 %v1331, 80
  %v1335 = vpop.permute.xlu0 %1334
  %v1336 = vsel %vm1181, %v1333, %v1335
  %v1340 = vunpack.c.l.s4 1983009808
  %v1341 = vunpack.c.0.s8 %v1340
  %v1342 = vlaneseq
  %v1343 = vshrl.u32 %v1342, 7
  %v1344 = vsub.s32 %v1341, %v1343
  %v1345 = vrot.slane %v1316, %v1344
  %v1346 = vcombine.high %v1345, %v1345
  %v1348 = vsel %vm1115, %v1321, %v1336
  %v1349 = vsel %vm1117, %v1348, %v1345
  %v1350 = vld [vmem:[%s967] sm:$0x3]
  %v1351 = vld [vmem:[%s1034] sm:$0x3]
  %v1354 = vunpack.c.l.s4 1983009808
  %v1355 = vunpack.c.0.s8 %v1354
  %v1356 = vlaneseq
  %v1357 = vshrl.u32 %v1356, 7
  %v1358 = vsub.s32 %v1355, %v1357
  %v1359 = vrot.slane %v1350, %v1358
  %1360 = vrot.lane.b32.xlu0 %v1359, 48
  %v1361 = vpop.permute.xlu0 %1360
  %v1365 = vunpack.c.l.s4 1983009808
  %v1366 = vunpack.c.0.s8 %v1365
  %v1367 = vlaneseq
  %v1368 = vshrl.u32 %v1367, 7
  %v1369 = vsub.s32 %v1366, %v1368
  %v1370 = vrot.slane %v1351, %v1369
  %1371 = vrot.lane.b32.xlu0 %v1370, 96
  %v1372 = vpop.permute.xlu0 %1371
  %v1374 = vsel %vm1115, %v1274, %v1361
  %v1375 = vsel %vm1117, %v1374, %v1372
  %1376 = vrot.lane.b32.xlu0 %v1359, 16
  %v1377 = vpop.permute.xlu0 %1376
  %1379 = vrot.lane.b32.xlu0 %v1370, 64
  %v1380 = vpop.permute.xlu0 %1379
  %v1382 = vsel %vm1115, %v1295, %v1377
  %v1383 = vsel %vm1117, %v1382, %v1380
  %1384 = vrot.lane.b32.xlu0 %v1359, 112
  %v1385 = vpop.permute.xlu0 %1384
  %1387 = vrot.lane.b32.xlu0 %v1370, 32
  %v1388 = vpop.permute.xlu0 %1387
  %v1390 = vsel %vm1115, %v1303, %v1385
  %v1391 = vsel %vm1117, %v1390, %v1388
  %v1392 = vld [vmem:[%s967] sm:$0xf]
  %v1393 = vld [vmem:[%s1034] sm:$0xf]
  %1394 = vrot.lane.b32.xlu0 %v1345, 32
  %v1395 = vpop.permute.xlu0 %1394
  %1396 = vrot.lane.b32.xlu0 %v1346, 32
  %v1397 = vpop.permute.xlu0 %1396
  %v1398 = vsel %vm1165, %v1395, %v1397
  %v1402 = vunpack.c.l.s4 1983009808
  %v1403 = vunpack.c.0.s8 %v1402
  %v1404 = vlaneseq
  %v1405 = vshrl.u32 %v1404, 7
  %v1406 = vsub.s32 %v1403, %v1405
  %v1407 = vrot.slane %v1392, %v1406
  %v1408 = vcombine.high %v1407, %v1407
  %1409 = vrot.lane.b32.xlu0 %v1407, 80
  %v1410 = vpop.permute.xlu0 %1409
  %1411 = vrot.lane.b32.xlu0 %v1408, 80
  %v1412 = vpop.permute.xlu0 %1411
  %v1413 = vsel %vm1181, %v1410, %v1412
  %v1417 = vunpack.c.l.s4 1983009808
  %v1418 = vunpack.c.0.s8 %v1417
  %v1419 = vlaneseq
  %v1420 = vshrl.u32 %v1419, 7
  %v1421 = vsub.s32 %v1418, %v1420
  %v1422 = vrot.slane %v1393, %v1421
  %v1423 = vcombine.high %v1422, %v1422
  %v1425 = vsel %vm1115, %v1398, %v1413
  %v1426 = vsel %vm1117, %v1425, %v1422
  %v1428 = vrot.slane %v1137, 6
  %v1429 = vrot.slane %v1134, 6
  %v1433 = vrot.slane %v1148, 4
  %v1434 = vrot.slane %v1145, 4
  %v1438 = vrot.slane %v1195, 2
  %v1439 = vrot.slane %v1192, 2
  %v1443 = vrot.slane %v1229, 6
  %v1444 = vrot.slane %v1226, 6
  %v1448 = vrot.slane %v1237, 4
  %v1449 = vrot.slane %v1234, 4
  %v1453 = vrot.slane %v1272, 2
  %v1454 = vrot.slane %v1269, 2
  %v1458 = vrot.slane %v1306, 6
  %v1459 = vrot.slane %v1303, 6
  %v1463 = vrot.slane %v1314, 4
  %v1464 = vrot.slane %v1311, 4
  %v1468 = vrot.slane %v1349, 2
  %v1469 = vrot.slane %v1346, 2
  %v1473 = vrot.slane %v1383, 6
  %v1474 = vrot.slane %v1380, 6
  %v1478 = vrot.slane %v1391, 4
  %v1479 = vrot.slane %v1388, 4
  %v1483 = vrot.slane %v1426, 2
  %v1484 = vrot.slane %v1423, 2
  %v1487 = vsel %vm223, %v1118, %v1428
  %v1488 = vsel %vm223, %v1113, %v1429
  %v1489 = vsel %vm323, %v1487, %v1433
  %v1490 = vsel %vm323, %v1488, %v1434
  %vm1491 = vcmask 1045504
  %v1492 = vsel %vm1491, %v1489, %v1438
  %v1493 = vsel %vm1491, %v1490, %v1439
  %v1494 = vsel %vm223, %v1221, %v1443
  %v1495 = vsel %vm223, %v1218, %v1444
  %v1496 = vsel %vm323, %v1494, %v1448
  %v1497 = vsel %vm323, %v1495, %v1449
  %v1498 = vsel %vm1491, %v1496, %v1453
  %v1499 = vsel %vm1491, %v1497, %v1454
  %v1500 = vsel %vm223, %v1298, %v1458
  %v1501 = vsel %vm223, %v1295, %v1459
  %v1502 = vsel %vm323, %v1500, %v1463
  %v1503 = vsel %vm323, %v1501, %v1464
  %v1504 = vsel %vm1491, %v1502, %v1468
  %v1505 = vsel %vm1491, %v1503, %v1469
  %v1506 = vsel %vm223, %v1375, %v1473
  %v1507 = vsel %vm223, %v1372, %v1474
  %v1508 = vsel %vm323, %v1506, %v1478
  %v1509 = vsel %vm323, %v1507, %v1479
  %v1510 = vsel %vm1491, %v1508, %v1483
  %v1511 = vsel %vm1491, %v1509, %v1484
  %v1512 = vld [vmem:[%s3] sm:$0xff]
  %v1513 = vld [vmem:[%s3 + $0x8] sm:$0xff]
  %v1514 = vld [vmem:[%s3 + $0x10] sm:$0xff]
  %v1515 = vld [vmem:[%s3 + $0x18] sm:$0xff]
  %v1516 = vld [vmem:[%s3 + $0x20] sm:$0xff]
  %v1517 = vld [vmem:[%s3 + $0x28] sm:$0xff]
  %v1518 = vld [vmem:[%s3 + $0x30] sm:$0xff]
  %v1519 = vld [vmem:[%s3 + $0x38] sm:$0xff]
  %v1520 = vld [vmem:[%s3 + $0x40] sm:$0xff]
  %v1521 = vld [vmem:[%s3 + $0x48] sm:$0xff]
  %v1522 = vld [vmem:[%s3 + $0x50] sm:$0xff]
  %v1523 = vld [vmem:[%s3 + $0x58] sm:$0xff]
  %v1524 = vld [vmem:[%s3 + $0x60] sm:$0xff]
  %v1525 = vld [vmem:[%s3 + $0x68] sm:$0xff]
  %v1526 = vld [vmem:[%s3 + $0x70] sm:$0xff]
  %v1527 = vld [vmem:[%s3 + $0x78] sm:$0xff]
  %v1528 = vld [vmem:[%s3 + $0x80] sm:$0xff]
  %v1529 = vld [vmem:[%s3 + $0x88] sm:$0xff]
  %v1530 = vld [vmem:[%s4] sm:$0x1]
  %v1531 = vlaneseq
  %v1532 = vshrl.u32 %v1531, 7
  %v1533 = vsub.s32 0, %v1532
  %v1534 = vrot.slane %v1530, %v1533
  %vm1535 = vcmask 130048
  %v1537 = vsel %vm1535, %v1493, 0
  %v1540 = vsel %vm1535, %v1499, 0
  %v1543 = vsel %vm1535, %v1505, 0
  %v1546 = vsel %vm1535, %v1511, 0
  %1548 = vmatprep.subr.mxu0 0.0
  %1549 = vmatpush1.msra.mxu0 %v1512
  %1550 = vmatprep.subr.mxu0 0.0
  %1551 = vmatpush1.msra.mxu0 %v1513
  %1552 = vmatprep.subr.mxu0 0.0
  %1553 = vmatpush1.msra.mxu0 %v1514
  %1554 = vmatprep.subr.mxu0 0.0
  %1555 = vmatpush1.msra.mxu0 %v1515
  %1556 = vmatprep.subr.mxu0 0.0
  %1557 = vmatpush1.msra.mxu0 %v1516
  %1558 = vmatprep.subr.mxu0 0.0
  %1559 = vmatpush1.msra.mxu0 %v1517
  %1560 = vmatprep.subr.mxu0 0.0
  %1561 = vmatpush1.msra.mxu0 %v1518
  %1562 = vmatprep.subr.mxu0 0.0
  %1563 = vmatpush1.msra.mxu0 %v1519
  %1564 = vmatprep.subr.mxu0 0.0
  %1565 = vmatpush1.msra.mxu0 %v1520
  %1566 = vmatprep.subr.mxu0 0.0
  %1567 = vmatpush1.msra.mxu0 %v1521
  %1568 = vmatprep.subr.mxu0 0.0
  %1569 = vmatpush1.msra.mxu0 %v1522
  %1570 = vmatprep.subr.mxu0 0.0
  %1571 = vmatpush1.msra.mxu0 %v1523
  %1572 = vmatprep.subr.mxu0 0.0
  %1573 = vmatpush1.msra.mxu0 %v1524
  %1574 = vmatprep.subr.mxu0 0.0
  %1575 = vmatpush1.msra.mxu0 %v1525
  %1576 = vmatprep.subr.mxu0 0.0
  %1577 = vmatpush1.msra.mxu0 %v1526
  %1578 = vmatprep.subr.mxu0 0.0
  %1579 = vmatpush1.msra.mxu0 %v1527
  %1580 = vmatprep.subr.mxu0 0.0
  %1581 = vmatpush1.msra.mxu0 %v1528
  %1582 = vmatprep.subr.mxu0 0.0
  %1583 = vmatpush1.msra.mxu0 %v1529
  %1584 = vmatprep.subr.mxu0 0.0
  %1585 = vmatpush1.msra.mxu0 0.0
  %1586 = vmatprep.subr.mxu0 0.0
  %1587 = vmatpush1.msra.mxu0 0.0
  %1588 = vmatprep.subr.mxu0 0.0
  %1589 = vmatpush1.msra.mxu0 0.0
  %1590 = vmatprep.subr.mxu0 0.0
  %1591 = vmatpush1.msra.mxu0 0.0
  %1592 = vmatprep.subr.mxu0 0.0
  %1593 = vmatpush1.msra.mxu0 0.0
  %1594 = vmatprep.subr.mxu0 0.0
  %1595 = vmatpush1.msra.mxu0 0.0
  %1596 = vmatprep.subr.mxu0 0.0
  %1597 = vmatpush1.msra.mxu0 0.0
  %1598 = vmatprep.subr.mxu0 0.0
  %1599 = vmatpush1.msra.mxu0 0.0
  %1600 = vmatprep.subr.mxu0 0.0
  %1601 = vmatpush1.msra.mxu0 0.0
  %1602 = vmatprep.subr.mxu0 0.0
  %1603 = vmatpush1.msra.mxu0 0.0
  %1604 = vmatprep.subr.mxu0 0.0
  %1605 = vmatpush1.msra.mxu0 0.0
  %1606 = vmatprep.subr.mxu0 0.0
  %1607 = vmatpush1.msra.mxu0 0.0
  %1608 = vmatprep.subr.mxu0 0.0
  %1609 = vmatpush1.msra.mxu0 0.0
  %1610 = vmatprep.subr.mxu0 0.0
  %1611 = vmatpush1.msra.mxu0 0.0
  %1612 = vmatprep.mubr.f32.mxu0 %v1537
  %1613 = vmatmul.mubr.f32.gmra.mrb[0].mxu0 %v1492
  %v1614 = vpop.f32.mrb[0].mxu0
  %v1615 = vadd.f32 %v1534, %v1614
  %v1616 = vpop.f32.mrb[0].mxu0
  %1617 = vmatprep.mubr.f32.mxu0 %v1540
  %1618 = vmatmul.mubr.f32.gmra.mrb[0].mxu0 %v1498
  %v1619 = vpop.f32.mrb[0].mxu0
  %v1620 = vadd.f32 %v1534, %v1619
  %v1621 = vpop.f32.mrb[0].mxu0
  %1622 = vmatprep.mubr.f32.mxu0 %v1543
  %1623 = vmatmul.mubr.f32.gmra.mrb[0].mxu0 %v1504
  %v1624 = vpop.f32.mrb[0].mxu0
  %v1625 = vadd.f32 %v1534, %v1624
  %v1626 = vpop.f32.mrb[0].mxu0
  %1627 = vmatprep.mubr.f32.mxu0 %v1546
  %1628 = vmatmul.mubr.f32.gmra.mrb[0].mxu0 %v1510
  %v1629 = vpop.f32.mrb[0].mxu0
  %v1630 = vadd.f32 %v1534, %v1629
  %v1631 = vpop.f32.mrb[0].mxu0
  %1632 = vdwg.mxu0
  %v1633 = vmul.f32 %v1615, 0.2
  %v1634 = vmul.f32 %v1620, 0.2
  %v1635 = vmul.f32 %v1625, 0.2
  %v1636 = vmul.f32 %v1630, 0.2
  %v1637 = vmax.f32 %v1615, %v1633
  %v1638 = vmax.f32 %v1620, %v1634
  %v1639 = vmax.f32 %v1625, %v1635
  %v1640 = vmax.f32 %v1630, %v1636
  %v1641 = vld [vmem:[%s4 + $0x1] sm:$0x1]
  %v1642 = vlaneseq
  %v1643 = vshrl.u32 %v1642, 7
  %v1644 = vsub.s32 0, %v1643
  %v1645 = vrot.slane %v1641, %v1644
  %v1646 = vmul.f32 %v1637, %v1645
  %v1647 = vmul.f32 %v1638, %v1645
  %v1648 = vmul.f32 %v1639, %v1645
  %v1649 = vmul.f32 %v1640, %v1645
  %v1650 = vld [vmem:[%s4 + $0x2] sm:$0x1]
  %v1651 = vlaneseq
  %v1652 = vshrl.u32 %v1651, 7
  %v1653 = vsub.s32 0, %v1652
  %v1654 = vrot.slane %v1650, %v1653
  %v1655 = vadd.f32 %v1646, %v1654
  %v1656 = vadd.f32 %v1647, %v1654
  %v1657 = vadd.f32 %v1648, %v1654
  %v1658 = vadd.f32 %v1649, %v1654
  %v1661 = vunpack.c.l.s4 1983009808
  %v1662 = vunpack.c.0.s8 %v1661
  %v1663 = vlaneseq
  %v1664 = vshrl.u32 %v1663, 7
  %v1665 = vsub.s32 %v1662, %v1664
  %v1666 = vrot.slane %v1655, %v1665
  %1667 = vrot.lane.b32.xlu0 %v1666, 32
  %v1668 = vpop.permute.xlu0 %1667
  %s1670 = scalar_lea.vmem [#allocation3], 4
  %vm1671 = vcmask 517376
  %1672 = vst.msk [vmem:[%s1670] sm:$0x3] %vm1671, %v1668
  %v1673 = vcombine.high %v1666, %v1666
  %1674 = vrot.lane.b32.xlu0 %v1673, 64
  %v1675 = vpop.permute.xlu0 %1674
  %vm1677 = vcmask 779776
  %1678 = vst.msk [vmem:[%s1670] sm:$0x3] %vm1677, %v1675
  %v1679 = vcombine.high %v1655, %v1655
  %v1681 = vunpack.c.l.s4 1983009808
  %v1682 = vunpack.c.0.s8 %v1681
  %v1683 = vlaneseq
  %v1684 = vshrl.u32 %v1683, 7
  %v1685 = vsub.s32 %v1682, %v1684
  %v1686 = vrot.slane %v1679, %v1685
  %1687 = vrot.lane.b32.xlu0 %v1686, 96
  %v1688 = vpop.permute.xlu0 %1687
  %vm1690 = vcmask 1042176
  %1691 = vst.msk [vmem:[%s1670] sm:$0x3] %vm1690, %v1688
  %v1692 = vcombine.high %v1686, %v1686
  %vm1694 = vcmask 254976
  %1695 = vst.msk [vmem:[%s1670 + $0x2] sm:$0x3] %vm1694, %v1692
  %v1698 = vunpack.c.l.s4 1983009808
  %v1699 = vunpack.c.0.s8 %v1698
  %v1700 = vlaneseq
  %v1701 = vshrl.u32 %v1700, 7
  %v1702 = vsub.s32 %v1699, %v1701
  %v1703 = vrot.slane %v1656, %v1702
  %1704 = vrot.lane.b32.xlu0 %v1703, 32
  %v1705 = vpop.permute.xlu0 %1704
  %s1707 = scalar_lea.vmem [#allocation3], 8
  %1708 = vst.msk [vmem:[%s1707] sm:$0x3] %vm1671, %v1705
  %v1709 = vcombine.high %v1703, %v1703
  %1710 = vrot.lane.b32.xlu0 %v1709, 64
  %v1711 = vpop.permute.xlu0 %1710
  %1713 = vst.msk [vmem:[%s1707] sm:$0x3] %vm1677, %v1711
  %v1714 = vcombine.high %v1656, %v1656
  %v1716 = vunpack.c.l.s4 1983009808
  %v1717 = vunpack.c.0.s8 %v1716
  %v1718 = vlaneseq
  %v1719 = vshrl.u32 %v1718, 7
  %v1720 = vsub.s32 %v1717, %v1719
  %v1721 = vrot.slane %v1714, %v1720
  %1722 = vrot.lane.b32.xlu0 %v1721, 96
  %v1723 = vpop.permute.xlu0 %1722
  %1725 = vst.msk [vmem:[%s1707] sm:$0x3] %vm1690, %v1723
  %v1726 = vcombine.high %v1721, %v1721
  %1728 = vst.msk [vmem:[%s1707 + $0x2] sm:$0x3] %vm1694, %v1726
  %v1731 = vunpack.c.l.s4 1983009808
  %v1732 = vunpack.c.0.s8 %v1731
  %v1733 = vlaneseq
  %v1734 = vshrl.u32 %v1733, 7
  %v1735 = vsub.s32 %v1732, %v1734
  %v1736 = vrot.slane %v1657, %v1735
  %1737 = vrot.lane.b32.xlu0 %v1736, 32
  %v1738 = vpop.permute.xlu0 %1737
  %s1740 = scalar_lea.vmem [#allocation3], 12
  %1741 = vst.msk [vmem:[%s1740] sm:$0x3] %vm1671, %v1738
  %v1742 = vcombine.high %v1736, %v1736
  %1743 = vrot.lane.b32.xlu0 %v1742, 64
  %v1744 = vpop.permute.xlu0 %1743
  %1746 = vst.msk [vmem:[%s1740] sm:$0x3] %vm1677, %v1744
  %v1747 = vcombine.high %v1657, %v1657
  %v1749 = vunpack.c.l.s4 1983009808
  %v1750 = vunpack.c.0.s8 %v1749
  %v1751 = vlaneseq
  %v1752 = vshrl.u32 %v1751, 7
  %v1753 = vsub.s32 %v1750, %v1752
  %v1754 = vrot.slane %v1747, %v1753
  %1755 = vrot.lane.b32.xlu0 %v1754, 96
  %v1756 = vpop.permute.xlu0 %1755
  %1758 = vst.msk [vmem:[%s1740] sm:$0x3] %vm1690, %v1756
  %v1759 = vcombine.high %v1754, %v1754
  %1761 = vst.msk [vmem:[%s1740 + $0x2] sm:$0x3] %vm1694, %v1759
  %v1764 = vunpack.c.l.s4 1983009808
  %v1765 = vunpack.c.0.s8 %v1764
  %v1766 = vlaneseq
  %v1767 = vshrl.u32 %v1766, 7
  %v1768 = vsub.s32 %v1765, %v1767
  %v1769 = vrot.slane %v1658, %v1768
  %1770 = vrot.lane.b32.xlu0 %v1769, 32
  %v1771 = vpop.permute.xlu0 %1770
  %s1773 = scalar_lea.vmem [#allocation3], 16
  %1774 = vst.msk [vmem:[%s1773] sm:$0x3] %vm1671, %v1771
  %v1775 = vcombine.high %v1769, %v1769
  %1776 = vrot.lane.b32.xlu0 %v1775, 64
  %v1777 = vpop.permute.xlu0 %1776
  %1779 = vst.msk [vmem:[%s1773] sm:$0x3] %vm1677, %v1777
  %v1780 = vcombine.high %v1658, %v1658
  %v1782 = vunpack.c.l.s4 1983009808
  %v1783 = vunpack.c.0.s8 %v1782
  %v1784 = vlaneseq
  %v1785 = vshrl.u32 %v1784, 7
  %v1786 = vsub.s32 %v1783, %v1785
  %v1787 = vrot.slane %v1780, %v1786
  %1788 = vrot.lane.b32.xlu0 %v1787, 96
  %v1789 = vpop.permute.xlu0 %1788
  %1791 = vst.msk [vmem:[%s1773] sm:$0x3] %vm1690, %v1789
  %v1792 = vcombine.high %v1787, %v1787
  %1794 = vst.msk [vmem:[%s1773 + $0x2] sm:$0x3] %vm1694, %v1792
  %v1795 = vld [vmem:[#allocation3] sm:$0x3]
  %v1796 = vld [vmem:[%s1670] sm:$0x3]
  %v1797 = vld [vmem:[%s1707] sm:$0x3]
  %v1800 = vunpack.c.l.s4 1983009808
  %v1801 = vunpack.c.0.s8 %v1800
  %v1802 = vlaneseq
  %v1803 = vshrl.u32 %v1802, 7
  %v1804 = vsub.s32 %v1801, %v1803
  %v1805 = vrot.slane %v1796, %v1804
  %1806 = vrot.lane.b32.xlu0 %v1805, 96
  %v1807 = vpop.permute.xlu0 %1806
  %v1811 = vunpack.c.l.s4 1983009808
  %v1812 = vunpack.c.0.s8 %v1811
  %v1813 = vlaneseq
  %v1814 = vshrl.u32 %v1813, 7
  %v1815 = vsub.s32 %v1812, %v1814
  %v1816 = vrot.slane %v1797, %v1815
  %1817 = vrot.lane.b32.xlu0 %v1816, 64
  %v1818 = vpop.permute.xlu0 %1817
  %v1820 = vsel %vm1117, %v1795, %v1807
  %vm1821 = vcmask 523264
  %v1822 = vsel %vm1821, %v1807, %v1818
  %v1823 = vld [vmem:[#allocation3] sm:$0xf]
  %v1824 = vld [vmem:[%s1670] sm:$0xf]
  %v1825 = vld [vmem:[%s1707] sm:$0xf]
  %v1828 = vunpack.c.l.s4 1983009808
  %v1829 = vunpack.c.0.s8 %v1828
  %v1830 = vlaneseq
  %v1831 = vshrl.u32 %v1830, 7
  %v1832 = vsub.s32 %v1829, %v1831
  %v1833 = vrot.slane %v1823, %v1832
  %v1834 = vcombine.high %v1833, %v1833
  %1835 = vrot.lane.b32.xlu0 %v1833, 64
  %v1836 = vpop.permute.xlu0 %1835
  %1837 = vrot.lane.b32.xlu0 %v1834, 64
  %v1838 = vpop.permute.xlu0 %1837
  %v1839 = vsel %vm1821, %v1836, %v1838
  %v1843 = vunpack.c.l.s4 1983009808
  %v1844 = vunpack.c.0.s8 %v1843
  %v1845 = vlaneseq
  %v1846 = vshrl.u32 %v1845, 7
  %v1847 = vsub.s32 %v1844, %v1846
  %v1848 = vrot.slane %v1824, %v1847
  %v1849 = vcombine.high %v1848, %v1848
  %1850 = vrot.lane.b32.xlu0 %v1848, 32
  %v1851 = vpop.permute.xlu0 %1850
  %1852 = vrot.lane.b32.xlu0 %v1849, 32
  %v1853 = vpop.permute.xlu0 %1852
  %v1854 = vsel %vm1165, %v1851, %v1853
  %v1859 = vunpack.c.l.s4 1983009808
  %v1860 = vunpack.c.0.s8 %v1859
  %v1861 = vlaneseq
  %v1862 = vshrl.u32 %v1861, 7
  %v1863 = vsub.s32 %v1860, %v1862
  %v1864 = vrot.slane %v1825, %v1863
  %v1865 = vcombine.high %v1864, %v1864
  %v1867 = vsel %vm1117, %v1839, %v1851
  %v1868 = vsel %vm1821, %v1854, %v1864
  %v1869 = vld [vmem:[%s1740] sm:$0x3]
  %v1870 = vld [vmem:[%s1773] sm:$0x3]
  %v1873 = vunpack.c.l.s4 1983009808
  %v1874 = vunpack.c.0.s8 %v1873
  %v1875 = vlaneseq
  %v1876 = vshrl.u32 %v1875, 7
  %v1877 = vsub.s32 %v1874, %v1876
  %v1878 = vrot.slane %v1869, %v1877
  %1879 = vrot.lane.b32.xlu0 %v1878, 96
  %v1880 = vpop.permute.xlu0 %1879
  %v1884 = vunpack.c.l.s4 1983009808
  %v1885 = vunpack.c.0.s8 %v1884
  %v1886 = vlaneseq
  %v1887 = vshrl.u32 %v1886, 7
  %v1888 = vsub.s32 %v1885, %v1887
  %v1889 = vrot.slane %v1870, %v1888
  %1890 = vrot.lane.b32.xlu0 %v1889, 64
  %v1891 = vpop.permute.xlu0 %1890
  %v1893 = vsel %vm1117, %v1797, %v1880
  %v1894 = vsel %vm1821, %v1880, %v1891
  %v1895 = vld [vmem:[%s1740] sm:$0xf]
  %v1896 = vld [vmem:[%s1773] sm:$0xf]
  %1897 = vrot.lane.b32.xlu0 %v1864, 64
  %v1898 = vpop.permute.xlu0 %1897
  %1899 = vrot.lane.b32.xlu0 %v1865, 64
  %v1900 = vpop.permute.xlu0 %1899
  %v1901 = vsel %vm1821, %v1898, %v1900
  %v1905 = vunpack.c.l.s4 1983009808
  %v1906 = vunpack.c.0.s8 %v1905
  %v1907 = vlaneseq
  %v1908 = vshrl.u32 %v1907, 7
  %v1909 = vsub.s32 %v1906, %v1908
  %v1910 = vrot.slane %v1895, %v1909
  %v1911 = vcombine.high %v1910, %v1910
  %1912 = vrot.lane.b32.xlu0 %v1910, 32
  %v1913 = vpop.permute.xlu0 %1912
  %1914 = vrot.lane.b32.xlu0 %v1911, 32
  %v1915 = vpop.permute.xlu0 %1914
  %v1916 = vsel %vm1165, %v1913, %v1915
  %v1921 = vunpack.c.l.s4 1983009808
  %v1922 = vunpack.c.0.s8 %v1921
  %v1923 = vlaneseq
  %v1924 = vshrl.u32 %v1923, 7
  %v1925 = vsub.s32 %v1922, %v1924
  %v1926 = vrot.slane %v1896, %v1925
  %v1927 = vcombine.high %v1926, %v1926
  %v1929 = vsel %vm1117, %v1901, %v1913
  %v1930 = vsel %vm1821, %v1916, %v1926
  %v1933 = vrot.slane %v1867, 6
  %v1934 = vrot.slane %v1868, 6
  %v1935 = vrot.slane %v1865, 6
  %v1941 = vrot.slane %v1893, 4
  %v1942 = vrot.slane %v1894, 4
  %v1943 = vrot.slane %v1891, 4
  %v1949 = vrot.slane %v1929, 2
  %v1950 = vrot.slane %v1930, 2
  %v1951 = vrot.slane %v1927, 2
  %v1955 = vsel %vm223, %v1820, %v1933
  %v1956 = vsel %vm223, %v1822, %v1934
  %v1957 = vsel %vm223, %v1818, %v1935
  %v1958 = vsel %vm323, %v1955, %v1941
  %v1959 = vsel %vm323, %v1956, %v1942
  %v1960 = vsel %vm323, %v1957, %v1943
  %v1961 = vsel %vm1491, %v1958, %v1949
  %v1962 = vsel %vm1491, %v1959, %v1950
  %v1963 = vsel %vm1491, %v1960, %v1951
  %s1964 = smul.u32 4, 36
  %s1965 = smul.u32 %s1964, 1
  %s1966 = sshll.u32 %s1965, 4
  %1967 = dma.done [#allocation7], %s1966
  %v1968 = vld [vmem:[#allocation5] sm:$0xff]
  %v1969 = vld [vmem:[#allocation5 + $0x8] sm:$0xff]
  %v1970 = vld [vmem:[#allocation5 + $0x10] sm:$0xff]
  %v1971 = vld [vmem:[#allocation5 + $0x18] sm:$0xff]
  %v1972 = vld [vmem:[#allocation5 + $0x20] sm:$0xff]
  %v1973 = vld [vmem:[#allocation5 + $0x28] sm:$0xff]
  %v1974 = vld [vmem:[#allocation5 + $0x30] sm:$0xff]
  %v1975 = vld [vmem:[#allocation5 + $0x38] sm:$0xff]
  %v1976 = vld [vmem:[#allocation5 + $0x40] sm:$0xff]
  %v1977 = vld [vmem:[#allocation5 + $0x48] sm:$0xff]
  %v1978 = vld [vmem:[#allocation5 + $0x50] sm:$0xff]
  %v1979 = vld [vmem:[#allocation5 + $0x58] sm:$0xff]
  %v1980 = vld [vmem:[#allocation5 + $0x60] sm:$0xff]
  %v1981 = vld [vmem:[#allocation5 + $0x68] sm:$0xff]
  %v1982 = vld [vmem:[#allocation5 + $0x70] sm:$0xff]
  %v1983 = vld [vmem:[#allocation5 + $0x78] sm:$0xff]
  %v1984 = vld [vmem:[#allocation5 + $0x80] sm:$0xff]
  %v1985 = vld [vmem:[#allocation5 + $0x88] sm:$0xff]
  %v1986 = vunpack.c.l.bf16 %v1968
  %v1987 = vunpack.c.h.bf16 %v1968
  %v1988 = vunpack.c.l.bf16 %v1969
  %v1989 = vunpack.c.h.bf16 %v1969
  %v1990 = vunpack.c.l.bf16 %v1970
  %v1991 = vunpack.c.h.bf16 %v1970
  %v1992 = vunpack.c.l.bf16 %v1971
  %v1993 = vunpack.c.h.bf16 %v1971
  %v1994 = vunpack.c.l.bf16 %v1972
  %v1995 = vunpack.c.h.bf16 %v1972
  %v1996 = vunpack.c.l.bf16 %v1973
  %v1997 = vunpack.c.h.bf16 %v1973
  %v1998 = vunpack.c.l.bf16 %v1974
  %v1999 = vunpack.c.h.bf16 %v1974
  %v2000 = vunpack.c.l.bf16 %v1975
  %v2001 = vunpack.c.h.bf16 %v1975
  %v2002 = vunpack.c.l.bf16 %v1976
  %v2003 = vunpack.c.h.bf16 %v1976
  %v2004 = vunpack.c.l.bf16 %v1977
  %v2005 = vunpack.c.h.bf16 %v1977
  %v2006 = vunpack.c.l.bf16 %v1978
  %v2007 = vunpack.c.h.bf16 %v1978
  %v2008 = vunpack.c.l.bf16 %v1979
  %v2009 = vunpack.c.h.bf16 %v1979
  %v2010 = vunpack.c.l.bf16 %v1980
  %v2011 = vunpack.c.h.bf16 %v1980
  %v2012 = vunpack.c.l.bf16 %v1981
  %v2013 = vunpack.c.h.bf16 %v1981
  %v2014 = vunpack.c.l.bf16 %v1982
  %v2015 = vunpack.c.h.bf16 %v1982
  %v2016 = vunpack.c.l.bf16 %v1983
  %v2017 = vunpack.c.h.bf16 %v1983
  %v2018 = vunpack.c.l.bf16 %v1984
  %v2019 = vunpack.c.h.bf16 %v1984
  %v2020 = vunpack.c.l.bf16 %v1985
  %v2021 = vunpack.c.h.bf16 %v1985
  %v2022 = vld [vmem:[%s6] sm:$0x1]
  %v2023 = vlaneseq
  %v2024 = vshrl.u32 %v2023, 7
  %v2025 = vsub.s32 0, %v2024
  %v2026 = vrot.slane %v2022, %v2025
  %v2028 = vsel %vm1165, %v1963, 0
  %2030 = vmatprep.subr.mxu0 0.0
  %2031 = vmatpush1.msra.mxu0 %v1986
  %2032 = vmatprep.subr.mxu0 0.0
  %2033 = vmatpush1.msra.mxu0 %v1987
  %2034 = vmatprep.subr.mxu0 0.0
  %2035 = vmatpush1.msra.mxu0 %v1988
  %2036 = vmatprep.subr.mxu0 0.0
  %2037 = vmatpush1.msra.mxu0 %v1989
  %2038 = vmatprep.subr.mxu0 0.0
  %2039 = vmatpush1.msra.mxu0 %v1990
  %2040 = vmatprep.subr.mxu0 0.0
  %2041 = vmatpush1.msra.mxu0 %v1991
  %2042 = vmatprep.subr.mxu0 0.0
  %2043 = vmatpush1.msra.mxu0 %v1992
  %2044 = vmatprep.subr.mxu0 0.0
  %2045 = vmatpush1.msra.mxu0 %v1993
  %2046 = vmatprep.subr.mxu0 0.0
  %2047 = vmatpush1.msra.mxu0 %v1994
  %2048 = vmatprep.subr.mxu0 0.0
  %2049 = vmatpush1.msra.mxu0 %v1995
  %2050 = vmatprep.subr.mxu0 0.0
  %2051 = vmatpush1.msra.mxu0 %v1996
  %2052 = vmatprep.subr.mxu0 0.0
  %2053 = vmatpush1.msra.mxu0 %v1997
  %2054 = vmatprep.subr.mxu0 0.0
  %2055 = vmatpush1.msra.mxu0 %v1998
  %2056 = vmatprep.subr.mxu0 0.0
  %2057 = vmatpush1.msra.mxu0 %v1999
  %2058 = vmatprep.subr.mxu0 0.0
  %2059 = vmatpush1.msra.mxu0 %v2000
  %2060 = vmatprep.subr.mxu0 0.0
  %2061 = vmatpush1.msra.mxu0 %v2001
  %2062 = vmatprep.subr.mxu0 0.0
  %2063 = vmatpush1.msra.mxu0 %v2002
  %2064 = vmatprep.subr.mxu0 0.0
  %2065 = vmatpush1.msra.mxu0 %v2003
  %2066 = vmatprep.subr.mxu0 0.0
  %2067 = vmatpush1.msra.mxu0 %v2004
  %2068 = vmatprep.subr.mxu0 0.0
  %2069 = vmatpush1.msra.mxu0 %v2005
  %2070 = vmatprep.subr.mxu0 0.0
  %2071 = vmatpush1.msra.mxu0 %v2006
  %2072 = vmatprep.subr.mxu0 0.0
  %2073 = vmatpush1.msra.mxu0 %v2007
  %2074 = vmatprep.subr.mxu0 0.0
  %2075 = vmatpush1.msra.mxu0 %v2008
  %2076 = vmatprep.subr.mxu0 0.0
  %2077 = vmatpush1.msra.mxu0 %v2009
  %2078 = vmatprep.subr.mxu0 0.0
  %2079 = vmatpush1.msra.mxu0 %v2010
  %2080 = vmatprep.subr.mxu0 0.0
  %2081 = vmatpush1.msra.mxu0 %v2011
  %2082 = vmatprep.subr.mxu0 0.0
  %2083 = vmatpush1.msra.mxu0 %v2012
  %2084 = vmatprep.subr.mxu0 0.0
  %2085 = vmatpush1.msra.mxu0 %v2013
  %2086 = vmatprep.subr.mxu0 0.0
  %2087 = vmatpush1.msra.mxu0 %v2014
  %2088 = vmatprep.subr.mxu0 0.0
  %2089 = vmatpush1.msra.mxu0 %v2015
  %2090 = vmatprep.subr.mxu0 0.0
  %2091 = vmatpush1.msra.mxu0 %v2016
  %2092 = vmatprep.subr.mxu0 0.0
  %2093 = vmatpush1.msra.mxu0 %v2017
  %2094 = vmatprep.mubr.f32.mxu0 %v1962
  %2095 = vmatmul.mubr.f32.gmra.mrb[0].mxu0 %v1961
  %v2096 = vpop.f32.mrb[0].mxu0
  %v2097 = vadd.f32 %v2026, %v2096
  %v2098 = vpop.f32.mrb[0].mxu0
  %2099 = vdwg.mxu0
  %2100 = vmatprep.subr.mxu0 0.0
  %2101 = vmatpush1.msra.mxu0 %v2018
  %2102 = vmatprep.subr.mxu0 0.0
  %2103 = vmatpush1.msra.mxu0 %v2019
  %2104 = vmatprep.subr.mxu0 0.0
  %2105 = vmatpush1.msra.mxu0 %v2020
  %2106 = vmatprep.subr.mxu0 0.0
  %2107 = vmatpush1.msra.mxu0 %v2021
  %2108 = vmatprep.subr.mxu0 0.0
  %2109 = vmatpush1.msra.mxu0 0.0
  %2110 = vmatprep.subr.mxu0 0.0
  %2111 = vmatpush1.msra.mxu0 0.0
  %2112 = vmatprep.subr.mxu0 0.0
  %2113 = vmatpush1.msra.mxu0 0.0
  %2114 = vmatprep.subr.mxu0 0.0
  %2115 = vmatpush1.msra.mxu0 0.0
  %2116 = vmatprep.subr.mxu0 0.0
  %2117 = vmatpush1.msra.mxu0 0.0
  %2118 = vmatprep.subr.mxu0 0.0
  %2119 = vmatpush1.msra.mxu0 0.0
  %2120 = vmatprep.subr.mxu0 0.0
  %2121 = vmatpush1.msra.mxu0 0.0
  %2122 = vmatprep.subr.mxu0 0.0
  %2123 = vmatpush1.msra.mxu0 0.0
  %2124 = vmatprep.subr.mxu0 0.0
  %2125 = vmatpush1.msra.mxu0 0.0
  %2126 = vmatprep.subr.mxu0 0.0
  %2127 = vmatpush1.msra.mxu0 0.0
  %2128 = vmatprep.subr.mxu0 0.0
  %2129 = vmatpush1.msra.mxu0 0.0
  %2130 = vmatprep.subr.mxu0 0.0
  %2131 = vmatpush1.msra.mxu0 0.0
  %2132 = vmatprep.subr.mxu0 0.0
  %2133 = vmatpush1.msra.mxu0 0.0
  %2134 = vmatprep.subr.mxu0 0.0
  %2135 = vmatpush1.msra.mxu0 0.0
  %2136 = vmatprep.subr.mxu0 0.0
  %2137 = vmatpush1.msra.mxu0 0.0
  %2138 = vmatprep.subr.mxu0 0.0
  %2139 = vmatpush1.msra.mxu0 0.0
  %2140 = vmatprep.subr.mxu0 0.0
  %2141 = vmatpush1.msra.mxu0 0.0
  %2142 = vmatprep.subr.mxu0 0.0
  %2143 = vmatpush1.msra.mxu0 0.0
  %2144 = vmatprep.subr.mxu0 0.0
  %2145 = vmatpush1.msra.mxu0 0.0
  %2146 = vmatprep.subr.mxu0 0.0
  %2147 = vmatpush1.msra.mxu0 0.0
  %2148 = vmatprep.subr.mxu0 0.0
  %2149 = vmatpush1.msra.mxu0 0.0
  %2150 = vmatprep.subr.mxu0 0.0
  %2151 = vmatpush1.msra.mxu0 0.0
  %2152 = vmatprep.subr.mxu0 0.0
  %2153 = vmatpush1.msra.mxu0 0.0
  %2154 = vmatprep.subr.mxu0 0.0
  %2155 = vmatpush1.msra.mxu0 0.0
  %2156 = vmatprep.subr.mxu0 0.0
  %2157 = vmatpush1.msra.mxu0 0.0
  %2158 = vmatprep.subr.mxu0 0.0
  %2159 = vmatpush1.msra.mxu0 0.0
  %2160 = vmatprep.subr.mxu0 0.0
  %2161 = vmatpush1.msra.mxu0 0.0
  %2162 = vmatprep.subr.mxu0 0.0
  %2163 = vmatpush1.msra.mxu0 0.0
  %2164 = vmatprep.mubr.f32.mxu0 0.0
  %2165 = vmatmul.mubr.f32.gmra.mrb[0].mxu0 %v2028
  %v2166 = vpop.f32.mrb[0].mxu0
  %v2167 = vadd.f32 %v2097, %v2166
  %v2168 = vpop.f32.mrb[0].mxu0
  %2169 = vdwg.mxu0
  %v2170 = vmul.f32 %v2167, 0.2
  %v2171 = vmax.f32 %v2167, %v2170
  %v2172 = vld [vmem:[%s6 + $0x1] sm:$0x1]
  %v2173 = vlaneseq
  %v2174 = vshrl.u32 %v2173, 7
  %v2175 = vsub.s32 0, %v2174
  %v2176 = vrot.slane %v2172, %v2175
  %v2177 = vmul.f32 %v2171, %v2176
  %v2178 = vld [vmem:[%s6 + $0x2] sm:$0x1]
  %v2179 = vlaneseq
  %v2180 = vshrl.u32 %v2179, 7
  %v2181 = vsub.s32 0, %v2180
  %v2182 = vrot.slane %v2178, %v2181
  %v2183 = vadd.f32 %v2177, %v2182
  %v2186 = vunpack.c.l.s4 1983009808
  %v2187 = vunpack.c.0.s8 %v2186
  %v2188 = vlaneseq
  %v2189 = vshrl.u32 %v2188, 7
  %v2190 = vsub.s32 %v2187, %v2189
  %v2191 = vrot.slane %v2183, %v2190
  %2192 = vrot.lane.b32.xlu0 %v2191, 64
  %v2193 = vpop.permute.xlu0 %2192
  %s2195 = scalar_lea.vmem [#allocation4], 4
  %vm2196 = vcmask 1041920
  %2197 = vst.msk [vmem:[%s2195] sm:$0x3] %vm2196, %v2193
  %v2198 = vcombine.high %v2191, %v2191
  %vm2200 = vcmask 517120
  %2201 = vst.msk [vmem:[%s2195 + $0x2] sm:$0x3] %vm2200, %v2198
  %v2202 = vcombine.high %v2183, %v2183
  %v2204 = vunpack.c.l.s4 1983009808
  %v2205 = vunpack.c.0.s8 %v2204
  %v2206 = vlaneseq
  %v2207 = vshrl.u32 %v2206, 7
  %v2208 = vsub.s32 %v2205, %v2207
  %v2209 = vrot.slane %v2202, %v2208
  %2210 = vrot.lane.b32.xlu0 %v2209, 64
  %v2211 = vpop.permute.xlu0 %2210
  %s2213 = scalar_lea.vmem [#allocation4], 8
  %2214 = vst.msk [vmem:[%s2213] sm:$0x3] %vm2196, %v2211
  %v2215 = vcombine.high %v2209, %v2209
  %2217 = vst.msk [vmem:[%s2213 + $0x2] sm:$0x3] %vm2200, %v2215
  %v2218 = vld [vmem:[#allocation4] sm:$0xf]
  %v2219 = vld [vmem:[%s2195] sm:$0xf]
  %v2220 = vld [vmem:[%s2213] sm:$0xf]
  %v2223 = vunpack.c.l.s4 1983009808
  %v2224 = vunpack.c.0.s8 %v2223
  %v2225 = vlaneseq
  %v2226 = vshrl.u32 %v2225, 7
  %v2227 = vsub.s32 %v2224, %v2226
  %v2228 = vrot.slane %v2218, %v2227
  %v2229 = vcombine.high %v2228, %v2228
  %v2234 = vunpack.c.l.s4 1983009808
  %v2235 = vunpack.c.0.s8 %v2234
  %v2236 = vlaneseq
  %v2237 = vshrl.u32 %v2236, 7
  %v2238 = vsub.s32 %v2235, %v2237
  %v2239 = vrot.slane %v2219, %v2238
  %v2240 = vcombine.high %v2239, %v2239
  %2241 = vrot.lane.b32.xlu0 %v2239, 64
  %v2242 = vpop.permute.xlu0 %2241
  %2243 = vrot.lane.b32.xlu0 %v2240, 64
  %v2244 = vpop.permute.xlu0 %2243
  %v2245 = vsel %vm1821, %v2242, %v2244
  %v2250 = vunpack.c.l.s4 1983009808
  %v2251 = vunpack.c.0.s8 %v2250
  %v2252 = vlaneseq
  %v2253 = vshrl.u32 %v2252, 7
  %v2254 = vsub.s32 %v2251, %v2253
  %v2255 = vrot.slane %v2220, %v2254
  %v2256 = vcombine.high %v2255, %v2255
  %v2258 = vsel %vm1821, %v2229, %v2242
  %s2259 = smul.u32 4, 72
  %s2260 = smul.u32 %s2259, 1
  %s2261 = sshll.u32 %s2260, 4
  %2262 = dma.done %s110, %s2261
  %v2263 = vld [vmem:[#allocation6] sm:$0xff]
  %v2264 = vld [vmem:[#allocation6 + $0x8] sm:$0xff]
  %v2265 = vld [vmem:[#allocation6 + $0x10] sm:$0xff]
  %v2266 = vld [vmem:[#allocation6 + $0x18] sm:$0xff]
  %v2267 = vld [vmem:[#allocation6 + $0x20] sm:$0xff]
  %v2268 = vld [vmem:[#allocation6 + $0x28] sm:$0xff]
  %v2269 = vld [vmem:[#allocation6 + $0x30] sm:$0xff]
  %v2270 = vld [vmem:[#allocation6 + $0x38] sm:$0xff]
  %v2271 = vld [vmem:[#allocation6 + $0x40] sm:$0xff]
  %v2272 = vld [vmem:[#allocation6 + $0x48] sm:$0xff]
  %v2273 = vld [vmem:[#allocation6 + $0x50] sm:$0xff]
  %v2274 = vld [vmem:[#allocation6 + $0x58] sm:$0xff]
  %v2275 = vld [vmem:[#allocation6 + $0x60] sm:$0xff]
  %v2276 = vld [vmem:[#allocation6 + $0x68] sm:$0xff]
  %v2277 = vld [vmem:[#allocation6 + $0x70] sm:$0xff]
  %v2278 = vld [vmem:[#allocation6 + $0x78] sm:$0xff]
  %v2279 = vld [vmem:[#allocation6 + $0x80] sm:$0xff]
  %v2280 = vld [vmem:[#allocation6 + $0x88] sm:$0xff]
  %v2281 = vld [vmem:[#allocation6 + $0x90] sm:$0xff]
  %v2282 = vld [vmem:[#allocation6 + $0x98] sm:$0xff]
  %v2283 = vld [vmem:[#allocation6 + $0xa0] sm:$0xff]
  %v2284 = vld [vmem:[#allocation6 + $0xa8] sm:$0xff]
  %v2285 = vld [vmem:[#allocation6 + $0xb0] sm:$0xff]
  %v2286 = vld [vmem:[#allocation6 + $0xb8] sm:$0xff]
  %v2287 = vld [vmem:[#allocation6 + $0xc0] sm:$0xff]
  %v2288 = vld [vmem:[#allocation6 + $0xc8] sm:$0xff]
  %v2289 = vld [vmem:[#allocation6 + $0xd0] sm:$0xff]
  %v2290 = vld [vmem:[#allocation6 + $0xd8] sm:$0xff]
  %v2291 = vld [vmem:[#allocation6 + $0xe0] sm:$0xff]
  %v2292 = vld [vmem:[#allocation6 + $0xe8] sm:$0xff]
  %v2293 = vld [vmem:[#allocation6 + $0xf0] sm:$0xff]
  %v2294 = vld [vmem:[#allocation6 + $0xf8] sm:$0xff]
  %v2295 = vld [vmem:[#allocation6 + $0x100] sm:$0xff]
  %v2296 = vld [vmem:[#allocation6 + $0x108] sm:$0xff]
  %v2297 = vld [vmem:[#allocation6 + $0x110] sm:$0xff]
  %v2298 = vld [vmem:[#allocation6 + $0x118] sm:$0xff]
  %v2299 = vunpack.c.l.bf16 %v2263
  %v2300 = vunpack.c.h.bf16 %v2263
  %v2301 = vunpack.c.l.bf16 %v2264
  %v2302 = vunpack.c.h.bf16 %v2264
  %v2303 = vunpack.c.l.bf16 %v2265
  %v2304 = vunpack.c.h.bf16 %v2265
  %v2305 = vunpack.c.l.bf16 %v2266
  %v2306 = vunpack.c.h.bf16 %v2266
  %v2307 = vunpack.c.l.bf16 %v2267
  %v2308 = vunpack.c.h.bf16 %v2267
  %v2309 = vunpack.c.l.bf16 %v2268
  %v2310 = vunpack.c.h.bf16 %v2268
  %v2311 = vunpack.c.l.bf16 %v2269
  %v2312 = vunpack.c.h.bf16 %v2269
  %v2313 = vunpack.c.l.bf16 %v2270
  %v2314 = vunpack.c.h.bf16 %v2270
  %v2315 = vunpack.c.l.bf16 %v2271
  %v2316 = vunpack.c.h.bf16 %v2271
  %v2317 = vunpack.c.l.bf16 %v2272
  %v2318 = vunpack.c.h.bf16 %v2272
  %v2319 = vunpack.c.l.bf16 %v2273
  %v2320 = vunpack.c.h.bf16 %v2273
  %v2321 = vunpack.c.l.bf16 %v2274
  %v2322 = vunpack.c.h.bf16 %v2274
  %v2323 = vunpack.c.l.bf16 %v2275
  %v2324 = vunpack.c.h.bf16 %v2275
  %v2325 = vunpack.c.l.bf16 %v2276
  %v2326 = vunpack.c.h.bf16 %v2276
  %v2327 = vunpack.c.l.bf16 %v2277
  %v2328 = vunpack.c.h.bf16 %v2277
  %v2329 = vunpack.c.l.bf16 %v2278
  %v2330 = vunpack.c.h.bf16 %v2278
  %v2331 = vunpack.c.l.bf16 %v2279
  %v2332 = vunpack.c.h.bf16 %v2279
  %v2333 = vunpack.c.l.bf16 %v2280
  %v2334 = vunpack.c.h.bf16 %v2280
  %v2335 = vunpack.c.l.bf16 %v2281
  %v2336 = vunpack.c.h.bf16 %v2281
  %v2337 = vunpack.c.l.bf16 %v2282
  %v2338 = vunpack.c.h.bf16 %v2282
  %v2339 = vunpack.c.l.bf16 %v2283
  %v2340 = vunpack.c.h.bf16 %v2283
  %v2341 = vunpack.c.l.bf16 %v2284
  %v2342 = vunpack.c.h.bf16 %v2284
  %v2343 = vunpack.c.l.bf16 %v2285
  %v2344 = vunpack.c.h.bf16 %v2285
  %v2345 = vunpack.c.l.bf16 %v2286
  %v2346 = vunpack.c.h.bf16 %v2286
  %v2347 = vunpack.c.l.bf16 %v2287
  %v2348 = vunpack.c.h.bf16 %v2287
  %v2349 = vunpack.c.l.bf16 %v2288
  %v2350 = vunpack.c.h.bf16 %v2288
  %v2351 = vunpack.c.l.bf16 %v2289
  %v2352 = vunpack.c.h.bf16 %v2289
  %v2353 = vunpack.c.l.bf16 %v2290
  %v2354 = vunpack.c.h.bf16 %v2290
  %v2355 = vunpack.c.l.bf16 %v2291
  %v2356 = vunpack.c.h.bf16 %v2291
  %v2357 = vunpack.c.l.bf16 %v2292
  %v2358 = vunpack.c.h.bf16 %v2292
  %v2359 = vunpack.c.l.bf16 %v2293
  %v2360 = vunpack.c.h.bf16 %v2293
  %v2361 = vunpack.c.l.bf16 %v2294
  %v2362 = vunpack.c.h.bf16 %v2294
  %v2363 = vunpack.c.l.bf16 %v2295
  %v2364 = vunpack.c.h.bf16 %v2295
  %v2365 = vunpack.c.l.bf16 %v2296
  %v2366 = vunpack.c.h.bf16 %v2296
  %v2367 = vunpack.c.l.bf16 %v2297
  %v2368 = vunpack.c.h.bf16 %v2297
  %v2369 = vunpack.c.l.bf16 %v2298
  %v2370 = vunpack.c.h.bf16 %v2298
  %v2371 = vld [vmem:[%s8] sm:$0x1]
  %v2372 = vlaneseq
  %v2373 = vshrl.u32 %v2372, 7
  %v2374 = vsub.s32 0, %v2373
  %v2375 = vrot.slane %v2371, %v2374
  %v2376 = vsel %vm1821, %v2256, 0
  %2378 = vmatprep.subr.mxu0 0.0
  %2379 = vmatpush1.msra.mxu0 %v2299
  %2380 = vmatprep.subr.mxu0 0.0
  %2381 = vmatpush1.msra.mxu0 %v2300
  %2382 = vmatprep.subr.mxu0 0.0
  %2383 = vmatpush1.msra.mxu0 %v2301
  %2384 = vmatprep.subr.mxu0 0.0
  %2385 = vmatpush1.msra.mxu0 %v2302
  %2386 = vmatprep.subr.mxu0 0.0
  %2387 = vmatpush1.msra.mxu0 %v2303
  %2388 = vmatprep.subr.mxu0 0.0
  %2389 = vmatpush1.msra.mxu0 %v2304
  %2390 = vmatprep.subr.mxu0 0.0
  %2391 = vmatpush1.msra.mxu0 %v2305
  %2392 = vmatprep.subr.mxu0 0.0
  %2393 = vmatpush1.msra.mxu0 %v2306
  %2394 = vmatprep.subr.mxu0 0.0
  %2395 = vmatpush1.msra.mxu0 %v2307
  %2396 = vmatprep.subr.mxu0 0.0
  %2397 = vmatpush1.msra.mxu0 %v2308
  %2398 = vmatprep.subr.mxu0 0.0
  %2399 = vmatpush1.msra.mxu0 %v2309
  %2400 = vmatprep.subr.mxu0 0.0
  %2401 = vmatpush1.msra.mxu0 %v2310
  %2402 = vmatprep.subr.mxu0 0.0
  %2403 = vmatpush1.msra.mxu0 %v2311
  %2404 = vmatprep.subr.mxu0 0.0
  %2405 = vmatpush1.msra.mxu0 %v2312
  %2406 = vmatprep.subr.mxu0 0.0
  %2407 = vmatpush1.msra.mxu0 %v2313
  %2408 = vmatprep.subr.mxu0 0.0
  %2409 = vmatpush1.msra.mxu0 %v2314
  %2410 = vmatprep.subr.mxu0 0.0
  %2411 = vmatpush1.msra.mxu0 %v2315
  %2412 = vmatprep.subr.mxu0 0.0
  %2413 = vmatpush1.msra.mxu0 %v2316
  %2414 = vmatprep.subr.mxu0 0.0
  %2415 = vmatpush1.msra.mxu0 %v2317
  %2416 = vmatprep.subr.mxu0 0.0
  %2417 = vmatpush1.msra.mxu0 %v2318
  %2418 = vmatprep.subr.mxu0 0.0
  %2419 = vmatpush1.msra.mxu0 %v2319
  %2420 = vmatprep.subr.mxu0 0.0
  %2421 = vmatpush1.msra.mxu0 %v2320
  %2422 = vmatprep.subr.mxu0 0.0
  %2423 = vmatpush1.msra.mxu0 %v2321
  %2424 = vmatprep.subr.mxu0 0.0
  %2425 = vmatpush1.msra.mxu0 %v2322
  %2426 = vmatprep.subr.mxu0 0.0
  %2427 = vmatpush1.msra.mxu0 %v2323
  %2428 = vmatprep.subr.mxu0 0.0
  %2429 = vmatpush1.msra.mxu0 %v2324
  %2430 = vmatprep.subr.mxu0 0.0
  %2431 = vmatpush1.msra.mxu0 %v2325
  %2432 = vmatprep.subr.mxu0 0.0
  %2433 = vmatpush1.msra.mxu0 %v2326
  %2434 = vmatprep.subr.mxu0 0.0
  %2435 = vmatpush1.msra.mxu0 %v2327
  %2436 = vmatprep.subr.mxu0 0.0
  %2437 = vmatpush1.msra.mxu0 %v2328
  %2438 = vmatprep.subr.mxu0 0.0
  %2439 = vmatpush1.msra.mxu0 %v2329
  %2440 = vmatprep.subr.mxu0 0.0
  %2441 = vmatpush1.msra.mxu0 %v2330
  %2442 = vmatprep.mubr.f32.mxu0 %v2258
  %2443 = vmatmul.mubr.f32.gmra.mrb[0].mxu0 %v2228
  %v2444 = vpop.f32.mrb[0].mxu0
  %v2445 = vadd.f32 %v2375, %v2444
  %v2446 = vpop.f32.mrb[0].mxu0
  %2447 = vdwg.mxu0
  %2448 = vmatprep.subr.mxu0 0.0
  %2449 = vmatpush1.msra.mxu0 %v2331
  %2450 = vmatprep.subr.mxu0 0.0
  %2451 = vmatpush1.msra.mxu0 %v2332
  %2452 = vmatprep.subr.mxu0 0.0
  %2453 = vmatpush1.msra.mxu0 %v2333
  %2454 = vmatprep.subr.mxu0 0.0
  %2455 = vmatpush1.msra.mxu0 %v2334
  %2456 = vmatprep.subr.mxu0 0.0
  %2457 = vmatpush1.msra.mxu0 %v2335
  %2458 = vmatprep.subr.mxu0 0.0
  %2459 = vmatpush1.msra.mxu0 %v2336
  %2460 = vmatprep.subr.mxu0 0.0
  %2461 = vmatpush1.msra.mxu0 %v2337
  %2462 = vmatprep.subr.mxu0 0.0
  %2463 = vmatpush1.msra.mxu0 %v2338
  %2464 = vmatprep.subr.mxu0 0.0
  %2465 = vmatpush1.msra.mxu0 %v2339
  %2466 = vmatprep.subr.mxu0 0.0
  %2467 = vmatpush1.msra.mxu0 %v2340
  %2468 = vmatprep.subr.mxu0 0.0
  %2469 = vmatpush1.msra.mxu0 %v2341
  %2470 = vmatprep.subr.mxu0 0.0
  %2471 = vmatpush1.msra.mxu0 %v2342
  %2472 = vmatprep.subr.mxu0 0.0
  %2473 = vmatpush1.msra.mxu0 %v2343
  %2474 = vmatprep.subr.mxu0 0.0
  %2475 = vmatpush1.msra.mxu0 %v2344
  %2476 = vmatprep.subr.mxu0 0.0
  %2477 = vmatpush1.msra.mxu0 %v2345
  %2478 = vmatprep.subr.mxu0 0.0
  %2479 = vmatpush1.msra.mxu0 %v2346
  %2480 = vmatprep.subr.mxu0 0.0
  %2481 = vmatpush1.msra.mxu0 %v2347
  %2482 = vmatprep.subr.mxu0 0.0
  %2483 = vmatpush1.msra.mxu0 %v2348
  %2484 = vmatprep.subr.mxu0 0.0
  %2485 = vmatpush1.msra.mxu0 %v2349
  %2486 = vmatprep.subr.mxu0 0.0
  %2487 = vmatpush1.msra.mxu0 %v2350
  %2488 = vmatprep.subr.mxu0 0.0
  %2489 = vmatpush1.msra.mxu0 %v2351
  %2490 = vmatprep.subr.mxu0 0.0
  %2491 = vmatpush1.msra.mxu0 %v2352
  %2492 = vmatprep.subr.mxu0 0.0
  %2493 = vmatpush1.msra.mxu0 %v2353
  %2494 = vmatprep.subr.mxu0 0.0
  %2495 = vmatpush1.msra.mxu0 %v2354
  %2496 = vmatprep.subr.mxu0 0.0
  %2497 = vmatpush1.msra.mxu0 %v2355
  %2498 = vmatprep.subr.mxu0 0.0
  %2499 = vmatpush1.msra.mxu0 %v2356
  %2500 = vmatprep.subr.mxu0 0.0
  %2501 = vmatpush1.msra.mxu0 %v2357
  %2502 = vmatprep.subr.mxu0 0.0
  %2503 = vmatpush1.msra.mxu0 %v2358
  %2504 = vmatprep.subr.mxu0 0.0
  %2505 = vmatpush1.msra.mxu0 %v2359
  %2506 = vmatprep.subr.mxu0 0.0
  %2507 = vmatpush1.msra.mxu0 %v2360
  %2508 = vmatprep.subr.mxu0 0.0
  %2509 = vmatpush1.msra.mxu0 %v2361
  %2510 = vmatprep.subr.mxu0 0.0
  %2511 = vmatpush1.msra.mxu0 %v2362
  %2512 = vmatprep.mubr.f32.mxu0 %v2255
  %2513 = vmatmul.mubr.f32.gmra.mrb[0].mxu0 %v2245
  %v2514 = vpop.f32.mrb[0].mxu0
  %v2515 = vadd.f32 %v2445, %v2514
  %v2516 = vpop.f32.mrb[0].mxu0
  %2517 = vdwg.mxu0
  %2518 = vmatprep.subr.mxu0 0.0
  %2519 = vmatpush1.msra.mxu0 %v2363
  %2520 = vmatprep.subr.mxu0 0.0
  %2521 = vmatpush1.msra.mxu0 %v2364
  %2522 = vmatprep.subr.mxu0 0.0
  %2523 = vmatpush1.msra.mxu0 %v2365
  %2524 = vmatprep.subr.mxu0 0.0
  %2525 = vmatpush1.msra.mxu0 %v2366
  %2526 = vmatprep.subr.mxu0 0.0
  %2527 = vmatpush1.msra.mxu0 %v2367
  %2528 = vmatprep.subr.mxu0 0.0
  %2529 = vmatpush1.msra.mxu0 %v2368
  %2530 = vmatprep.subr.mxu0 0.0
  %2531 = vmatpush1.msra.mxu0 %v2369
  %2532 = vmatprep.subr.mxu0 0.0
  %2533 = vmatpush1.msra.mxu0 %v2370
  %2534 = vmatprep.subr.mxu0 0.0
  %2535 = vmatpush1.msra.mxu0 0.0
  %2536 = vmatprep.subr.mxu0 0.0
  %2537 = vmatpush1.msra.mxu0 0.0
  %2538 = vmatprep.subr.mxu0 0.0
  %2539 = vmatpush1.msra.mxu0 0.0
  %2540 = vmatprep.subr.mxu0 0.0
  %2541 = vmatpush1.msra.mxu0 0.0
  %2542 = vmatprep.subr.mxu0 0.0
  %2543 = vmatpush1.msra.mxu0 0.0
  %2544 = vmatprep.subr.mxu0 0.0
  %2545 = vmatpush1.msra.mxu0 0.0
  %2546 = vmatprep.subr.mxu0 0.0
  %2547 = vmatpush1.msra.mxu0 0.0
  %2548 = vmatprep.subr.mxu0 0.0
  %2549 = vmatpush1.msra.mxu0 0.0
  %2550 = vmatprep.subr.mxu0 0.0
  %2551 = vmatpush1.msra.mxu0 0.0
  %2552 = vmatprep.subr.mxu0 0.0
  %2553 = vmatpush1.msra.mxu0 0.0
  %2554 = vmatprep.subr.mxu0 0.0
  %2555 = vmatpush1.msra.mxu0 0.0
  %2556 = vmatprep.subr.mxu0 0.0
  %2557 = vmatpush1.msra.mxu0 0.0
  %2558 = vmatprep.subr.mxu0 0.0
  %2559 = vmatpush1.msra.mxu0 0.0
  %2560 = vmatprep.subr.mxu0 0.0
  %2561 = vmatpush1.msra.mxu0 0.0
  %2562 = vmatprep.subr.mxu0 0.0
  %2563 = vmatpush1.msra.mxu0 0.0
  %2564 = vmatprep.subr.mxu0 0.0
  %2565 = vmatpush1.msra.mxu0 0.0
  %2566 = vmatprep.subr.mxu0 0.0
  %2567 = vmatpush1.msra.mxu0 0.0
  %2568 = vmatprep.subr.mxu0 0.0
  %2569 = vmatpush1.msra.mxu0 0.0
  %2570 = vmatprep.subr.mxu0 0.0
  %2571 = vmatpush1.msra.mxu0 0.0
  %2572 = vmatprep.subr.mxu0 0.0
  %2573 = vmatpush1.msra.mxu0 0.0
  %2574 = vmatprep.subr.mxu0 0.0
  %2575 = vmatpush1.msra.mxu0 0.0
  %2576 = vmatprep.subr.mxu0 0.0
  %2577 = vmatpush1.msra.mxu0 0.0
  %2578 = vmatprep.subr.mxu0 0.0
  %2579 = vmatpush1.msra.mxu0 0.0
  %2580 = vmatprep.subr.mxu0 0.0
  %2581 = vmatpush1.msra.mxu0 0.0
  %2582 = vmatprep.mubr.f32.mxu0 0.0
  %2583 = vmatmul.mubr.f32.gmra.mrb[0].mxu0 %v2376
  %v2584 = vpop.f32.mrb[0].mxu0
  %v2585 = vadd.f32 %v2515, %v2584
  %v2586 = vpop.f32.mrb[0].mxu0
  %2587 = vdwg.mxu0
  %v2588 = vmul.f32 %v2585, 0.2
  %v2589 = vmax.f32 %v2585, %v2588
  %v2590 = vld [vmem:[%s8 + $0x1] sm:$0x1]
  %v2591 = vlaneseq
  %v2592 = vshrl.u32 %v2591, 7
  %v2593 = vsub.s32 0, %v2592
  %v2594 = vrot.slane %v2590, %v2593
  %v2595 = vmul.f32 %v2589, %v2594
  %v2596 = vld [vmem:[%s8 + $0x2] sm:$0x1]
  %v2597 = vlaneseq
  %v2598 = vshrl.u32 %v2597, 7
  %v2599 = vsub.s32 0, %v2598
  %v2600 = vrot.slane %v2596, %v2599
  %v2601 = vadd.f32 %v2595, %v2600
  %v2602 = vld [vmem:[%s10] sm:$0x1]
  %v2603 = vld [vmem:[%s9] sm:$0xff]
  %v2604 = vld [vmem:[%s9 + $0x8] sm:$0xff]
  %v2605 = vld [vmem:[%s9 + $0x10] sm:$0xff]
  %v2606 = vld [vmem:[%s9 + $0x18] sm:$0xff]
  %v2607 = vld [vmem:[%s9 + $0x20] sm:$0xff]
  %v2608 = vld [vmem:[%s9 + $0x28] sm:$0xff]
  %v2609 = vld [vmem:[%s9 + $0x30] sm:$0xff]
  %v2610 = vld [vmem:[%s9 + $0x38] sm:$0xff]
  %v2611 = vld [vmem:[%s9 + $0x40] sm:$0xff]
  %v2612 = vld [vmem:[%s9 + $0x48] sm:$0xff]
  %v2613 = vld [vmem:[%s9 + $0x50] sm:$0xff]
  %v2614 = vld [vmem:[%s9 + $0x58] sm:$0xff]
  %v2615 = vld [vmem:[%s9 + $0x60] sm:$0xff]
  %v2616 = vld [vmem:[%s9 + $0x68] sm:$0xff]
  %v2617 = vld [vmem:[%s9 + $0x70] sm:$0xff]
  %v2618 = vld [vmem:[%s9 + $0x78] sm:$0xff]
  %2619 = vmatprep.subr.mxu0 0.0
  %2620 = vmatpush1.msra.mxu0 %v2603
  %2621 = vmatprep.subr.mxu0 0.0
  %2622 = vmatpush1.msra.mxu0 %v2604
  %2623 = vmatprep.subr.mxu0 0.0
  %2624 = vmatpush1.msra.mxu0 %v2605
  %2625 = vmatprep.subr.mxu0 0.0
  %2626 = vmatpush1.msra.mxu0 %v2606
  %2627 = vmatprep.subr.mxu0 0.0
  %2628 = vmatpush1.msra.mxu0 %v2607
  %2629 = vmatprep.subr.mxu0 0.0
  %2630 = vmatpush1.msra.mxu0 %v2608
  %2631 = vmatprep.subr.mxu0 0.0
  %2632 = vmatpush1.msra.mxu0 %v2609
  %2633 = vmatprep.subr.mxu0 0.0
  %2634 = vmatpush1.msra.mxu0 %v2610
  %2635 = vmatprep.subr.mxu0 0.0
  %2636 = vmatpush1.msra.mxu0 %v2611
  %2637 = vmatprep.subr.mxu0 0.0
  %2638 = vmatpush1.msra.mxu0 %v2612
  %2639 = vmatprep.subr.mxu0 0.0
  %2640 = vmatpush1.msra.mxu0 %v2613
  %2641 = vmatprep.subr.mxu0 0.0
  %2642 = vmatpush1.msra.mxu0 %v2614
  %2643 = vmatprep.subr.mxu0 0.0
  %2644 = vmatpush1.msra.mxu0 %v2615
  %2645 = vmatprep.subr.mxu0 0.0
  %2646 = vmatpush1.msra.mxu0 %v2616
  %2647 = vmatprep.subr.mxu0 0.0
  %2648 = vmatpush1.msra.mxu0 %v2617
  %2649 = vmatprep.subr.mxu0 0.0
  %2650 = vmatpush1.msra.mxu0 %v2618
  %2651 = vmatprep.subr.mxu0 0.0
  %2652 = vmatpush1.msra.mxu0 0.0
  %2653 = vmatprep.subr.mxu0 0.0
  %2654 = vmatpush1.msra.mxu0 0.0
  %2655 = vmatprep.subr.mxu0 0.0
  %2656 = vmatpush1.msra.mxu0 0.0
  %2657 = vmatprep.subr.mxu0 0.0
  %2658 = vmatpush1.msra.mxu0 0.0
  %2659 = vmatprep.subr.mxu0 0.0
  %2660 = vmatpush1.msra.mxu0 0.0
  %2661 = vmatprep.subr.mxu0 0.0
  %2662 = vmatpush1.msra.mxu0 0.0
  %2663 = vmatprep.subr.mxu0 0.0
  %2664 = vmatpush1.msra.mxu0 0.0
  %2665 = vmatprep.subr.mxu0 0.0
  %2666 = vmatpush1.msra.mxu0 0.0
  %2667 = vmatprep.subr.mxu0 0.0
  %2668 = vmatpush1.msra.mxu0 0.0
  %2669 = vmatprep.subr.mxu0 0.0
  %2670 = vmatpush1.msra.mxu0 0.0
  %2671 = vmatprep.subr.mxu0 0.0
  %2672 = vmatpush1.msra.mxu0 0.0
  %2673 = vmatprep.subr.mxu0 0.0
  %2674 = vmatpush1.msra.mxu0 0.0
  %2675 = vmatprep.subr.mxu0 0.0
  %2676 = vmatpush1.msra.mxu0 0.0
  %2677 = vmatprep.subr.mxu0 0.0
  %2678 = vmatpush1.msra.mxu0 0.0
  %2679 = vmatprep.subr.mxu0 0.0
  %2680 = vmatpush1.msra.mxu0 0.0
  %2681 = vmatprep.subr.mxu0 0.0
  %2682 = vmatpush1.msra.mxu0 0.0
  %2683 = vmatprep.mubr.f32.mxu0 0.0
  %2684 = vmatmul.mubr.f32.gmra.mrb[0].mxu0 %v2601
  %v2685 = vpop.f32.mrb[0].mxu0
  %v2686 = vadd.f32 0.0, %v2685
  %v2687 = vpop.f32.mrb[0].mxu0
  %2688 = vdwg.mxu0
  %v2690 = vlaneseq
  %v2691 = vshrl.u32 %v2690, 7
  %v2692 = vsub.s32 0, %v2691
  %v2693 = vrot.slane %v2602, %v2692
  %v2695 = vadd.f32 %v2693, %v2686
  %v2696 = vsub.f32 0.0, %v2695
  %v2697 = vmul.f32 %v2696, 1.442695
  %v2698 = vpow.pop %v2697
  %v2699 = vadd.f32 %v2698, 1.0
  %v2700 = vrcp.pop %v2699
  %v2701 = vmul.f32 1.0, %v2700
  %vm2702 = vcmask 82952
  %v2703 = vsel %vm2702, %v2695, -inf
  %2704 = vmax.xlane.f32.xlu0 %v2703
  %v2705 = vpop.xlane.xlu0 %2704
  %v2706 = vsub.f32 %v2695, %v2705
  %v2707 = vmul.f32 %v2706, 1.442695
  %v2708 = vpow.pop %v2707
  %2710 = vrot.lane.b32.xlu0 %v2708, 127
  %v2711 = vpop.permute.xlu0 %2710
  %vm2713 = vcmask 74752
  %v2714 = vsel %vm2713, %v2711, 0.0
  %2715 = vadd.xlane.f32.xlu0 %v2714
  %v2716 = vpop.xlane.xlu0 %2715
  %v2717 = vrcp.pop %v2716
  %v2718 = vmul.f32 %v2708, %v2717
  %vm2719 = vcmask 7168
  %v2720 = vsel %vm2719, %v2701, %v2718
  %vm2721 = vcmask 89088
  %v2722 = vsel %vm2721, %v2720, 0.0
  %2723 = vst [vmem:[%s11] sm:$0x3] %v2722
  // Predicated region
  $region106: #{discriminator_forward.1} parent=0 // pred_check
    _
  $region107: #{discriminator_forward.1} parent=0 // pred_check_branch
    %2725 = sbr.rel (0) target = $region109
  $region108: #{discriminator_forward.1} parent=0 // pred_region
    _
  $region109: #{discriminator_forward.1} parent=0 // pred_fallthru
    _
  // Predicated region
  $region110: #{discriminator_forward.1} parent=0 // pred_check
    _
  $region111: #{discriminator_forward.1} parent=0 // pred_check_branch
    %2727 = sbr.rel (0) target = $region113
  $region112: #{discriminator_forward.1} parent=0 // pred_region
    _
  $region113: #{discriminator_forward.1} parent=0 // pred_fallthru
    _
  %2728 = vsyncmov [#allocation7]
  %s2729 = vpop.sfrf %2728
  %p2730 = scmp.eq.s32.totalorder %s2729, 0
  %p2731 = pneg %p2730
  %2733 = shalt.err (%p2731)
  %s2734 = scalar_lea.sflag [#allocation7], 1
  %2735 = vsyncmov %s2734
  %s2736 = vpop.sfrf %2735
  %p2737 = scmp.eq.s32.totalorder %s2736, 0
  %p2738 = pneg %p2737
  %2740 = shalt.err (%p2738)

</llo_original>
